<compile_context>
chip_gen: v5e
topology: v5e:2x2
jax: 0.10.0
libtpu: 0.0.40
codegen_flags: <defaults>
</compile_context>

<pallas_src>
import functools
import math

import jax
import jax.numpy as jnp
from jax.experimental import pallas as pl
from jax.experimental.pallas import tpu as pltpu

# --------------------------- small but consistent config ---------------------------
MODEL_DIM = 32                    # exp.model_dim        (orig 128)
EVENT_LATENT_DIM = MODEL_DIM      # event_latent_dim
N_FRAMES = 16                     # exp.n_frames         (orig n_samples // 256 = 128)
N_SAMPLES = 256                   # exp.n_samples        (orig 2**15)
START_SIZE = 4                    # ConvUpsample start size
RATIO = N_SAMPLES // N_FRAMES     # frame -> sample upsampling ratio
C_AUDIO = 4                       # AudioModel output channels (reduced by the final mean)
WEIGHT_INIT = 0.05                # exp.weight_init
LEAKY_SLOPE = 0.2                 # TODO(synk): original ConvUpsample slope unverified (nn.LeakyReLU default is 0.01)

N_UP_LAYERS = int(math.log2(N_FRAMES) - math.log2(START_SIZE))
assert N_UP_LAYERS == 2, "fused kernels below hard-code the 2 upsample layers of this config"

_SEQ1 = pltpu.CompilerParams(dimension_semantics=("arbitrary",))   # grid=(1,): never split across TCs


# ------------------------------- in-kernel helpers ----------------------------------
def _mm(a, w):
    """MXU matmul: bf16 operands, f32 accumulation."""
    return jnp.dot(a.astype(jnp.bfloat16), w, preferred_element_type=jnp.float32)


def _leaky(v):
    return jnp.where(v > 0, v, LEAKY_SLOPE * v)


def _upsample_stack(z, wlin, blin, g1, bg1, g2, bg2, gf, bgf):
    """ConvUpsample(latent, C, 4, 16, 'nearest', out) folded into 4 chained matmuls.

    Activations stay flattened channel-major, i.e. index (c * L + position), which is exactly
    PyTorch's `.view(-1, C, L)` layout — so no in-kernel reshapes are needed.
    """
    h = _mm(z, wlin) + blin                 # Linear(latent -> C*4)
    h = _leaky(_mm(h, g1) + bg1)            # nearest x2 + Conv1d(k3, same) + LeakyReLU   (C*8)
    h = _leaky(_mm(h, g2) + bg2)            # nearest x2 + Conv1d(k3, same) + LeakyReLU   (C*16)
    return _mm(h, gf) + bgf                 # final Conv1d(k3, same)                      (out*16)


# --------------------------------- Pallas kernels ------------------------------------
def _event_kernel(z_ref, wlin_ref, blin_ref, g1_ref, bg1_ref, g2_ref, bg2_ref,
                  gf_ref, bgf_ref, gamp_ref, bamp_ref, rrep_ref,
                  gwave_ref, bwave_ref, event_ref):
    """transfer latent -> audio event, fully fused (ConvUpsample + AudioModel + combine)."""
    # (B, MODEL_DIM * N_FRAMES) frame features, flat channel-major
    frames = _upsample_stack(z_ref[...], wlin_ref[...], blin_ref[...],
                             g1_ref[...], bg1_ref[...], g2_ref[...], bg2_ref[...],
                             gf_ref[...], bgf_ref[...])

    # amplitude envelope: Conv1d(k3) folded into a matmul, |.|, then nearest x16 upsample
    # expressed as a matmul with a 0/1 repeat matrix (lane-dense, no in-kernel jnp.repeat).
    amp = jnp.abs(_mm(frames, gamp_ref[...]) + bamp_ref[...])      # (B, N_FRAMES)
    amp = _mm(amp, rrep_ref[...])                                  # (B, N_SAMPLES)

    # per-frame waveform (k=1 conv) with the frame->sample interleave folded into the weight
    # matrix, so the result is already in (channel, sample) layout.  Output is written as one
    # lane-dense (B, C_AUDIO*N_SAMPLES) slab; the free row-major reshape happens outside.
    chans = []
    for c in range(C_AUDIO):
        wave_c = _mm(frames, gwave_ref[c]) + bwave_ref[c]          # (B, N_SAMPLES)
        chans.append(jnp.tanh(wave_c) * amp)
    event_ref[...] = jnp.concatenate(chans, axis=-1)               # (B, C_AUDIO*N_SAMPLES)


def _impulse_logits_kernel(z_ref, wlin_ref, blin_ref, g1_ref, bg1_ref,
                           g2_ref, bg2_ref, gf_ref, bgf_ref, o_ref):
    """time latent -> impulse logits (the to_impulse ConvUpsample), fully fused."""
    o_ref[...] = _upsample_stack(z_ref[...], wlin_ref[...], blin_ref[...],
                                 g1_ref[...], bg1_ref[...], g2_ref[...], bg2_ref[...],
                                 gf_ref[...], bgf_ref[...])        # (B, N_FRAMES)


def _channel_mean_kernel(x_ref, o_ref):
    # torch.mean(final, dim=1, keepdim=True)
    o_ref[...] = jnp.mean(x_ref[...], axis=1, keepdims=True)


# --------------------------------- call wrappers -------------------------------------
def _full_spec(shape):
    """Whole-array block with grid=(1,): batch lives inside the block, no per-batch grid steps."""
    return pl.BlockSpec(shape, lambda i: (0,) * len(shape))


def event_pipeline(p, z):
    """p: fused weight tuple, z: (B, EVENT_LATENT_DIM) -> event (B, C_AUDIO, N_SAMPLES)."""
    B = z.shape[0]
    args = (z,) + tuple(p)
    matmul_macs = sum(int(a.size) for a in p if a.dtype == jnp.bfloat16)
    cost = pl.CostEstimate(
        flops=2 * B * matmul_macs,
        transcendentals=B * C_AUDIO * N_SAMPLES,
        bytes_accessed=int(sum(int(a.size) * a.dtype.itemsize for a in args)
                           + B * C_AUDIO * N_SAMPLES * 4))
    flat = pl.pallas_call(
        _event_kernel,
        out_shape=jax.ShapeDtypeStruct((B, C_AUDIO * N_SAMPLES), jnp.float32),
        grid=(1,),
        in_specs=[_full_spec(a.shape) for a in args],
        out_specs=_full_spec((B, C_AUDIO * N_SAMPLES)),
        compiler_params=_SEQ1,
        cost_estimate=cost,
    )(*args)
    return flat.reshape(B, C_AUDIO, N_SAMPLES)      # row-major, layout-preserving (free)


def impulse_logits(p, z):
    B = z.shape[0]
    args = (z,) + tuple(p)
    return pl.pallas_call(
        _impulse_logits_kernel,
        out_shape=jax.ShapeDtypeStruct((B, N_FRAMES), jnp.float32),
        grid=(1,),
        in_specs=[_full_spec(a.shape) for a in args],
        out_specs=_full_spec((B, N_FRAMES)),
        compiler_params=_SEQ1,
    )(*args)


def channel_mean(x):
    B, C, N = x.shape
    return pl.pallas_call(
        _channel_mean_kernel,
        out_shape=jax.ShapeDtypeStruct((B, 1, N), jnp.float32),
        grid=(1,),
        in_specs=[_full_spec((B, C, N))],
        out_specs=_full_spec((B, 1, N)),
        compiler_params=_SEQ1,
    )(x)


# ----------------------------------- parameters --------------------------------------
def _init(key, shape):
    return jax.random.normal(key, shape, dtype=jnp.float32) * WEIGHT_INIT


def init_params(key):
    """Raw PyTorch-style parameters (same shapes / semantics as the reference module)."""
    keys = iter(jax.random.split(key, 32))

    def conv_upsample_params(out_channels):
        return {
            "lin_w": _init(next(keys), (EVENT_LATENT_DIM, MODEL_DIM * START_SIZE)),
            "lin_b": jnp.zeros((1, MODEL_DIM * START_SIZE), jnp.float32),
            "layers": [{"w": _init(next(keys), (3, MODEL_DIM, MODEL_DIM)),
                        "b": jnp.zeros((MODEL_DIM, 1), jnp.float32)}
                       for _ in range(N_UP_LAYERS)],
            "final_w": _init(next(keys), (3, out_channels, MODEL_DIM)),
            "final_b": jnp.zeros((out_channels, 1), jnp.float32),
        }

    return {
        "to_audio_params": conv_upsample_params(MODEL_DIM),
        "to_impulse": conv_upsample_params(1),
        "audio_model": {
            "amp_w": _init(next(keys), (3, 1, MODEL_DIM)),
            "amp_b": jnp.zeros((1, 1), jnp.float32),
            "wave_w": _init(next(keys), (1, C_AUDIO * RATIO, MODEL_DIM)),
            "wave_b": jnp.zeros((C_AUDIO * RATIO, 1), jnp.float32),
        },
    }


# ----------------------- fold upsample+conv stacks into matrices ----------------------
def _upsample_conv_matrix(w, stretch, l_in):
    """Dense matrix M s.t. x_flat @ M == Conv1d(k,'same')(nearest_upsample_x{stretch}(x)) flat.

    w: (K, C_out, C_in).  Flat layout is channel-major: index = channel * L + position,
    identical to PyTorch's contiguous (C, L) view, so stacks chain with no permutation.
    """
    K, c_out, c_in = w.shape
    l_out = l_in * stretch
    pad = (K - 1) // 2
    t = jnp.arange(l_out)
    s = jnp.arange(l_in)
    sel = []
    for k in range(K):
        p = t + k - pad                                   # tap position in the upsampled signal
        valid = (p >= 0) & (p < l_out)                    # 'same' zero padding
        src = jnp.where(valid, p // stretch, -1)          # nearest-neighbour source index
        sel.append((src[None, :] == s[:, None]).astype(jnp.float32))   # (l_in, l_out)
    sel = jnp.stack(sel)                                  # (K, l_in, l_out)
    m = jnp.einsum("koi,kst->isot", w, sel)               # (C_in, l_in, C_out, l_out)
    return m.reshape(c_in * l_in, c_out * l_out)


def _flat_bias(b, l_out):
    c_out = b.shape[0]
    return jnp.broadcast_to(b.reshape(c_out, 1), (c_out, l_out)).reshape(1, c_out * l_out)


def _conv_upsample_effective(p):
    """ConvUpsample -> (lin_w, lin_b, g1, bg1, g2, bg2, gf, bgf); matmul weights in bf16."""
    eff = [p["lin_w"].astype(jnp.bfloat16), p["lin_b"]]
    l = START_SIZE
    for lp in p["layers"]:
        eff.append(_upsample_conv_matrix(lp["w"], 2, l).astype(jnp.bfloat16))
        l *= 2
        eff.append(_flat_bias(lp["b"], l))
    eff.append(_upsample_conv_matrix(p["final_w"], 1, l).astype(jnp.bfloat16))
    eff.append(_flat_bias(p["final_b"], l))
    return tuple(eff)


def prepare_params(params):
    """One-time trace-level preprocessing of raw params into the fused-kernel weight tuples."""
    eff_audio = _conv_upsample_effective(params["to_audio_params"])
    eff_imp = _conv_upsample_effective(params["to_impulse"])

    am = params["audio_model"]
    g_amp = _upsample_conv_matrix(am["amp_w"], 1, N_FRAMES).astype(jnp.bfloat16)   # (512, 16)
    b_amp = _flat_bias(am["amp_b"], N_FRAMES)                                       # (1, 16)

    # nearest x16 frame->sample repeat as a 0/1 matrix (exact in bf16)
    rrep = (jnp.arange(N_SAMPLES)[None, :] // RATIO
            == jnp.arange(N_FRAMES)[:, None]).astype(jnp.bfloat16)                  # (16, 256)

    # k=1 wave conv with the reshape(B,4,16,16)+transpose folded in: output index = f*RATIO + r
    m_wave = _upsample_conv_matrix(am["wave_w"], 1, N_FRAMES)                       # (512, 1024)
    m_wave = m_wave.reshape(MODEL_DIM * N_FRAMES, C_AUDIO, RATIO, N_FRAMES)         # [in, c, r, f]
    g_wave = jnp.transpose(m_wave, (1, 0, 3, 2)).reshape(
        C_AUDIO, MODEL_DIM * N_FRAMES, N_SAMPLES).astype(jnp.bfloat16)              # (4, 512, 256)
    b_wave = jnp.broadcast_to(am["wave_b"].reshape(C_AUDIO, 1, RATIO),
                              (C_AUDIO, N_FRAMES, RATIO)).reshape(C_AUDIO, 1, N_SAMPLES)

    return {
        "event": eff_audio + (g_amp, b_amp, rrep, g_wave, b_wave),
        "impulse": eff_imp,
    }


# ------------------------------------ JAX glue ----------------------------------------
def impulse_generator(logits, key):
    """ImpulseGenerator(n_samples, softmax=gumbel_softmax(hard=True)); logits: (B, N_FRAMES)."""
    # forward value of F.gumbel_softmax(..., hard=True) == one_hot(argmax(logits + gumbel))
    u = jax.random.uniform(key, logits.shape, minval=1e-7, maxval=1.0 - 1e-7)
    g = -jnp.log(-jnp.log(u))
    hard = jax.nn.one_hot(jnp.argmax(logits + g, axis=-1), N_FRAMES, dtype=jnp.float32)
    # TODO(synk): exact ImpulseGenerator source unavailable; impulse placed by zero-stuffed
    # upsampling from frame rate to sample rate (one unit impulse per event).
    B = logits.shape[0]
    imp = jnp.zeros((B, N_FRAMES, RATIO), jnp.float32).at[:, :, 0].set(hard)
    return imp.reshape(B, 1, N_SAMPLES)


def fft_convolve(a, b):
    # TODO(synk): FFT has no Pallas TPU primitive; spectral multiply done in plain JAX.
    n = a.shape[-1]
    a_p = jnp.pad(a, [(0, 0)] * (a.ndim - 1) + [(0, n)])
    b_p = jnp.pad(b, [(0, 0)] * (b.ndim - 1) + [(0, n)])
    spec = jnp.fft.rfft(a_p, axis=-1) * jnp.fft.rfft(b_p, axis=-1)
    return jnp.fft.irfft(spec, axis=-1)[..., :n]


# ------------------------------ SegmentGenerator.forward ------------------------------
def segment_generator_forward(eff_params, time, transfer, gumbel_key):
    transfer = transfer.reshape(-1, EVENT_LATENT_DIM)
    time = time.reshape(-1, EVENT_LATENT_DIM)
    orig_env = time
    orig_tf = transfer
    loss = jnp.float32(0.0)

    event = event_pipeline(eff_params["event"], transfer)          # (B, C_AUDIO, N) fused kernel
    logits = impulse_logits(eff_params["impulse"], time)           # (B, N_FRAMES)   fused kernel
    imp = impulse_generator(logits, gumbel_key)                    # (B, 1, N)       JAX glue

    final = fft_convolve(event, imp)                               # (B, C_AUDIO, N) JAX FFT
    final = channel_mean(final)                                    # (B, 1, N)       Pallas
    return final, orig_env, loss, orig_tf, event


# -------------------------------------- main -------------------------------------------
if __name__ == "__main__":
    key = jax.random.PRNGKey(0)
    k_params, k_time, k_transfer, k_gumbel = jax.random.split(key, 4)

    params = init_params(k_params)
    eff = prepare_params(params)

    B = 2
    time = jax.random.normal(k_time, (B, EVENT_LATENT_DIM), dtype=jnp.float32)
    transfer = jax.random.normal(k_transfer, (B, EVENT_LATENT_DIM), dtype=jnp.float32)

    fwd = jax.jit(functools.partial(segment_generator_forward, eff))
    final, orig_env, loss, orig_tf, event = fwd(time, transfer, k_gumbel)
    jax.block_until_ready(final)

    assert final.shape == (B, 1, N_SAMPLES)
    assert event.shape == (B, C_AUDIO, N_SAMPLES)
    assert orig_env.shape == (B, EVENT_LATENT_DIM)
    assert orig_tf.shape == (B, EVENT_LATENT_DIM)
    print("KERNEL_OK")
</pallas_src>

<mosaic_0001>
module attributes {stable_mosaic.version = 11 : i64} {
  func.func @_impulse_logits_kernel(%arg0: i32, %arg1: memref<2x32xf32, #tpu.memory_space<vmem>>, %arg2: memref<32x128xbf16, #tpu.memory_space<vmem>>, %arg3: memref<1x128xf32, #tpu.memory_space<vmem>>, %arg4: memref<128x256xbf16, #tpu.memory_space<vmem>>, %arg5: memref<1x256xf32, #tpu.memory_space<vmem>>, %arg6: memref<256x512xbf16, #tpu.memory_space<vmem>>, %arg7: memref<1x512xf32, #tpu.memory_space<vmem>>, %arg8: memref<512x16xbf16, #tpu.memory_space<vmem>>, %arg9: memref<1x16xf32, #tpu.memory_space<vmem>>, %arg10: memref<2x16xf32, #tpu.memory_space<vmem>>) attributes {dimension_semantics = [#tpu.dimension_semantics<arbitrary>], iteration_bounds = array<i64: 1>, scalar_prefetch = 0 : i64, scratch_operands = 0 : i64, tpu.core_type = #tpu.core_type<tc>, window_params = [{pipeline_mode = #tpu.pipeline_mode<synchronous>, transform_indices = @transform_0, window_bounds = array<i64: 2, 32>}, {pipeline_mode = #tpu.pipeline_mode<synchronous>, transform_indices = @transform_1, window_bounds = array<i64: 32, 128>}, {pipeline_mode = #tpu.pipeline_mode<synchronous>, transform_indices = @transform_2, window_bounds = array<i64: 1, 128>}, {pipeline_mode = #tpu.pipeline_mode<synchronous>, transform_indices = @transform_3, window_bounds = array<i64: 128, 256>}, {pipeline_mode = #tpu.pipeline_mode<synchronous>, transform_indices = @transform_4, window_bounds = array<i64: 1, 256>}, {pipeline_mode = #tpu.pipeline_mode<synchronous>, transform_indices = @transform_5, window_bounds = array<i64: 256, 512>}, {pipeline_mode = #tpu.pipeline_mode<synchronous>, transform_indices = @transform_6, window_bounds = array<i64: 1, 512>}, {pipeline_mode = #tpu.pipeline_mode<synchronous>, transform_indices = @transform_7, window_bounds = array<i64: 512, 16>}, {pipeline_mode = #tpu.pipeline_mode<synchronous>, transform_indices = @transform_8, window_bounds = array<i64: 1, 16>}, {pipeline_mode = #tpu.pipeline_mode<synchronous>, transform_indices = @transform_9, window_bounds = array<i64: 2, 16>}]} {
    %c0 = arith.constant 0 : index
    %c0_0 = arith.constant 0 : index
    %0 = vector.load %arg1[%c0, %c0_0] : memref<2x32xf32, #tpu.memory_space<vmem>>, vector<2x32xf32>
    %c0_1 = arith.constant 0 : index
    %c0_2 = arith.constant 0 : index
    %1 = vector.load %arg2[%c0_1, %c0_2] : memref<32x128xbf16, #tpu.memory_space<vmem>>, vector<32x128xbf16>
    %c0_3 = arith.constant 0 : index
    %c0_4 = arith.constant 0 : index
    %2 = vector.load %arg3[%c0_3, %c0_4] : memref<1x128xf32, #tpu.memory_space<vmem>>, vector<1x128xf32>
    %c0_5 = arith.constant 0 : index
    %c0_6 = arith.constant 0 : index
    %3 = vector.load %arg4[%c0_5, %c0_6] : memref<128x256xbf16, #tpu.memory_space<vmem>>, vector<128x256xbf16>
    %c0_7 = arith.constant 0 : index
    %c0_8 = arith.constant 0 : index
    %4 = vector.load %arg5[%c0_7, %c0_8] : memref<1x256xf32, #tpu.memory_space<vmem>>, vector<1x256xf32>
    %c0_9 = arith.constant 0 : index
    %c0_10 = arith.constant 0 : index
    %5 = vector.load %arg6[%c0_9, %c0_10] : memref<256x512xbf16, #tpu.memory_space<vmem>>, vector<256x512xbf16>
    %c0_11 = arith.constant 0 : index
    %c0_12 = arith.constant 0 : index
    %6 = vector.load %arg7[%c0_11, %c0_12] : memref<1x512xf32, #tpu.memory_space<vmem>>, vector<1x512xf32>
    %c0_13 = arith.constant 0 : index
    %c0_14 = arith.constant 0 : index
    %7 = vector.load %arg8[%c0_13, %c0_14] : memref<512x16xbf16, #tpu.memory_space<vmem>>, vector<512x16xbf16>
    %c0_15 = arith.constant 0 : index
    %c0_16 = arith.constant 0 : index
    %8 = vector.load %arg9[%c0_15, %c0_16] : memref<1x16xf32, #tpu.memory_space<vmem>>, vector<1x16xf32>
    %9 = arith.truncf %0 : vector<2x32xf32> to vector<2x32xbf16>
    %cst = arith.constant dense<0.000000e+00> : vector<2x128xf32>
    %10 = tpu.matmul %9, %1, %cst {dimension_numbers = #tpu.dot_dimension_numbers<[1], [0], [0], [1], [0, 0, 1, 1], [], []>} : vector<2x32xbf16>, vector<32x128xbf16>, vector<2x128xf32> -> vector<2x128xf32>
    %11 = vector.broadcast %2 : vector<1x128xf32> to vector<2x128xf32>
    %12 = arith.addf %10, %11 : vector<2x128xf32>
    %13 = arith.truncf %12 : vector<2x128xf32> to vector<2x128xbf16>
    %cst_17 = arith.constant dense<0.000000e+00> : vector<2x256xf32>
    %14 = tpu.matmul %13, %3, %cst_17 {dimension_numbers = #tpu.dot_dimension_numbers<[1], [0], [0], [1], [0, 0, 1, 1], [], []>} : vector<2x128xbf16>, vector<128x256xbf16>, vector<2x256xf32> -> vector<2x256xf32>
    %15 = vector.broadcast %4 : vector<1x256xf32> to vector<2x256xf32>
    %16 = arith.addf %14, %15 : vector<2x256xf32>
    %cst_18 = arith.constant 0.000000e+00 : f32
    %17 = vector.broadcast %cst_18 : f32 to vector<2x256xf32>
    %18 = arith.cmpf ogt, %16, %17 : vector<2x256xf32>
    %cst_19 = arith.constant 2.000000e-01 : f32
    %19 = vector.broadcast %cst_19 : f32 to vector<2x256xf32>
    %20 = arith.mulf %19, %16 : vector<2x256xf32>
    %21 = arith.select %18, %16, %20 : vector<2x256xi1>, vector<2x256xf32>
    %22 = arith.truncf %21 : vector<2x256xf32> to vector<2x256xbf16>
    %cst_20 = arith.constant dense<0.000000e+00> : vector<2x512xf32>
    %23 = tpu.matmul %22, %5, %cst_20 {dimension_numbers = #tpu.dot_dimension_numbers<[1], [0], [0], [1], [0, 0, 1, 1], [], []>} : vector<2x256xbf16>, vector<256x512xbf16>, vector<2x512xf32> -> vector<2x512xf32>
    %24 = vector.broadcast %6 : vector<1x512xf32> to vector<2x512xf32>
    %25 = arith.addf %23, %24 : vector<2x512xf32>
    %cst_21 = arith.constant 0.000000e+00 : f32
    %26 = vector.broadcast %cst_21 : f32 to vector<2x512xf32>
    %27 = arith.cmpf ogt, %25, %26 : vector<2x512xf32>
    %cst_22 = arith.constant 2.000000e-01 : f32
    %28 = vector.broadcast %cst_22 : f32 to vector<2x512xf32>
    %29 = arith.mulf %28, %25 : vector<2x512xf32>
    %30 = arith.select %27, %25, %29 : vector<2x512xi1>, vector<2x512xf32>
    %31 = arith.truncf %30 : vector<2x512xf32> to vector<2x512xbf16>
    %cst_23 = arith.constant dense<0.000000e+00> : vector<2x16xf32>
    %32 = tpu.matmul %31, %7, %cst_23 {dimension_numbers = #tpu.dot_dimension_numbers<[1], [0], [0], [1], [0, 0, 1, 1], [], []>} : vector<2x512xbf16>, vector<512x16xbf16>, vector<2x16xf32> -> vector<2x16xf32>
    %33 = vector.broadcast %8 : vector<1x16xf32> to vector<2x16xf32>
    %34 = arith.addf %32, %33 : vector<2x16xf32>
    %c0_24 = arith.constant 0 : index
    %c0_25 = arith.constant 0 : index
    %35 = vector.load %arg10[%c0_24, %c0_25] : memref<2x16xf32, #tpu.memory_space<vmem>>, vector<2x16xf32>
    tpu.vector_store %arg10[%c0_24, %c0_25], %34 {strides = array<i32>} : memref<2x16xf32, #tpu.memory_space<vmem>>, vector<2x16xf32>,
    return
  }
  func.func @transform_0(%arg0: i32) -> (i32, i32) {
    %c0_i32 = arith.constant 0 : i32
    %c0_i32_0 = arith.constant 0 : i32
    %c0_i32_1 = arith.constant 0 : i32
    return %c0_i32, %c0_i32_0 : i32, i32
  }
  func.func @transform_1(%arg0: i32) -> (i32, i32) {
    %c0_i32 = arith.constant 0 : i32
    %c0_i32_0 = arith.constant 0 : i32
    %c0_i32_1 = arith.constant 0 : i32
    return %c0_i32, %c0_i32_0 : i32, i32
  }
  func.func @transform_2(%arg0: i32) -> (i32, i32) {
    %c0_i32 = arith.constant 0 : i32
    %c0_i32_0 = arith.constant 0 : i32
    %c0_i32_1 = arith.constant 0 : i32
    return %c0_i32, %c0_i32_0 : i32, i32
  }
  func.func @transform_3(%arg0: i32) -> (i32, i32) {
    %c0_i32 = arith.constant 0 : i32
    %c0_i32_0 = arith.constant 0 : i32
    %c0_i32_1 = arith.constant 0 : i32
    return %c0_i32, %c0_i32_0 : i32, i32
  }
  func.func @transform_4(%arg0: i32) -> (i32, i32) {
    %c0_i32 = arith.constant 0 : i32
    %c0_i32_0 = arith.constant 0 : i32
    %c0_i32_1 = arith.constant 0 : i32
    return %c0_i32, %c0_i32_0 : i32, i32
  }
  func.func @transform_5(%arg0: i32) -> (i32, i32) {
    %c0_i32 = arith.constant 0 : i32
    %c0_i32_0 = arith.constant 0 : i32
    %c0_i32_1 = arith.constant 0 : i32
    return %c0_i32, %c0_i32_0 : i32, i32
  }
  func.func @transform_6(%arg0: i32) -> (i32, i32) {
    %c0_i32 = arith.constant 0 : i32
    %c0_i32_0 = arith.constant 0 : i32
    %c0_i32_1 = arith.constant 0 : i32
    return %c0_i32, %c0_i32_0 : i32, i32
  }
  func.func @transform_7(%arg0: i32) -> (i32, i32) {
    %c0_i32 = arith.constant 0 : i32
    %c0_i32_0 = arith.constant 0 : i32
    %c0_i32_1 = arith.constant 0 : i32
    return %c0_i32, %c0_i32_0 : i32, i32
  }
  func.func @transform_8(%arg0: i32) -> (i32, i32) {
    %c0_i32 = arith.constant 0 : i32
    %c0_i32_0 = arith.constant 0 : i32
    %c0_i32_1 = arith.constant 0 : i32
    return %c0_i32, %c0_i32_0 : i32, i32
  }
  func.func @transform_9(%arg0: i32) -> (i32, i32) {
    %c0_i32 = arith.constant 0 : i32
    %c0_i32_0 = arith.constant 0 : i32
    %c0_i32_1 = arith.constant 0 : i32
    return %c0_i32, %c0_i32_0 : i32, i32
  }
}

module attributes {stable_mosaic.version = 11 : i64} {
  func.func @_event_kernel(%arg0: i32, %arg1: memref<2x32xf32, #tpu.memory_space<vmem>>, %arg2: memref<32x128xbf16, #tpu.memory_space<vmem>>, %arg3: memref<1x128xf32, #tpu.memory_space<vmem>>, %arg4: memref<128x256xbf16, #tpu.memory_space<vmem>>, %arg5: memref<1x256xf32, #tpu.memory_space<vmem>>, %arg6: memref<256x512xbf16, #tpu.memory_space<vmem>>, %arg7: memref<1x512xf32, #tpu.memory_space<vmem>>, %arg8: memref<512x512xbf16, #tpu.memory_space<vmem>>, %arg9: memref<1x512xf32, #tpu.memory_space<vmem>>, %arg10: memref<512x16xbf16, #tpu.memory_space<vmem>>, %arg11: memref<1x16xf32, #tpu.memory_space<vmem>>, %arg12: memref<16x256xbf16, #tpu.memory_space<vmem>>, %arg13: memref<4x512x256xbf16, #tpu.memory_space<vmem>>, %arg14: memref<4x1x256xf32, #tpu.memory_space<vmem>>, %arg15: memref<2x1024xf32, #tpu.memory_space<vmem>>) attributes {dimension_semantics = [#tpu.dimension_semantics<arbitrary>], iteration_bounds = array<i64: 1>, scalar_prefetch = 0 : i64, scratch_operands = 0 : i64, tpu.core_type = #tpu.core_type<tc>, window_params = [{pipeline_mode = #tpu.pipeline_mode<synchronous>, transform_indices = @transform_0, window_bounds = array<i64: 2, 32>}, {pipeline_mode = #tpu.pipeline_mode<synchronous>, transform_indices = @transform_1, window_bounds = array<i64: 32, 128>}, {pipeline_mode = #tpu.pipeline_mode<synchronous>, transform_indices = @transform_2, window_bounds = array<i64: 1, 128>}, {pipeline_mode = #tpu.pipeline_mode<synchronous>, transform_indices = @transform_3, window_bounds = array<i64: 128, 256>}, {pipeline_mode = #tpu.pipeline_mode<synchronous>, transform_indices = @transform_4, window_bounds = array<i64: 1, 256>}, {pipeline_mode = #tpu.pipeline_mode<synchronous>, transform_indices = @transform_5, window_bounds = array<i64: 256, 512>}, {pipeline_mode = #tpu.pipeline_mode<synchronous>, transform_indices = @transform_6, window_bounds = array<i64: 1, 512>}, {pipeline_mode = #tpu.pipeline_mode<synchronous>, transform_indices = @transform_7, window_bounds = array<i64: 512, 512>}, {pipeline_mode = #tpu.pipeline_mode<synchronous>, transform_indices = @transform_8, window_bounds = array<i64: 1, 512>}, {pipeline_mode = #tpu.pipeline_mode<synchronous>, transform_indices = @transform_9, window_bounds = array<i64: 512, 16>}, {pipeline_mode = #tpu.pipeline_mode<synchronous>, transform_indices = @transform_10, window_bounds = array<i64: 1, 16>}, {pipeline_mode = #tpu.pipeline_mode<synchronous>, transform_indices = @transform_11, window_bounds = array<i64: 16, 256>}, {pipeline_mode = #tpu.pipeline_mode<synchronous>, transform_indices = @transform_12, window_bounds = array<i64: 4, 512, 256>}, {pipeline_mode = #tpu.pipeline_mode<synchronous>, transform_indices = @transform_13, window_bounds = array<i64: 4, 1, 256>}, {pipeline_mode = #tpu.pipeline_mode<synchronous>, transform_indices = @transform_14, window_bounds = array<i64: 2, 1024>}]} {
    %c0 = arith.constant 0 : index
    %c0_0 = arith.constant 0 : index
    %0 = vector.load %arg1[%c0, %c0_0] : memref<2x32xf32, #tpu.memory_space<vmem>>, vector<2x32xf32>
    %c0_1 = arith.constant 0 : index
    %c0_2 = arith.constant 0 : index
    %1 = vector.load %arg2[%c0_1, %c0_2] : memref<32x128xbf16, #tpu.memory_space<vmem>>, vector<32x128xbf16>
    %c0_3 = arith.constant 0 : index
    %c0_4 = arith.constant 0 : index
    %2 = vector.load %arg3[%c0_3, %c0_4] : memref<1x128xf32, #tpu.memory_space<vmem>>, vector<1x128xf32>
    %c0_5 = arith.constant 0 : index
    %c0_6 = arith.constant 0 : index
    %3 = vector.load %arg4[%c0_5, %c0_6] : memref<128x256xbf16, #tpu.memory_space<vmem>>, vector<128x256xbf16>
    %c0_7 = arith.constant 0 : index
    %c0_8 = arith.constant 0 : index
    %4 = vector.load %arg5[%c0_7, %c0_8] : memref<1x256xf32, #tpu.memory_space<vmem>>, vector<1x256xf32>
    %c0_9 = arith.constant 0 : index
    %c0_10 = arith.constant 0 : index
    %5 = vector.load %arg6[%c0_9, %c0_10] : memref<256x512xbf16, #tpu.memory_space<vmem>>, vector<256x512xbf16>
    %c0_11 = arith.constant 0 : index
    %c0_12 = arith.constant 0 : index
    %6 = vector.load %arg7[%c0_11, %c0_12] : memref<1x512xf32, #tpu.memory_space<vmem>>, vector<1x512xf32>
    %c0_13 = arith.constant 0 : index
    %c0_14 = arith.constant 0 : index
    %7 = vector.load %arg8[%c0_13, %c0_14] : memref<512x512xbf16, #tpu.memory_space<vmem>>, vector<512x512xbf16>
    %c0_15 = arith.constant 0 : index
    %c0_16 = arith.constant 0 : index
    %8 = vector.load %arg9[%c0_15, %c0_16] : memref<1x512xf32, #tpu.memory_space<vmem>>, vector<1x512xf32>
    %9 = arith.truncf %0 : vector<2x32xf32> to vector<2x32xbf16>
    %cst = arith.constant dense<0.000000e+00> : vector<2x128xf32>
    %10 = tpu.matmul %9, %1, %cst {dimension_numbers = #tpu.dot_dimension_numbers<[1], [0], [0], [1], [0, 0, 1, 1], [], []>} : vector<2x32xbf16>, vector<32x128xbf16>, vector<2x128xf32> -> vector<2x128xf32>
    %11 = vector.broadcast %2 : vector<1x128xf32> to vector<2x128xf32>
    %12 = arith.addf %10, %11 : vector<2x128xf32>
    %13 = arith.truncf %12 : vector<2x128xf32> to vector<2x128xbf16>
    %cst_17 = arith.constant dense<0.000000e+00> : vector<2x256xf32>
    %14 = tpu.matmul %13, %3, %cst_17 {dimension_numbers = #tpu.dot_dimension_numbers<[1], [0], [0], [1], [0, 0, 1, 1], [], []>} : vector<2x128xbf16>, vector<128x256xbf16>, vector<2x256xf32> -> vector<2x256xf32>
    %15 = vector.broadcast %4 : vector<1x256xf32> to vector<2x256xf32>
    %16 = arith.addf %14, %15 : vector<2x256xf32>
    %cst_18 = arith.constant 0.000000e+00 : f32
    %17 = vector.broadcast %cst_18 : f32 to vector<2x256xf32>
    %18 = arith.cmpf ogt, %16, %17 : vector<2x256xf32>
    %cst_19 = arith.constant 2.000000e-01 : f32
    %19 = vector.broadcast %cst_19 : f32 to vector<2x256xf32>
    %20 = arith.mulf %19, %16 : vector<2x256xf32>
    %21 = arith.select %18, %16, %20 : vector<2x256xi1>, vector<2x256xf32>
    %22 = arith.truncf %21 : vector<2x256xf32> to vector<2x256xbf16>
    %cst_20 = arith.constant dense<0.000000e+00> : vector<2x512xf32>
    %23 = tpu.matmul %22, %5, %cst_20 {dimension_numbers = #tpu.dot_dimension_numbers<[1], [0], [0], [1], [0, 0, 1, 1], [], []>} : vector<2x256xbf16>, vector<256x512xbf16>, vector<2x512xf32> -> vector<2x512xf32>
    %24 = vector.broadcast %6 : vector<1x512xf32> to vector<2x512xf32>
    %25 = arith.addf %23, %24 : vector<2x512xf32>
    %cst_21 = arith.constant 0.000000e+00 : f32
    %26 = vector.broadcast %cst_21 : f32 to vector<2x512xf32>
    %27 = arith.cmpf ogt, %25, %26 : vector<2x512xf32>
    %cst_22 = arith.constant 2.000000e-01 : f32
    %28 = vector.broadcast %cst_22 : f32 to vector<2x512xf32>
    %29 = arith.mulf %28, %25 : vector<2x512xf32>
    %30 = arith.select %27, %25, %29 : vector<2x512xi1>, vector<2x512xf32>
    %31 = arith.truncf %30 : vector<2x512xf32> to vector<2x512xbf16>
    %cst_23 = arith.constant dense<0.000000e+00> : vector<2x512xf32>
    %32 = tpu.matmul %31, %7, %cst_23 {dimension_numbers = #tpu.dot_dimension_numbers<[1], [0], [0], [1], [0, 0, 1, 1], [], []>} : vector<2x512xbf16>, vector<512x512xbf16>, vector<2x512xf32> -> vector<2x512xf32>
    %33 = vector.broadcast %8 : vector<1x512xf32> to vector<2x512xf32>
    %34 = arith.addf %32, %33 : vector<2x512xf32>
    %c0_24 = arith.constant 0 : index
    %c0_25 = arith.constant 0 : index
    %35 = vector.load %arg10[%c0_24, %c0_25] : memref<512x16xbf16, #tpu.memory_space<vmem>>, vector<512x16xbf16>
    %36 = arith.truncf %34 : vector<2x512xf32> to vector<2x512xbf16>
    %cst_26 = arith.constant dense<0.000000e+00> : vector<2x16xf32>
    %37 = tpu.matmul %36, %35, %cst_26 {dimension_numbers = #tpu.dot_dimension_numbers<[1], [0], [0], [1], [0, 0, 1, 1], [], []>} : vector<2x512xbf16>, vector<512x16xbf16>, vector<2x16xf32> -> vector<2x16xf32>
    %c0_27 = arith.constant 0 : index
    %c0_28 = arith.constant 0 : index
    %38 = vector.load %arg11[%c0_27, %c0_28] : memref<1x16xf32, #tpu.memory_space<vmem>>, vector<1x16xf32>
    %39 = vector.broadcast %38 : vector<1x16xf32> to vector<2x16xf32>
    %40 = arith.addf %37, %39 : vector<2x16xf32>
    %41 = math.absf %40 : vector<2x16xf32>
    %c0_29 = arith.constant 0 : index
    %c0_30 = arith.constant 0 : index
    %42 = vector.load %arg12[%c0_29, %c0_30] : memref<16x256xbf16, #tpu.memory_space<vmem>>, vector<16x256xbf16>
    %43 = arith.truncf %41 : vector<2x16xf32> to vector<2x16xbf16>
    %cst_31 = arith.constant dense<0.000000e+00> : vector<2x256xf32>
    %44 = tpu.matmul %43, %42, %cst_31 {dimension_numbers = #tpu.dot_dimension_numbers<[1], [0], [0], [1], [0, 0, 1, 1], [], []>} : vector<2x16xbf16>, vector<16x256xbf16>, vector<2x256xf32> -> vector<2x256xf32>
    %c0_32 = arith.constant 0 : index
    %c0_33 = arith.constant 0 : index
    %c0_34 = arith.constant 0 : index
    %45 = vector.load %arg13[%c0_32, %c0_33, %c0_34] : memref<4x512x256xbf16, #tpu.memory_space<vmem>>, vector<1x512x256xbf16>
    %46 = vector.shape_cast %45 : vector<1x512x256xbf16> to vector<512x256xbf16>
    %47 = arith.truncf %34 : vector<2x512xf32> to vector<2x512xbf16>
    %cst_35 = arith.constant dense<0.000000e+00> : vector<2x256xf32>
    %48 = tpu.matmul %47, %46, %cst_35 {dimension_numbers = #tpu.dot_dimension_numbers<[1], [0], [0], [1], [0, 0, 1, 1], [], []>} : vector<2x512xbf16>, vector<512x256xbf16>, vector<2x256xf32> -> vector<2x256xf32>
    %c0_36 = arith.constant 0 : index
    %c0_37 = arith.constant 0 : index
    %c0_38 = arith.constant 0 : index
    %49 = vector.load %arg14[%c0_36, %c0_37, %c0_38] : memref<4x1x256xf32, #tpu.memory_space<vmem>>, vector<1x1x256xf32>
    %50 = vector.shape_cast %49 : vector<1x1x256xf32> to vector<1x256xf32>
    %51 = vector.broadcast %50 : vector<1x256xf32> to vector<2x256xf32>
    %52 = arith.addf %48, %51 : vector<2x256xf32>
    %53 = math.tanh %52 : vector<2x256xf32>
    %54 = arith.mulf %53, %44 : vector<2x256xf32>
    %c1 = arith.constant 1 : index
    %c0_39 = arith.constant 0 : index
    %c0_40 = arith.constant 0 : index
    %55 = vector.load %arg13[%c1, %c0_39, %c0_40] : memref<4x512x256xbf16, #tpu.memory_space<vmem>>, vector<1x512x256xbf16>
    %56 = vector.shape_cast %55 : vector<1x512x256xbf16> to vector<512x256xbf16>
    %57 = arith.truncf %34 : vector<2x512xf32> to vector<2x512xbf16>
    %cst_41 = arith.constant dense<0.000000e+00> : vector<2x256xf32>
    %58 = tpu.matmul %57, %56, %cst_41 {dimension_numbers = #tpu.dot_dimension_numbers<[1], [0], [0], [1], [0, 0, 1, 1], [], []>} : vector<2x512xbf16>, vector<512x256xbf16>, vector<2x256xf32> -> vector<2x256xf32>
    %c1_42 = arith.constant 1 : index
    %c0_43 = arith.constant 0 : index
    %c0_44 = arith.constant 0 : index
    %59 = vector.load %arg14[%c1_42, %c0_43, %c0_44] : memref<4x1x256xf32, #tpu.memory_space<vmem>>, vector<1x1x256xf32>
    %60 = vector.shape_cast %59 : vector<1x1x256xf32> to vector<1x256xf32>
    %61 = vector.broadcast %60 : vector<1x256xf32> to vector<2x256xf32>
    %62 = arith.addf %58, %61 : vector<2x256xf32>
    %63 = math.tanh %62 : vector<2x256xf32>
    %64 = arith.mulf %63, %44 : vector<2x256xf32>
    %c2 = arith.constant 2 : index
    %c0_45 = arith.constant 0 : index
    %c0_46 = arith.constant 0 : index
    %65 = vector.load %arg13[%c2, %c0_45, %c0_46] : memref<4x512x256xbf16, #tpu.memory_space<vmem>>, vector<1x512x256xbf16>
    %66 = vector.shape_cast %65 : vector<1x512x256xbf16> to vector<512x256xbf16>
    %67 = arith.truncf %34 : vector<2x512xf32> to vector<2x512xbf16>
    %cst_47 = arith.constant dense<0.000000e+00> : vector<2x256xf32>
    %68 = tpu.matmul %67, %66, %cst_47 {dimension_numbers = #tpu.dot_dimension_numbers<[1], [0], [0], [1], [0, 0, 1, 1], [], []>} : vector<2x512xbf16>, vector<512x256xbf16>, vector<2x256xf32> -> vector<2x256xf32>
    %c2_48 = arith.constant 2 : index
    %c0_49 = arith.constant 0 : index
    %c0_50 = arith.constant 0 : index
    %69 = vector.load %arg14[%c2_48, %c0_49, %c0_50] : memref<4x1x256xf32, #tpu.memory_space<vmem>>, vector<1x1x256xf32>
    %70 = vector.shape_cast %69 : vector<1x1x256xf32> to vector<1x256xf32>
    %71 = vector.broadcast %70 : vector<1x256xf32> to vector<2x256xf32>
    %72 = arith.addf %68, %71 : vector<2x256xf32>
    %73 = math.tanh %72 : vector<2x256xf32>
    %74 = arith.mulf %73, %44 : vector<2x256xf32>
    %c3 = arith.constant 3 : index
    %c0_51 = arith.constant 0 : index
    %c0_52 = arith.constant 0 : index
    %75 = vector.load %arg13[%c3, %c0_51, %c0_52] : memref<4x512x256xbf16, #tpu.memory_space<vmem>>, vector<1x512x256xbf16>
    %76 = vector.shape_cast %75 : vector<1x512x256xbf16> to vector<512x256xbf16>
    %77 = arith.truncf %34 : vector<2x512xf32> to vector<2x512xbf16>
    %cst_53 = arith.constant dense<0.000000e+00> : vector<2x256xf32>
    %78 = tpu.matmul %77, %76, %cst_53 {dimension_numbers = #tpu.dot_dimension_numbers<[1], [0], [0], [1], [0, 0, 1, 1], [], []>} : vector<2x512xbf16>, vector<512x256xbf16>, vector<2x256xf32> -> vector<2x256xf32>
    %c3_54 = arith.constant 3 : index
    %c0_55 = arith.constant 0 : index
    %c0_56 = arith.constant 0 : index
    %79 = vector.load %arg14[%c3_54, %c0_55, %c0_56] : memref<4x1x256xf32, #tpu.memory_space<vmem>>, vector<1x1x256xf32>
    %80 = vector.shape_cast %79 : vector<1x1x256xf32> to vector<1x256xf32>
    %81 = vector.broadcast %80 : vector<1x256xf32> to vector<2x256xf32>
    %82 = arith.addf %78, %81 : vector<2x256xf32>
    %83 = math.tanh %82 : vector<2x256xf32>
    %84 = arith.mulf %83, %44 : vector<2x256xf32>
    %85 = tpu.concatenate %54, %64, %74, %84 in 1 : vector<2x256xf32>, vector<2x256xf32>, vector<2x256xf32>, vector<2x256xf32> -> vector<2x1024xf32>
    %c0_57 = arith.constant 0 : index
    %c0_58 = arith.constant 0 : index
    %86 = vector.load %arg15[%c0_57, %c0_58] : memref<2x1024xf32, #tpu.memory_space<vmem>>, vector<2x1024xf32>
    tpu.vector_store %arg15[%c0_57, %c0_58], %85 {strides = array<i32>} : memref<2x1024xf32, #tpu.memory_space<vmem>>, vector<2x1024xf32>,
    return
  }
  func.func @transform_0(%arg0: i32) -> (i32, i32) {
    %c0_i32 = arith.constant 0 : i32
    %c0_i32_0 = arith.constant 0 : i32
    %c0_i32_1 = arith.constant 0 : i32
    return %c0_i32, %c0_i32_0 : i32, i32
  }
  func.func @transform_1(%arg0: i32) -> (i32, i32) {
    %c0_i32 = arith.constant 0 : i32
    %c0_i32_0 = arith.constant 0 : i32
    %c0_i32_1 = arith.constant 0 : i32
    return %c0_i32, %c0_i32_0 : i32, i32
  }
  func.func @transform_2(%arg0: i32) -> (i32, i32) {
    %c0_i32 = arith.constant 0 : i32
    %c0_i32_0 = arith.constant 0 : i32
    %c0_i32_1 = arith.constant 0 : i32
    return %c0_i32, %c0_i32_0 : i32, i32
  }
  func.func @transform_3(%arg0: i32) -> (i32, i32) {
    %c0_i32 = arith.constant 0 : i32
    %c0_i32_0 = arith.constant 0 : i32
    %c0_i32_1 = arith.constant 0 : i32
    return %c0_i32, %c0_i32_0 : i32, i32
  }
  func.func @transform_4(%arg0: i32) -> (i32, i32) {
    %c0_i32 = arith.constant 0 : i32
    %c0_i32_0 = arith.constant 0 : i32
    %c0_i32_1 = arith.constant 0 : i32
    return %c0_i32, %c0_i32_0 : i32, i32
  }
  func.func @transform_5(%arg0: i32) -> (i32, i32) {
    %c0_i32 = arith.constant 0 : i32
    %c0_i32_0 = arith.constant 0 : i32
    %c0_i32_1 = arith.constant 0 : i32
    return %c0_i32, %c0_i32_0 : i32, i32
  }
  func.func @transform_6(%arg0: i32) -> (i32, i32) {
    %c0_i32 = arith.constant 0 : i32
    %c0_i32_0 = arith.constant 0 : i32
    %c0_i32_1 = arith.constant 0 : i32
    return %c0_i32, %c0_i32_0 : i32, i32
  }
  func.func @transform_7(%arg0: i32) -> (i32, i32) {
    %c0_i32 = arith.constant 0 : i32
    %c0_i32_0 = arith.constant 0 : i32
    %c0_i32_1 = arith.constant 0 : i32
    return %c0_i32, %c0_i32_0 : i32, i32
  }
  func.func @transform_8(%arg0: i32) -> (i32, i32) {
    %c0_i32 = arith.constant 0 : i32
    %c0_i32_0 = arith.constant 0 : i32
    %c0_i32_1 = arith.constant 0 : i32
    return %c0_i32, %c0_i32_0 : i32, i32
  }
  func.func @transform_9(%arg0: i32) -> (i32, i32) {
    %c0_i32 = arith.constant 0 : i32
    %c0_i32_0 = arith.constant 0 : i32
    %c0_i32_1 = arith.constant 0 : i32
    return %c0_i32, %c0_i32_0 : i32, i32
  }
  func.func @transform_10(%arg0: i32) -> (i32, i32) {
    %c0_i32 = arith.constant 0 : i32
    %c0_i32_0 = arith.constant 0 : i32
    %c0_i32_1 = arith.constant 0 : i32
    return %c0_i32, %c0_i32_0 : i32, i32
  }
  func.func @transform_11(%arg0: i32) -> (i32, i32) {
    %c0_i32 = arith.constant 0 : i32
    %c0_i32_0 = arith.constant 0 : i32
    %c0_i32_1 = arith.constant 0 : i32
    return %c0_i32, %c0_i32_0 : i32, i32
  }
  func.func @transform_12(%arg0: i32) -> (i32, i32, i32) {
    %c0_i32 = arith.constant 0 : i32
    %c0_i32_0 = arith.constant 0 : i32
    %c0_i32_1 = arith.constant 0 : i32
    %c0_i32_2 = arith.constant 0 : i32
    return %c0_i32, %c0_i32_0, %c0_i32_1 : i32, i32, i32
  }
  func.func @transform_13(%arg0: i32) -> (i32, i32, i32) {
    %c0_i32 = arith.constant 0 : i32
    %c0_i32_0 = arith.constant 0 : i32
    %c0_i32_1 = arith.constant 0 : i32
    %c0_i32_2 = arith.constant 0 : i32
    return %c0_i32, %c0_i32_0, %c0_i32_1 : i32, i32, i32
  }
  func.func @transform_14(%arg0: i32) -> (i32, i32) {
    %c0_i32 = arith.constant 0 : i32
    %c0_i32_0 = arith.constant 0 : i32
    %c0_i32_1 = arith.constant 0 : i32
    return %c0_i32, %c0_i32_0 : i32, i32
  }
}

module attributes {stable_mosaic.version = 11 : i64} {
  func.func @_channel_mean_kernel(%arg0: i32, %arg1: memref<2x4x256xf32, #tpu.memory_space<vmem>>, %arg2: memref<2x1x256xf32, #tpu.memory_space<vmem>>) attributes {dimension_semantics = [#tpu.dimension_semantics<arbitrary>], iteration_bounds = array<i64: 1>, scalar_prefetch = 0 : i64, scratch_operands = 0 : i64, tpu.core_type = #tpu.core_type<tc>, window_params = [{pipeline_mode = #tpu.pipeline_mode<synchronous>, transform_indices = @transform_0, window_bounds = array<i64: 2, 4, 256>}, {pipeline_mode = #tpu.pipeline_mode<synchronous>, transform_indices = @transform_1, window_bounds = array<i64: 2, 1, 256>}]} {
    %c0 = arith.constant 0 : index
    %c0_0 = arith.constant 0 : index
    %c0_1 = arith.constant 0 : index
    %0 = vector.load %arg1[%c0, %c0_0, %c0_1] : memref<2x4x256xf32, #tpu.memory_space<vmem>>, vector<2x4x256xf32>
    %cst = arith.constant dense<0.000000e+00> : vector<2x256xf32>
    %1 = vector.multi_reduction <add>, %0, %cst [1] : vector<2x4x256xf32> to vector<2x256xf32>
    %2 = vector.shape_cast %1 : vector<2x256xf32> to vector<2x1x256xf32>
    %cst_2 = arith.constant 4.000000e+00 : f32
    %3 = vector.broadcast %cst_2 : f32 to vector<2x1x256xf32>
    %4 = arith.divf %2, %3 : vector<2x1x256xf32>
    %c0_3 = arith.constant 0 : index
    %c0_4 = arith.constant 0 : index
    %c0_5 = arith.constant 0 : index
    %5 = vector.load %arg2[%c0_3, %c0_4, %c0_5] : memref<2x1x256xf32, #tpu.memory_space<vmem>>, vector<2x1x256xf32>
    tpu.vector_store %arg2[%c0_3, %c0_4, %c0_5], %4 {strides = array<i32>} : memref<2x1x256xf32, #tpu.memory_space<vmem>>, vector<2x1x256xf32>,
    return
  }
  func.func @transform_0(%arg0: i32) -> (i32, i32, i32) {
    %c0_i32 = arith.constant 0 : i32
    %c0_i32_0 = arith.constant 0 : i32
    %c0_i32_1 = arith.constant 0 : i32
    %c0_i32_2 = arith.constant 0 : i32
    return %c0_i32, %c0_i32_0, %c0_i32_1 : i32, i32, i32
  }
  func.func @transform_1(%arg0: i32) -> (i32, i32, i32) {
    %c0_i32 = arith.constant 0 : i32
    %c0_i32_0 = arith.constant 0 : i32
    %c0_i32_1 = arith.constant 0 : i32
    %c0_i32_2 = arith.constant 0 : i32
    return %c0_i32, %c0_i32_0, %c0_i32_1 : i32, i32, i32
  }
}

</mosaic_0001>

<llo_original>
// kernel: segment_generator_forward.4
$region0: #{segment_generator_forward.4}
  #allocation0 [shape = 'u32[]', space=smem, size = 0x4, offset = 0x4, fixed_abs, tag = 'smem constant byte address 0x4 - core index']
  #allocation1 [shape = 'u32[72,128]{1,0:T(1,128)}', space=vmem, size = 0x9000, scoped, tag = 'internal scratch']
  %s0 = inlined_call_operand.hbm [shape: f32[2,32], index: 0, kind: input, shape index: {}]
  %s1 = inlined_call_operand.vmem [shape: bf16[32,128], index: 1, kind: input, shape index: {}]
  %s2 = inlined_call_operand.vmem [shape: f32[1,128], index: 2, kind: input, shape index: {}]
  %s3 = inlined_call_operand.hbm [shape: bf16[128,256], index: 3, kind: input, shape index: {}]
  %s4 = inlined_call_operand.vmem [shape: f32[1,256], index: 4, kind: input, shape index: {}]
  %s5 = inlined_call_operand.hbm [shape: bf16[256,512], index: 5, kind: input, shape index: {}]
  %s6 = inlined_call_operand.vmem [shape: f32[1,512], index: 6, kind: input, shape index: {}]
  %s7 = inlined_call_operand.hbm [shape: bf16[512,16], index: 7, kind: input, shape index: {}]
  %s8 = inlined_call_operand.vmem [shape: f32[1,16], index: 8, kind: input, shape index: {}]
  %s9 = inlined_call_operand.vmem [shape: f32[2,16], index: 9, kind: output, shape index: {}]
  %s10 = sld [smem:[#allocation0]]
  $region62: #{segment_generator_forward.4} parent=0
    _
  %s12 = ssub.s32 1, %s10
  %s13 = scalar_select 0, %s12, %s10
  $region1: #{segment_generator_forward.4} parent=0
    #allocation2 [shape = 'u8[1024]{0}', space=vmem, size = 0x400, scoped, tag = 'input window, operand 0, single buffered']
    #allocation3 [shape = 's32[1]{0}', space=sflag, size = 0x4, scoped, tag = 'scoped memory for segment_generator_forward.4']
    #allocation4 [shape = 'u8[65536]{0}', space=vmem, size = 0x10000, scoped, tag = 'input window, operand 3, single buffered']
    #allocation5 [shape = 's32[1]{0}', space=sflag, size = 0x4, scoped, tag = 'scoped memory for segment_generator_forward.4']
    #allocation6 [shape = 'u8[262144]{0}', space=vmem, size = 0x40000, scoped, tag = 'input window, operand 5, single buffered']
    #allocation7 [shape = 'u8[131072]{0}', space=vmem, size = 0x20000, scoped, tag = 'input window, operand 7, single buffered']
    #allocation8 [shape = 's32[1]{0}', space=sflag, size = 0x4, scoped, tag = 'scoped memory for segment_generator_forward.4']
    %14 = vsyncpa [#allocation3], 0
    %15 = vsyncpa [#allocation5], 0
    %16 = vsyncpa [#allocation8], 0
    // Predicated region
    $region2: #{segment_generator_forward.4} parent=1 // pred_check
      _
    $region3: #{segment_generator_forward.4} parent=1 // pred_check_branch
      %18 = sbr.rel (0) target = $region5
    $region4: #{segment_generator_forward.4} parent=1 // pred_region
      %20 = vsyncadd [#allocation3], 0
      %s22 = sshll.u32 %s0, 4
      %s23 = int_to_ptr.hbm [resolvable:$true] %s22
      %s24 = sshll.u32 [#allocation2], 4
      %s25 = int_to_ptr.vmem [resolvable:$true] %s24
      %27 = dma.hbm_to_vmem [thread:$0]  %s23, 32, %s25, [#allocation3]
    $region5: #{segment_generator_forward.4} parent=1 // pred_fallthru
      _
    // Predicated region
    $region6: #{segment_generator_forward.4} parent=1 // pred_check
      _
    $region7: #{segment_generator_forward.4} parent=1 // pred_check_branch
      %29 = sbr.rel (0) target = $region9
    $region8: #{segment_generator_forward.4} parent=1 // pred_region
      _
    $region9: #{segment_generator_forward.4} parent=1 // pred_fallthru
      _
    // Predicated region
    $region10: #{segment_generator_forward.4} parent=1 // pred_check
      _
    $region11: #{segment_generator_forward.4} parent=1 // pred_check_branch
      %31 = sbr.rel (0) target = $region13
    $region12: #{segment_generator_forward.4} parent=1 // pred_region
      _
    $region13: #{segment_generator_forward.4} parent=1 // pred_fallthru
      _
    // Predicated region
    $region14: #{segment_generator_forward.4} parent=1 // pred_check
      _
    $region15: #{segment_generator_forward.4} parent=1 // pred_check_branch
      %33 = sbr.rel (0) target = $region17
    $region16: #{segment_generator_forward.4} parent=1 // pred_region
      %35 = vsyncadd [#allocation5], 0
      %s36 = sshll.u32 %s3, 4
      %s37 = int_to_ptr.hbm [resolvable:$true] %s36
      %s38 = sshll.u32 [#allocation4], 4
      %s39 = int_to_ptr.vmem [resolvable:$true] %s38
      %44 = dma.hbm_to_vmem [thread:$0]  %s37, 2048, %s39, [#allocation5], 128, 128, 8
    $region17: #{segment_generator_forward.4} parent=1 // pred_fallthru
      _
    // Predicated region
    $region18: #{segment_generator_forward.4} parent=1 // pred_check
      _
    $region19: #{segment_generator_forward.4} parent=1 // pred_check_branch
      %46 = sbr.rel (0) target = $region21
    $region20: #{segment_generator_forward.4} parent=1 // pred_region
      _
    $region21: #{segment_generator_forward.4} parent=1 // pred_fallthru
      _
    // Predicated region
    $region22: #{segment_generator_forward.4} parent=1 // pred_check
      _
    $region23: #{segment_generator_forward.4} parent=1 // pred_check_branch
      %48 = sbr.rel (0) target = $region25
    $region24: #{segment_generator_forward.4} parent=1 // pred_region
      %50 = vsyncadd [#allocation5], 0
      %s51 = sshll.u32 %s5, 4
      %s52 = int_to_ptr.hbm [resolvable:$true] %s51
      %s53 = sshll.u32 [#allocation6], 4
      %s54 = int_to_ptr.vmem [resolvable:$true] %s53
      %59 = dma.hbm_to_vmem [thread:$0]  %s52, 8192, %s54, [#allocation5], 256, 256, 16
    $region25: #{segment_generator_forward.4} parent=1 // pred_fallthru
      _
    // Predicated region
    $region26: #{segment_generator_forward.4} parent=1 // pred_check
      _
    $region27: #{segment_generator_forward.4} parent=1 // pred_check_branch
      %61 = sbr.rel (0) target = $region29
    $region28: #{segment_generator_forward.4} parent=1 // pred_region
      _
    $region29: #{segment_generator_forward.4} parent=1 // pred_fallthru
      _
    // Predicated region
    $region30: #{segment_generator_forward.4} parent=1 // pred_check
      _
    $region31: #{segment_generator_forward.4} parent=1 // pred_check_branch
      %63 = sbr.rel (0) target = $region33
    $region32: #{segment_generator_forward.4} parent=1 // pred_region
      %65 = vsyncadd [#allocation8], 0
      %s66 = sshll.u32 %s7, 4
      %s67 = int_to_ptr.hbm [resolvable:$true] %s66
      %s68 = sshll.u32 [#allocation7], 4
      %s69 = int_to_ptr.vmem [resolvable:$true] %s68
      %74 = dma.hbm_to_vmem [thread:$0]  %s67, 4096, %s69, [#allocation8], 64, 64, 4
    $region33: #{segment_generator_forward.4} parent=1 // pred_fallthru
      _
    // Predicated region
    $region34: #{segment_generator_forward.4} parent=1 // pred_check
      _
    $region35: #{segment_generator_forward.4} parent=1 // pred_check_branch
      %76 = sbr.rel (0) target = $region37
    $region36: #{segment_generator_forward.4} parent=1 // pred_region
      _
    $region37: #{segment_generator_forward.4} parent=1 // pred_fallthru
      _
    // Predicated region
    $region38: #{segment_generator_forward.4} parent=1 // pred_check
      _
    $region39: #{segment_generator_forward.4} parent=1 // pred_check_branch
      %78 = sbr.rel (0) target = $region41
    $region40: #{segment_generator_forward.4} parent=1 // pred_region
      %80 = dma.done [#allocation3], 32
    $region41: #{segment_generator_forward.4} parent=1 // pred_fallthru
      _
    // Predicated region
    $region42: #{segment_generator_forward.4} parent=1 // pred_check
      _
    $region43: #{segment_generator_forward.4} parent=1 // pred_check_branch
      %82 = sbr.rel (0) target = $region45
    $region44: #{segment_generator_forward.4} parent=1 // pred_region
      %84 = dma.done [#allocation5], 2048
    $region45: #{segment_generator_forward.4} parent=1 // pred_fallthru
      _
    // Predicated region
    $region46: #{segment_generator_forward.4} parent=1 // pred_check
      _
    $region47: #{segment_generator_forward.4} parent=1 // pred_check_branch
      %86 = sbr.rel (0) target = $region49
    $region48: #{segment_generator_forward.4} parent=1 // pred_region
      %88 = dma.done [#allocation5], 8192
    $region49: #{segment_generator_forward.4} parent=1 // pred_fallthru
      _
    // Predicated region
    $region50: #{segment_generator_forward.4} parent=1 // pred_check
      _
    $region51: #{segment_generator_forward.4} parent=1 // pred_check_branch
      %90 = sbr.rel (0) target = $region53
    $region52: #{segment_generator_forward.4} parent=1 // pred_region
      %92 = dma.done [#allocation8], 4096
    $region53: #{segment_generator_forward.4} parent=1 // pred_fallthru
      _
    %v94 = vld [vmem:[#allocation2] sm:$0x3]
    %v95 = vld [vmem:[%s1] sm:$0xf]
    %v96 = vld [vmem:[%s1 + $0x4] sm:$0xf]
    %v97 = vld [vmem:[%s1 + $0x8] sm:$0xf]
    %v98 = vld [vmem:[%s1 + $0xc] sm:$0xf]
    %v99 = vld [vmem:[%s2] sm:$0x1]
    %v100 = vld [vmem:[#allocation4] sm:$0xff]
    %v101 = vld [vmem:[#allocation4 + $0x8] sm:$0xff]
    %v102 = vld [vmem:[#allocation4 + $0x10] sm:$0xff]
    %v103 = vld [vmem:[#allocation4 + $0x18] sm:$0xff]
    %v104 = vld [vmem:[#allocation4 + $0x20] sm:$0xff]
    %v105 = vld [vmem:[#allocation4 + $0x28] sm:$0xff]
    %v106 = vld [vmem:[#allocation4 + $0x30] sm:$0xff]
    %v107 = vld [vmem:[#allocation4 + $0x38] sm:$0xff]
    %v108 = vld [vmem:[#allocation4 + $0x40] sm:$0xff]
    %v109 = vld [vmem:[#allocation4 + $0x48] sm:$0xff]
    %v110 = vld [vmem:[#allocation4 + $0x50] sm:$0xff]
    %v111 = vld [vmem:[#allocation4 + $0x58] sm:$0xff]
    %v112 = vld [vmem:[#allocation4 + $0x60] sm:$0xff]
    %v113 = vld [vmem:[#allocation4 + $0x68] sm:$0xff]
    %v114 = vld [vmem:[#allocation4 + $0x70] sm:$0xff]
    %v115 = vld [vmem:[#allocation4 + $0x78] sm:$0xff]
    %v116 = vld [vmem:[%s4] sm:$0x3]
    %v117 = vld [vmem:[#allocation6] sm:$0xff]
    %v118 = vld [vmem:[#allocation6 + $0x8] sm:$0xff]
    %v119 = vld [vmem:[#allocation6 + $0x10] sm:$0xff]
    %v120 = vld [vmem:[#allocation6 + $0x18] sm:$0xff]
    %v121 = vld [vmem:[#allocation6 + $0x20] sm:$0xff]
    %v122 = vld [vmem:[#allocation6 + $0x28] sm:$0xff]
    %v123 = vld [vmem:[#allocation6 + $0x30] sm:$0xff]
    %v124 = vld [vmem:[#allocation6 + $0x38] sm:$0xff]
    %v125 = vld [vmem:[#allocation6 + $0x40] sm:$0xff]
    %v126 = vld [vmem:[#allocation6 + $0x48] sm:$0xff]
    %v127 = vld [vmem:[#allocation6 + $0x50] sm:$0xff]
    %v128 = vld [vmem:[#allocation6 + $0x58] sm:$0xff]
    %v129 = vld [vmem:[#allocation6 + $0x60] sm:$0xff]
    %v130 = vld [vmem:[#allocation6 + $0x68] sm:$0xff]
    %v131 = vld [vmem:[#allocation6 + $0x70] sm:$0xff]
    %v132 = vld [vmem:[#allocation6 + $0x78] sm:$0xff]
    %v133 = vld [vmem:[#allocation6 + $0x80] sm:$0xff]
    %v134 = vld [vmem:[#allocation6 + $0x88] sm:$0xff]
    %v135 = vld [vmem:[#allocation6 + $0x90] sm:$0xff]
    %v136 = vld [vmem:[#allocation6 + $0x98] sm:$0xff]
    %v137 = vld [vmem:[#allocation6 + $0xa0] sm:$0xff]
    %v138 = vld [vmem:[#allocation6 + $0xa8] sm:$0xff]
    %v139 = vld [vmem:[#allocation6 + $0xb0] sm:$0xff]
    %v140 = vld [vmem:[#allocation6 + $0xb8] sm:$0xff]
    %v141 = vld [vmem:[#allocation6 + $0xc0] sm:$0xff]
    %v142 = vld [vmem:[#allocation6 + $0xc8] sm:$0xff]
    %v143 = vld [vmem:[#allocation6 + $0xd0] sm:$0xff]
    %v144 = vld [vmem:[#allocation6 + $0xd8] sm:$0xff]
    %v145 = vld [vmem:[#allocation6 + $0xe0] sm:$0xff]
    %v146 = vld [vmem:[#allocation6 + $0xe8] sm:$0xff]
    %v147 = vld [vmem:[#allocation6 + $0xf0] sm:$0xff]
    %v148 = vld [vmem:[#allocation6 + $0xf8] sm:$0xff]
    %v149 = vld [vmem:[#allocation6 + $0x100] sm:$0xff]
    %v150 = vld [vmem:[#allocation6 + $0x108] sm:$0xff]
    %v151 = vld [vmem:[#allocation6 + $0x110] sm:$0xff]
    %v152 = vld [vmem:[#allocation6 + $0x118] sm:$0xff]
    %v153 = vld [vmem:[#allocation6 + $0x120] sm:$0xff]
    %v154 = vld [vmem:[#allocation6 + $0x128] sm:$0xff]
    %v155 = vld [vmem:[#allocation6 + $0x130] sm:$0xff]
    %v156 = vld [vmem:[#allocation6 + $0x138] sm:$0xff]
    %v157 = vld [vmem:[#allocation6 + $0x140] sm:$0xff]
    %v158 = vld [vmem:[#allocation6 + $0x148] sm:$0xff]
    %v159 = vld [vmem:[#allocation6 + $0x150] sm:$0xff]
    %v160 = vld [vmem:[#allocation6 + $0x158] sm:$0xff]
    %v161 = vld [vmem:[#allocation6 + $0x160] sm:$0xff]
    %v162 = vld [vmem:[#allocation6 + $0x168] sm:$0xff]
    %v163 = vld [vmem:[#allocation6 + $0x170] sm:$0xff]
    %v164 = vld [vmem:[#allocation6 + $0x178] sm:$0xff]
    %v165 = vld [vmem:[#allocation6 + $0x180] sm:$0xff]
    %v166 = vld [vmem:[#allocation6 + $0x188] sm:$0xff]
    %v167 = vld [vmem:[#allocation6 + $0x190] sm:$0xff]
    %v168 = vld [vmem:[#allocation6 + $0x198] sm:$0xff]
    %v169 = vld [vmem:[#allocation6 + $0x1a0] sm:$0xff]
    %v170 = vld [vmem:[#allocation6 + $0x1a8] sm:$0xff]
    %v171 = vld [vmem:[#allocation6 + $0x1b0] sm:$0xff]
    %v172 = vld [vmem:[#allocation6 + $0x1b8] sm:$0xff]
    %v173 = vld [vmem:[#allocation6 + $0x1c0] sm:$0xff]
    %v174 = vld [vmem:[#allocation6 + $0x1c8] sm:$0xff]
    %v175 = vld [vmem:[#allocation6 + $0x1d0] sm:$0xff]
    %v176 = vld [vmem:[#allocation6 + $0x1d8] sm:$0xff]
    %v177 = vld [vmem:[#allocation6 + $0x1e0] sm:$0xff]
    %v178 = vld [vmem:[#allocation6 + $0x1e8] sm:$0xff]
    %v179 = vld [vmem:[#allocation6 + $0x1f0] sm:$0xff]
    %v180 = vld [vmem:[#allocation6 + $0x1f8] sm:$0xff]
    %v181 = vld [vmem:[%s6] sm:$0xf]
    %v182 = vld [vmem:[#allocation7] sm:$0xf]
    %v183 = vld [vmem:[#allocation7 + $0x4] sm:$0xf]
    %v184 = vld [vmem:[#allocation7 + $0x8] sm:$0xf]
    %v185 = vld [vmem:[#allocation7 + $0xc] sm:$0xf]
    %v186 = vld [vmem:[#allocation7 + $0x10] sm:$0xf]
    %v187 = vld [vmem:[#allocation7 + $0x14] sm:$0xf]
    %v188 = vld [vmem:[#allocation7 + $0x18] sm:$0xf]
    %v189 = vld [vmem:[#allocation7 + $0x1c] sm:$0xf]
    %v190 = vld [vmem:[#allocation7 + $0x20] sm:$0xf]
    %v191 = vld [vmem:[#allocation7 + $0x24] sm:$0xf]
    %v192 = vld [vmem:[#allocation7 + $0x28] sm:$0xf]
    %v193 = vld [vmem:[#allocation7 + $0x2c] sm:$0xf]
    %v194 = vld [vmem:[#allocation7 + $0x30] sm:$0xf]
    %v195 = vld [vmem:[#allocation7 + $0x34] sm:$0xf]
    %v196 = vld [vmem:[#allocation7 + $0x38] sm:$0xf]
    %v197 = vld [vmem:[#allocation7 + $0x3c] sm:$0xf]
    %v198 = vld [vmem:[#allocation7 + $0x40] sm:$0xf]
    %v199 = vld [vmem:[#allocation7 + $0x44] sm:$0xf]
    %v200 = vld [vmem:[#allocation7 + $0x48] sm:$0xf]
    %v201 = vld [vmem:[#allocation7 + $0x4c] sm:$0xf]
    %v202 = vld [vmem:[#allocation7 + $0x50] sm:$0xf]
    %v203 = vld [vmem:[#allocation7 + $0x54] sm:$0xf]
    %v204 = vld [vmem:[#allocation7 + $0x58] sm:$0xf]
    %v205 = vld [vmem:[#allocation7 + $0x5c] sm:$0xf]
    %v206 = vld [vmem:[#allocation7 + $0x60] sm:$0xf]
    %v207 = vld [vmem:[#allocation7 + $0x64] sm:$0xf]
    %v208 = vld [vmem:[#allocation7 + $0x68] sm:$0xf]
    %v209 = vld [vmem:[#allocation7 + $0x6c] sm:$0xf]
    %v210 = vld [vmem:[#allocation7 + $0x70] sm:$0xf]
    %v211 = vld [vmem:[#allocation7 + $0x74] sm:$0xf]
    %v212 = vld [vmem:[#allocation7 + $0x78] sm:$0xf]
    %v213 = vld [vmem:[#allocation7 + $0x7c] sm:$0xf]
    %v214 = vld [vmem:[#allocation7 + $0x80] sm:$0xf]
    %v215 = vld [vmem:[#allocation7 + $0x84] sm:$0xf]
    %v216 = vld [vmem:[#allocation7 + $0x88] sm:$0xf]
    %v217 = vld [vmem:[#allocation7 + $0x8c] sm:$0xf]
    %v218 = vld [vmem:[#allocation7 + $0x90] sm:$0xf]
    %v219 = vld [vmem:[#allocation7 + $0x94] sm:$0xf]
    %v220 = vld [vmem:[#allocation7 + $0x98] sm:$0xf]
    %v221 = vld [vmem:[#allocation7 + $0x9c] sm:$0xf]
    %v222 = vld [vmem:[#allocation7 + $0xa0] sm:$0xf]
    %v223 = vld [vmem:[#allocation7 + $0xa4] sm:$0xf]
    %v224 = vld [vmem:[#allocation7 + $0xa8] sm:$0xf]
    %v225 = vld [vmem:[#allocation7 + $0xac] sm:$0xf]
    %v226 = vld [vmem:[#allocation7 + $0xb0] sm:$0xf]
    %v227 = vld [vmem:[#allocation7 + $0xb4] sm:$0xf]
    %v228 = vld [vmem:[#allocation7 + $0xb8] sm:$0xf]
    %v229 = vld [vmem:[#allocation7 + $0xbc] sm:$0xf]
    %v230 = vld [vmem:[#allocation7 + $0xc0] sm:$0xf]
    %v231 = vld [vmem:[#allocation7 + $0xc4] sm:$0xf]
    %v232 = vld [vmem:[#allocation7 + $0xc8] sm:$0xf]
    %v233 = vld [vmem:[#allocation7 + $0xcc] sm:$0xf]
    %v234 = vld [vmem:[#allocation7 + $0xd0] sm:$0xf]
    %v235 = vld [vmem:[#allocation7 + $0xd4] sm:$0xf]
    %v236 = vld [vmem:[#allocation7 + $0xd8] sm:$0xf]
    %v237 = vld [vmem:[#allocation7 + $0xdc] sm:$0xf]
    %v238 = vld [vmem:[#allocation7 + $0xe0] sm:$0xf]
    %v239 = vld [vmem:[#allocation7 + $0xe4] sm:$0xf]
    %v240 = vld [vmem:[#allocation7 + $0xe8] sm:$0xf]
    %v241 = vld [vmem:[#allocation7 + $0xec] sm:$0xf]
    %v242 = vld [vmem:[#allocation7 + $0xf0] sm:$0xf]
    %v243 = vld [vmem:[#allocation7 + $0xf4] sm:$0xf]
    %v244 = vld [vmem:[#allocation7 + $0xf8] sm:$0xf]
    %v245 = vld [vmem:[#allocation7 + $0xfc] sm:$0xf]
    %v246 = vld [vmem:[%s8] sm:$0x1]
    %v247 = vpack.c.bf16 %v94, %v94
    %v249 = vperm.slane %v99, 0
    %v255 = vunpack.c.l.b16 %v95
    %v256 = vunpack.c.l.b16 %v96
    %v257 = vunpack.c.l.b16 %v97
    %v258 = vunpack.c.l.b16 %v98
    %v259 = vpack.c.b16 %v256, %v255
    %v260 = vpack.c.b16 %v258, %v257
    %vm263 = vcmask 261120
    %v265 = vsel %vm263, %v247, 0
    %267 = vmatpush.bf16.msra.mxu0 0
    %268 = vmatpush.bf16.msra.mxu0 0
    %269 = vmatpush.bf16.msra.mxu0 0
    %270 = vmatpush.bf16.msra.mxu0 0
    %271 = vmatpush.bf16.msra.mxu0 0
    %272 = vmatpush.bf16.msra.mxu0 0
    %273 = vmatpush.bf16.msra.mxu0 %v260
    %274 = vmatpush.bf16.msra.mxu0 %v259
    %275 = vmatmul.bf16.gmra.mxu0 %v265
    %v276 = vpop.f32.mrf.mxu0
    %v277 = vadd.f32 %v249, %v276
    %v278 = vpop.f32.mrf.mxu0
    %279 = vdwg.mxu0
    %v280 = vpack.c.bf16 %v277, %v277
    %v282 = vperm.slane %v116, 0
    %v283 = vperm.slane %v116, 1
    %v302 = vunpack.c.l.b16 %v100
    %v303 = vunpack.c.h.b16 %v100
    %v304 = vunpack.c.l.b16 %v101
    %v305 = vunpack.c.h.b16 %v101
    %v306 = vunpack.c.l.b16 %v102
    %v307 = vunpack.c.h.b16 %v102
    %v308 = vunpack.c.l.b16 %v103
    %v309 = vunpack.c.h.b16 %v103
    %v310 = vunpack.c.l.b16 %v104
    %v311 = vunpack.c.h.b16 %v104
    %v312 = vunpack.c.l.b16 %v105
    %v313 = vunpack.c.h.b16 %v105
    %v314 = vunpack.c.l.b16 %v106
    %v315 = vunpack.c.h.b16 %v106
    %v316 = vunpack.c.l.b16 %v107
    %v317 = vunpack.c.h.b16 %v107
    %v318 = vunpack.c.l.b16 %v108
    %v319 = vunpack.c.h.b16 %v108
    %v320 = vunpack.c.l.b16 %v109
    %v321 = vunpack.c.h.b16 %v109
    %v322 = vunpack.c.l.b16 %v110
    %v323 = vunpack.c.h.b16 %v110
    %v324 = vunpack.c.l.b16 %v111
    %v325 = vunpack.c.h.b16 %v111
    %v326 = vunpack.c.l.b16 %v112
    %v327 = vunpack.c.h.b16 %v112
    %v328 = vunpack.c.l.b16 %v113
    %v329 = vunpack.c.h.b16 %v113
    %v330 = vunpack.c.l.b16 %v114
    %v331 = vunpack.c.h.b16 %v114
    %v332 = vunpack.c.l.b16 %v115
    %v333 = vunpack.c.h.b16 %v115
    %v334 = vpack.c.b16 %v304, %v302
    %v335 = vpack.c.b16 %v305, %v303
    %v336 = vpack.c.b16 %v308, %v306
    %v337 = vpack.c.b16 %v309, %v307
    %v338 = vpack.c.b16 %v312, %v310
    %v339 = vpack.c.b16 %v313, %v311
    %v340 = vpack.c.b16 %v316, %v314
    %v341 = vpack.c.b16 %v317, %v315
    %v342 = vpack.c.b16 %v320, %v318
    %v343 = vpack.c.b16 %v321, %v319
    %v344 = vpack.c.b16 %v324, %v322
    %v345 = vpack.c.b16 %v325, %v323
    %v346 = vpack.c.b16 %v328, %v326
    %v347 = vpack.c.b16 %v329, %v327
    %v348 = vpack.c.b16 %v332, %v330
    %v349 = vpack.c.b16 %v333, %v331
    %366 = vmatpush.bf16.msra.mxu0 %v348
    %367 = vmatpush.bf16.msra.mxu0 %v346
    %368 = vmatpush.bf16.msra.mxu0 %v344
    %369 = vmatpush.bf16.msra.mxu0 %v342
    %370 = vmatpush.bf16.msra.mxu0 %v340
    %371 = vmatpush.bf16.msra.mxu0 %v338
    %372 = vmatpush.bf16.msra.mxu0 %v336
    %373 = vmatpush.bf16.msra.mxu0 %v334
    %374 = vmatmul.bf16.gmra.mxu0 %v280
    %v375 = vpop.f32.mrf.mxu0
    %v376 = vadd.f32 %v282, %v375
    %v377 = vpop.f32.mrf.mxu0
    %378 = vdwg.mxu0
    %379 = vmatpush.bf16.msra.mxu0 %v349
    %380 = vmatpush.bf16.msra.mxu0 %v347
    %381 = vmatpush.bf16.msra.mxu0 %v345
    %382 = vmatpush.bf16.msra.mxu0 %v343
    %383 = vmatpush.bf16.msra.mxu0 %v341
    %384 = vmatpush.bf16.msra.mxu0 %v339
    %385 = vmatpush.bf16.msra.mxu0 %v337
    %386 = vmatpush.bf16.msra.mxu0 %v335
    %387 = vmatmul.bf16.gmra.mxu0 %v280
    %v388 = vpop.f32.mrf.mxu0
    %v389 = vadd.f32 %v283, %v388
    %v390 = vpop.f32.mrf.mxu0
    %391 = vdwg.mxu0
    %vm392 = vcmp.gt.f32.partialorder %v376, 0.0
    %vm393 = vcmp.gt.f32.partialorder %v389, 0.0
    %v394 = vmul.f32 %v376, 0.2
    %v395 = vmul.f32 %v389, 0.2
    %v396 = vsel %vm392, %v376, %v394
    %v397 = vsel %vm393, %v389, %v395
    %v398 = vpack.c.bf16 %v396, %v396
    %v399 = vpack.c.bf16 %v397, %v397
    %v401 = vperm.slane %v181, 0
    %v402 = vperm.slane %v181, 1
    %v403 = vperm.slane %v181, 2
    %v404 = vperm.slane %v181, 3
    %v473 = vunpack.c.l.b16 %v117
    %v474 = vunpack.c.h.b16 %v117
    %v475 = vunpack.c.l.b16 %v118
    %v476 = vunpack.c.h.b16 %v118
    %v477 = vunpack.c.l.b16 %v119
    %v478 = vunpack.c.h.b16 %v119
    %v479 = vunpack.c.l.b16 %v120
    %v480 = vunpack.c.h.b16 %v120
    %v481 = vunpack.c.l.b16 %v121
    %v482 = vunpack.c.h.b16 %v121
    %v483 = vunpack.c.l.b16 %v122
    %v484 = vunpack.c.h.b16 %v122
    %v485 = vunpack.c.l.b16 %v123
    %v486 = vunpack.c.h.b16 %v123
    %v487 = vunpack.c.l.b16 %v124
    %v488 = vunpack.c.h.b16 %v124
    %v489 = vunpack.c.l.b16 %v125
    %v490 = vunpack.c.h.b16 %v125
    %v491 = vunpack.c.l.b16 %v126
    %v492 = vunpack.c.h.b16 %v126
    %v493 = vunpack.c.l.b16 %v127
    %v494 = vunpack.c.h.b16 %v127
    %v495 = vunpack.c.l.b16 %v128
    %v496 = vunpack.c.h.b16 %v128
    %v497 = vunpack.c.l.b16 %v129
    %v498 = vunpack.c.h.b16 %v129
    %v499 = vunpack.c.l.b16 %v130
    %v500 = vunpack.c.h.b16 %v130
    %v501 = vunpack.c.l.b16 %v131
    %v502 = vunpack.c.h.b16 %v131
    %v503 = vunpack.c.l.b16 %v132
    %v504 = vunpack.c.h.b16 %v132
    %v505 = vunpack.c.l.b16 %v133
    %v506 = vunpack.c.h.b16 %v133
    %v507 = vunpack.c.l.b16 %v134
    %v508 = vunpack.c.h.b16 %v134
    %v509 = vunpack.c.l.b16 %v135
    %v510 = vunpack.c.h.b16 %v135
    %v511 = vunpack.c.l.b16 %v136
    %v512 = vunpack.c.h.b16 %v136
    %v513 = vunpack.c.l.b16 %v137
    %v514 = vunpack.c.h.b16 %v137
    %v515 = vunpack.c.l.b16 %v138
    %v516 = vunpack.c.h.b16 %v138
    %v517 = vunpack.c.l.b16 %v139
    %v518 = vunpack.c.h.b16 %v139
    %v519 = vunpack.c.l.b16 %v140
    %v520 = vunpack.c.h.b16 %v140
    %v521 = vunpack.c.l.b16 %v141
    %v522 = vunpack.c.h.b16 %v141
    %v523 = vunpack.c.l.b16 %v142
    %v524 = vunpack.c.h.b16 %v142
    %v525 = vunpack.c.l.b16 %v143
    %v526 = vunpack.c.h.b16 %v143
    %v527 = vunpack.c.l.b16 %v144
    %v528 = vunpack.c.h.b16 %v144
    %v529 = vunpack.c.l.b16 %v145
    %v530 = vunpack.c.h.b16 %v145
    %v531 = vunpack.c.l.b16 %v146
    %v532 = vunpack.c.h.b16 %v146
    %v533 = vunpack.c.l.b16 %v147
    %v534 = vunpack.c.h.b16 %v147
    %v535 = vunpack.c.l.b16 %v148
    %v536 = vunpack.c.h.b16 %v148
    %v537 = vunpack.c.l.b16 %v149
    %v538 = vunpack.c.h.b16 %v149
    %v539 = vunpack.c.l.b16 %v150
    %v540 = vunpack.c.h.b16 %v150
    %v541 = vunpack.c.l.b16 %v151
    %v542 = vunpack.c.h.b16 %v151
    %v543 = vunpack.c.l.b16 %v152
    %v544 = vunpack.c.h.b16 %v152
    %v545 = vunpack.c.l.b16 %v153
    %v546 = vunpack.c.h.b16 %v153
    %v547 = vunpack.c.l.b16 %v154
    %v548 = vunpack.c.h.b16 %v154
    %v549 = vunpack.c.l.b16 %v155
    %v550 = vunpack.c.h.b16 %v155
    %v551 = vunpack.c.l.b16 %v156
    %v552 = vunpack.c.h.b16 %v156
    %v553 = vunpack.c.l.b16 %v157
    %v554 = vunpack.c.h.b16 %v157
    %v555 = vunpack.c.l.b16 %v158
    %v556 = vunpack.c.h.b16 %v158
    %v557 = vunpack.c.l.b16 %v159
    %v558 = vunpack.c.h.b16 %v159
    %v559 = vunpack.c.l.b16 %v160
    %v560 = vunpack.c.h.b16 %v160
    %v561 = vunpack.c.l.b16 %v161
    %v562 = vunpack.c.h.b16 %v161
    %v563 = vunpack.c.l.b16 %v162
    %v564 = vunpack.c.h.b16 %v162
    %v565 = vunpack.c.l.b16 %v163
    %v566 = vunpack.c.h.b16 %v163
    %v567 = vunpack.c.l.b16 %v164
    %v568 = vunpack.c.h.b16 %v164
    %v569 = vunpack.c.l.b16 %v165
    %v570 = vunpack.c.h.b16 %v165
    %v571 = vunpack.c.l.b16 %v166
    %v572 = vunpack.c.h.b16 %v166
    %v573 = vunpack.c.l.b16 %v167
    %v574 = vunpack.c.h.b16 %v167
    %v575 = vunpack.c.l.b16 %v168
    %v576 = vunpack.c.h.b16 %v168
    %v577 = vunpack.c.l.b16 %v169
    %v578 = vunpack.c.h.b16 %v169
    %v579 = vunpack.c.l.b16 %v170
    %v580 = vunpack.c.h.b16 %v170
    %v581 = vunpack.c.l.b16 %v171
    %v582 = vunpack.c.h.b16 %v171
    %v583 = vunpack.c.l.b16 %v172
    %v584 = vunpack.c.h.b16 %v172
    %v585 = vunpack.c.l.b16 %v173
    %v586 = vunpack.c.h.b16 %v173
    %v587 = vunpack.c.l.b16 %v174
    %v588 = vunpack.c.h.b16 %v174
    %v589 = vunpack.c.l.b16 %v175
    %v590 = vunpack.c.h.b16 %v175
    %v591 = vunpack.c.l.b16 %v176
    %v592 = vunpack.c.h.b16 %v176
    %v593 = vunpack.c.l.b16 %v177
    %v594 = vunpack.c.h.b16 %v177
    %v595 = vunpack.c.l.b16 %v178
    %v596 = vunpack.c.h.b16 %v178
    %v597 = vunpack.c.l.b16 %v179
    %v598 = vunpack.c.h.b16 %v179
    %v599 = vunpack.c.l.b16 %v180
    %v600 = vunpack.c.h.b16 %v180
    %v601 = vpack.c.b16 %v477, %v473
    %v602 = vpack.c.b16 %v478, %v474
    %v603 = vpack.c.b16 %v479, %v475
    %v604 = vpack.c.b16 %v480, %v476
    %v605 = vpack.c.b16 %v485, %v481
    %v606 = vpack.c.b16 %v486, %v482
    %v607 = vpack.c.b16 %v487, %v483
    %v608 = vpack.c.b16 %v488, %v484
    %v609 = vpack.c.b16 %v493, %v489
    %v610 = vpack.c.b16 %v494, %v490
    %v611 = vpack.c.b16 %v495, %v491
    %v612 = vpack.c.b16 %v496, %v492
    %v613 = vpack.c.b16 %v501, %v497
    %v614 = vpack.c.b16 %v502, %v498
    %v615 = vpack.c.b16 %v503, %v499
    %v616 = vpack.c.b16 %v504, %v500
    %v617 = vpack.c.b16 %v509, %v505
    %v618 = vpack.c.b16 %v510, %v506
    %v619 = vpack.c.b16 %v511, %v507
    %v620 = vpack.c.b16 %v512, %v508
    %v621 = vpack.c.b16 %v517, %v513
    %v622 = vpack.c.b16 %v518, %v514
    %v623 = vpack.c.b16 %v519, %v515
    %v624 = vpack.c.b16 %v520, %v516
    %v625 = vpack.c.b16 %v525, %v521
    %v626 = vpack.c.b16 %v526, %v522
    %v627 = vpack.c.b16 %v527, %v523
    %v628 = vpack.c.b16 %v528, %v524
    %v629 = vpack.c.b16 %v533, %v529
    %v630 = vpack.c.b16 %v534, %v530
    %v631 = vpack.c.b16 %v535, %v531
    %v632 = vpack.c.b16 %v536, %v532
    %v633 = vpack.c.b16 %v541, %v537
    %v634 = vpack.c.b16 %v542, %v538
    %v635 = vpack.c.b16 %v543, %v539
    %v636 = vpack.c.b16 %v544, %v540
    %v637 = vpack.c.b16 %v549, %v545
    %v638 = vpack.c.b16 %v550, %v546
    %v639 = vpack.c.b16 %v551, %v547
    %v640 = vpack.c.b16 %v552, %v548
    %v641 = vpack.c.b16 %v557, %v553
    %v642 = vpack.c.b16 %v558, %v554
    %v643 = vpack.c.b16 %v559, %v555
    %v644 = vpack.c.b16 %v560, %v556
    %v645 = vpack.c.b16 %v565, %v561
    %v646 = vpack.c.b16 %v566, %v562
    %v647 = vpack.c.b16 %v567, %v563
    %v648 = vpack.c.b16 %v568, %v564
    %v649 = vpack.c.b16 %v573, %v569
    %v650 = vpack.c.b16 %v574, %v570
    %v651 = vpack.c.b16 %v575, %v571
    %v652 = vpack.c.b16 %v576, %v572
    %v653 = vpack.c.b16 %v581, %v577
    %v654 = vpack.c.b16 %v582, %v578
    %v655 = vpack.c.b16 %v583, %v579
    %v656 = vpack.c.b16 %v584, %v580
    %v657 = vpack.c.b16 %v589, %v585
    %v658 = vpack.c.b16 %v590, %v586
    %v659 = vpack.c.b16 %v591, %v587
    %v660 = vpack.c.b16 %v592, %v588
    %v661 = vpack.c.b16 %v597, %v593
    %v662 = vpack.c.b16 %v598, %v594
    %v663 = vpack.c.b16 %v599, %v595
    %v664 = vpack.c.b16 %v600, %v596
    %729 = vmatpush.bf16.msra.mxu0 %v629
    %730 = vmatpush.bf16.msra.mxu0 %v625
    %731 = vmatpush.bf16.msra.mxu0 %v621
    %732 = vmatpush.bf16.msra.mxu0 %v617
    %733 = vmatpush.bf16.msra.mxu0 %v613
    %734 = vmatpush.bf16.msra.mxu0 %v609
    %735 = vmatpush.bf16.msra.mxu0 %v605
    %736 = vmatpush.bf16.msra.mxu0 %v601
    %737 = vmatmul.bf16.gmra.mxu0 %v398
    %v738 = vpop.f32.mrf.mxu0
    %v739 = vadd.f32 %v401, %v738
    %v740 = vpop.f32.mrf.mxu0
    %741 = vdwg.mxu0
    %742 = vmatpush.bf16.msra.mxu0 %v661
    %743 = vmatpush.bf16.msra.mxu0 %v657
    %744 = vmatpush.bf16.msra.mxu0 %v653
    %745 = vmatpush.bf16.msra.mxu0 %v649
    %746 = vmatpush.bf16.msra.mxu0 %v645
    %747 = vmatpush.bf16.msra.mxu0 %v641
    %748 = vmatpush.bf16.msra.mxu0 %v637
    %749 = vmatpush.bf16.msra.mxu0 %v633
    %750 = vmatmul.bf16.gmra.mxu0 %v399
    %v751 = vpop.f32.mrf.mxu0
    %v752 = vadd.f32 %v739, %v751
    %v753 = vpop.f32.mrf.mxu0
    %754 = vdwg.mxu0
    %755 = vmatpush.bf16.msra.mxu0 %v630
    %756 = vmatpush.bf16.msra.mxu0 %v626
    %757 = vmatpush.bf16.msra.mxu0 %v622
    %758 = vmatpush.bf16.msra.mxu0 %v618
    %759 = vmatpush.bf16.msra.mxu0 %v614
    %760 = vmatpush.bf16.msra.mxu0 %v610
    %761 = vmatpush.bf16.msra.mxu0 %v606
    %762 = vmatpush.bf16.msra.mxu0 %v602
    %763 = vmatmul.bf16.gmra.mxu0 %v398
    %v764 = vpop.f32.mrf.mxu0
    %v765 = vadd.f32 %v402, %v764
    %v766 = vpop.f32.mrf.mxu0
    %767 = vdwg.mxu0
    %768 = vmatpush.bf16.msra.mxu0 %v662
    %769 = vmatpush.bf16.msra.mxu0 %v658
    %770 = vmatpush.bf16.msra.mxu0 %v654
    %771 = vmatpush.bf16.msra.mxu0 %v650
    %772 = vmatpush.bf16.msra.mxu0 %v646
    %773 = vmatpush.bf16.msra.mxu0 %v642
    %774 = vmatpush.bf16.msra.mxu0 %v638
    %775 = vmatpush.bf16.msra.mxu0 %v634
    %776 = vmatmul.bf16.gmra.mxu0 %v399
    %v777 = vpop.f32.mrf.mxu0
    %v778 = vadd.f32 %v765, %v777
    %v779 = vpop.f32.mrf.mxu0
    %780 = vdwg.mxu0
    %781 = vmatpush.bf16.msra.mxu0 %v631
    %782 = vmatpush.bf16.msra.mxu0 %v627
    %783 = vmatpush.bf16.msra.mxu0 %v623
    %784 = vmatpush.bf16.msra.mxu0 %v619
    %785 = vmatpush.bf16.msra.mxu0 %v615
    %786 = vmatpush.bf16.msra.mxu0 %v611
    %787 = vmatpush.bf16.msra.mxu0 %v607
    %788 = vmatpush.bf16.msra.mxu0 %v603
    %789 = vmatmul.bf16.gmra.mxu0 %v398
    %v790 = vpop.f32.mrf.mxu0
    %v791 = vadd.f32 %v403, %v790
    %v792 = vpop.f32.mrf.mxu0
    %793 = vdwg.mxu0
    %794 = vmatpush.bf16.msra.mxu0 %v663
    %795 = vmatpush.bf16.msra.mxu0 %v659
    %796 = vmatpush.bf16.msra.mxu0 %v655
    %797 = vmatpush.bf16.msra.mxu0 %v651
    %798 = vmatpush.bf16.msra.mxu0 %v647
    %799 = vmatpush.bf16.msra.mxu0 %v643
    %800 = vmatpush.bf16.msra.mxu0 %v639
    %801 = vmatpush.bf16.msra.mxu0 %v635
    %802 = vmatmul.bf16.gmra.mxu0 %v399
    %v803 = vpop.f32.mrf.mxu0
    %v804 = vadd.f32 %v791, %v803
    %v805 = vpop.f32.mrf.mxu0
    %806 = vdwg.mxu0
    %807 = vmatpush.bf16.msra.mxu0 %v632
    %808 = vmatpush.bf16.msra.mxu0 %v628
    %809 = vmatpush.bf16.msra.mxu0 %v624
    %810 = vmatpush.bf16.msra.mxu0 %v620
    %811 = vmatpush.bf16.msra.mxu0 %v616
    %812 = vmatpush.bf16.msra.mxu0 %v612
    %813 = vmatpush.bf16.msra.mxu0 %v608
    %814 = vmatpush.bf16.msra.mxu0 %v604
    %815 = vmatmul.bf16.gmra.mxu0 %v398
    %v816 = vpop.f32.mrf.mxu0
    %v817 = vadd.f32 %v404, %v816
    %v818 = vpop.f32.mrf.mxu0
    %819 = vdwg.mxu0
    %820 = vmatpush.bf16.msra.mxu0 %v664
    %821 = vmatpush.bf16.msra.mxu0 %v660
    %822 = vmatpush.bf16.msra.mxu0 %v656
    %823 = vmatpush.bf16.msra.mxu0 %v652
    %824 = vmatpush.bf16.msra.mxu0 %v648
    %825 = vmatpush.bf16.msra.mxu0 %v644
    %826 = vmatpush.bf16.msra.mxu0 %v640
    %827 = vmatpush.bf16.msra.mxu0 %v636
    %828 = vmatmul.bf16.gmra.mxu0 %v399
    %v829 = vpop.f32.mrf.mxu0
    %v830 = vadd.f32 %v817, %v829
    %v831 = vpop.f32.mrf.mxu0
    %832 = vdwg.mxu0
    %vm833 = vcmp.gt.f32.partialorder %v752, 0.0
    %vm834 = vcmp.gt.f32.partialorder %v778, 0.0
    %vm835 = vcmp.gt.f32.partialorder %v804, 0.0
    %vm836 = vcmp.gt.f32.partialorder %v830, 0.0
    %v837 = vmul.f32 %v752, 0.2
    %v838 = vmul.f32 %v778, 0.2
    %v839 = vmul.f32 %v804, 0.2
    %v840 = vmul.f32 %v830, 0.2
    %v841 = vsel %vm833, %v752, %v837
    %v842 = vsel %vm834, %v778, %v838
    %v843 = vsel %vm835, %v804, %v839
    %v844 = vsel %vm836, %v830, %v840
    %v845 = vpack.c.bf16 %v841, %v841
    %v846 = vpack.c.bf16 %v842, %v842
    %v847 = vpack.c.bf16 %v843, %v843
    %v848 = vpack.c.bf16 %v844, %v844
    %v850 = vperm.slane %v246, 0
    %v916 = vunpack.c.l.b16 %v182
    %v917 = vunpack.c.l.b16 %v183
    %v918 = vunpack.c.l.b16 %v184
    %v919 = vunpack.c.l.b16 %v185
    %v920 = vunpack.c.l.b16 %v186
    %v921 = vunpack.c.l.b16 %v187
    %v922 = vunpack.c.l.b16 %v188
    %v923 = vunpack.c.l.b16 %v189
    %v924 = vunpack.c.l.b16 %v190
    %v925 = vunpack.c.l.b16 %v191
    %v926 = vunpack.c.l.b16 %v192
    %v927 = vunpack.c.l.b16 %v193
    %v928 = vunpack.c.l.b16 %v194
    %v929 = vunpack.c.l.b16 %v195
    %v930 = vunpack.c.l.b16 %v196
    %v931 = vunpack.c.l.b16 %v197
    %v932 = vunpack.c.l.b16 %v198
    %v933 = vunpack.c.l.b16 %v199
    %v934 = vunpack.c.l.b16 %v200
    %v935 = vunpack.c.l.b16 %v201
    %v936 = vunpack.c.l.b16 %v202
    %v937 = vunpack.c.l.b16 %v203
    %v938 = vunpack.c.l.b16 %v204
    %v939 = vunpack.c.l.b16 %v205
    %v940 = vunpack.c.l.b16 %v206
    %v941 = vunpack.c.l.b16 %v207
    %v942 = vunpack.c.l.b16 %v208
    %v943 = vunpack.c.l.b16 %v209
    %v944 = vunpack.c.l.b16 %v210
    %v945 = vunpack.c.l.b16 %v211
    %v946 = vunpack.c.l.b16 %v212
    %v947 = vunpack.c.l.b16 %v213
    %v948 = vunpack.c.l.b16 %v214
    %v949 = vunpack.c.l.b16 %v215
    %v950 = vunpack.c.l.b16 %v216
    %v951 = vunpack.c.l.b16 %v217
    %v952 = vunpack.c.l.b16 %v218
    %v953 = vunpack.c.l.b16 %v219
    %v954 = vunpack.c.l.b16 %v220
    %v955 = vunpack.c.l.b16 %v221
    %v956 = vunpack.c.l.b16 %v222
    %v957 = vunpack.c.l.b16 %v223
    %v958 = vunpack.c.l.b16 %v224
    %v959 = vunpack.c.l.b16 %v225
    %v960 = vunpack.c.l.b16 %v226
    %v961 = vunpack.c.l.b16 %v227
    %v962 = vunpack.c.l.b16 %v228
    %v963 = vunpack.c.l.b16 %v229
    %v964 = vunpack.c.l.b16 %v230
    %v965 = vunpack.c.l.b16 %v231
    %v966 = vunpack.c.l.b16 %v232
    %v967 = vunpack.c.l.b16 %v233
    %v968 = vunpack.c.l.b16 %v234
    %v969 = vunpack.c.l.b16 %v235
    %v970 = vunpack.c.l.b16 %v236
    %v971 = vunpack.c.l.b16 %v237
    %v972 = vunpack.c.l.b16 %v238
    %v973 = vunpack.c.l.b16 %v239
    %v974 = vunpack.c.l.b16 %v240
    %v975 = vunpack.c.l.b16 %v241
    %v976 = vunpack.c.l.b16 %v242
    %v977 = vunpack.c.l.b16 %v243
    %v978 = vunpack.c.l.b16 %v244
    %v979 = vunpack.c.l.b16 %v245
    %v980 = vpack.c.b16 %v917, %v916
    %v981 = vpack.c.b16 %v919, %v918
    %v982 = vpack.c.b16 %v921, %v920
    %v983 = vpack.c.b16 %v923, %v922
    %v984 = vpack.c.b16 %v925, %v924
    %v985 = vpack.c.b16 %v927, %v926
    %v986 = vpack.c.b16 %v929, %v928
    %v987 = vpack.c.b16 %v931, %v930
    %v988 = vpack.c.b16 %v933, %v932
    %v989 = vpack.c.b16 %v935, %v934
    %v990 = vpack.c.b16 %v937, %v936
    %v991 = vpack.c.b16 %v939, %v938
    %v992 = vpack.c.b16 %v941, %v940
    %v993 = vpack.c.b16 %v943, %v942
    %v994 = vpack.c.b16 %v945, %v944
    %v995 = vpack.c.b16 %v947, %v946
    %v996 = vpack.c.b16 %v949, %v948
    %v997 = vpack.c.b16 %v951, %v950
    %v998 = vpack.c.b16 %v953, %v952
    %v999 = vpack.c.b16 %v955, %v954
    %v1000 = vpack.c.b16 %v957, %v956
    %v1001 = vpack.c.b16 %v959, %v958
    %v1002 = vpack.c.b16 %v961, %v960
    %v1003 = vpack.c.b16 %v963, %v962
    %v1004 = vpack.c.b16 %v965, %v964
    %v1005 = vpack.c.b16 %v967, %v966
    %v1006 = vpack.c.b16 %v969, %v968
    %v1007 = vpack.c.b16 %v971, %v970
    %v1008 = vpack.c.b16 %v973, %v972
    %v1009 = vpack.c.b16 %v975, %v974
    %v1010 = vpack.c.b16 %v977, %v976
    %v1011 = vpack.c.b16 %v979, %v978
    %1044 = vmatpush.bf16.msra.mxu0 %v987
    %1045 = vmatpush.bf16.msra.mxu0 %v986
    %1046 = vmatpush.bf16.msra.mxu0 %v985
    %1047 = vmatpush.bf16.msra.mxu0 %v984
    %1048 = vmatpush.bf16.msra.mxu0 %v983
    %1049 = vmatpush.bf16.msra.mxu0 %v982
    %1050 = vmatpush.bf16.msra.mxu0 %v981
    %1051 = vmatpush.bf16.msra.mxu0 %v980
    %1052 = vmatmul.bf16.gmra.mxu0 %v845
    %v1053 = vpop.f32.mrf.mxu0
    %v1054 = vadd.f32 %v850, %v1053
    %v1055 = vpop.f32.mrf.mxu0
    %1056 = vdwg.mxu0
    %1057 = vmatpush.bf16.msra.mxu0 %v995
    %1058 = vmatpush.bf16.msra.mxu0 %v994
    %1059 = vmatpush.bf16.msra.mxu0 %v993
    %1060 = vmatpush.bf16.msra.mxu0 %v992
    %1061 = vmatpush.bf16.msra.mxu0 %v991
    %1062 = vmatpush.bf16.msra.mxu0 %v990
    %1063 = vmatpush.bf16.msra.mxu0 %v989
    %1064 = vmatpush.bf16.msra.mxu0 %v988
    %1065 = vmatmul.bf16.gmra.mxu0 %v846
    %v1066 = vpop.f32.mrf.mxu0
    %v1067 = vadd.f32 %v1054, %v1066
    %v1068 = vpop.f32.mrf.mxu0
    %1069 = vdwg.mxu0
    %1070 = vmatpush.bf16.msra.mxu0 %v1003
    %1071 = vmatpush.bf16.msra.mxu0 %v1002
    %1072 = vmatpush.bf16.msra.mxu0 %v1001
    %1073 = vmatpush.bf16.msra.mxu0 %v1000
    %1074 = vmatpush.bf16.msra.mxu0 %v999
    %1075 = vmatpush.bf16.msra.mxu0 %v998
    %1076 = vmatpush.bf16.msra.mxu0 %v997
    %1077 = vmatpush.bf16.msra.mxu0 %v996
    %1078 = vmatmul.bf16.gmra.mxu0 %v847
    %v1079 = vpop.f32.mrf.mxu0
    %v1080 = vadd.f32 %v1067, %v1079
    %v1081 = vpop.f32.mrf.mxu0
    %1082 = vdwg.mxu0
    %1083 = vmatpush.bf16.msra.mxu0 %v1011
    %1084 = vmatpush.bf16.msra.mxu0 %v1010
    %1085 = vmatpush.bf16.msra.mxu0 %v1009
    %1086 = vmatpush.bf16.msra.mxu0 %v1008
    %1087 = vmatpush.bf16.msra.mxu0 %v1007
    %1088 = vmatpush.bf16.msra.mxu0 %v1006
    %1089 = vmatpush.bf16.msra.mxu0 %v1005
    %1090 = vmatpush.bf16.msra.mxu0 %v1004
    %1091 = vmatmul.bf16.gmra.mxu0 %v848
    %v1092 = vpop.f32.mrf.mxu0
    %v1093 = vadd.f32 %v1080, %v1092
    %v1094 = vpop.f32.mrf.mxu0
    %1095 = vdwg.mxu0
    %vm1096 = vcmask 123904
    %1097 = vst.msk [vmem:[%s9] sm:$0x3] %vm1096, %v1093
    // Predicated region
    $region54: #{segment_generator_forward.4} parent=1 // pred_check
      _
    $region55: #{segment_generator_forward.4} parent=1 // pred_check_branch
      %1099 = sbr.rel (0) target = $region57
    $region56: #{segment_generator_forward.4} parent=1 // pred_region
      _
    $region57: #{segment_generator_forward.4} parent=1 // pred_fallthru
      _
    // Predicated region
    $region58: #{segment_generator_forward.4} parent=1 // pred_check
      _
    $region59: #{segment_generator_forward.4} parent=1 // pred_check_branch
      %1101 = sbr.rel (0) target = $region61
    $region60: #{segment_generator_forward.4} parent=1 // pred_region
      _
    $region61: #{segment_generator_forward.4} parent=1 // pred_fallthru
      _
    %1102 = vsyncpa [#allocation3], 1
    %1103 = vsyncpa [#allocation5], 1
    %1104 = vsyncpa [#allocation8], 1

// kernel: segment_generator_forward.3
$region0: #{segment_generator_forward.3}
  #allocation0 [shape = 'u32[]', space=smem, size = 0x4, offset = 0x4, fixed_abs, tag = 'smem constant byte address 0x4 - core index']
  #allocation1 [shape = 'u32[72,128]{1,0:T(1,128)}', space=vmem, size = 0x9000, scoped, tag = 'internal scratch']
  %s0 = inlined_call_operand.vmem [shape: f32[2,32], index: 0, kind: input, shape index: {}]
  %s1 = inlined_call_operand.vmem [shape: bf16[32,128], index: 1, kind: input, shape index: {}]
  %s2 = inlined_call_operand.vmem [shape: f32[1,128], index: 2, kind: input, shape index: {}]
  %s3 = inlined_call_operand.hbm [shape: bf16[128,256], index: 3, kind: input, shape index: {}]
  %s4 = inlined_call_operand.vmem [shape: f32[1,256], index: 4, kind: input, shape index: {}]
  %s5 = inlined_call_operand.hbm [shape: bf16[256,512], index: 5, kind: input, shape index: {}]
  %s6 = inlined_call_operand.vmem [shape: f32[1,512], index: 6, kind: input, shape index: {}, may-alias: {6,8}]
  %s7 = inlined_call_operand.vmem [shape: bf16[512,512], index: 7, kind: input, shape index: {}]
  %s8 = inlined_call_operand.vmem [shape: f32[1,512], index: 8, kind: input, shape index: {}, may-alias: {6,8}]
  %s9 = inlined_call_operand.hbm [shape: bf16[512,16], index: 9, kind: input, shape index: {}]
  %s10 = inlined_call_operand.vmem [shape: f32[1,16], index: 10, kind: input, shape index: {}]
  %s11 = inlined_call_operand.vmem [shape: bf16[16,256], index: 11, kind: input, shape index: {}]
  %s12 = inlined_call_operand.hbm [shape: bf16[4,512,256], index: 12, kind: input, shape index: {}]
  %s13 = inlined_call_operand.vmem [shape: f32[4,1,256], index: 13, kind: input, shape index: {}]
  %s14 = inlined_call_operand.vmem [shape: f32[2,1024], index: 14, kind: output, shape index: {}]
  %s15 = sld [smem:[#allocation0]]
  $region82: #{segment_generator_forward.3} parent=0
    _
  %s17 = ssub.s32 1, %s15
  %s18 = scalar_select 0, %s17, %s15
  $region1: #{segment_generator_forward.3} parent=0
    #allocation2 [shape = 'u8[65536]{0}', space=vmem, size = 0x10000, scoped, tag = 'input window, operand 3, single buffered']
    #allocation3 [shape = 's32[1]{0}', space=sflag, size = 0x4, scoped, tag = 'scoped memory for segment_generator_forward.3']
    #allocation4 [shape = 'u8[262144]{0}', space=vmem, size = 0x40000, scoped, tag = 'input window, operand 5, single buffered']
    #allocation5 [shape = 's32[1]{0}', space=sflag, size = 0x4, scoped, tag = 'scoped memory for segment_generator_forward.3']
    #allocation6 [shape = 'u8[131072]{0}', space=vmem, size = 0x20000, scoped, tag = 'input window, operand 9, single buffered']
    #allocation7 [shape = 'u8[1048576]{0}', space=vmem, size = 0x100000, scoped, tag = 'input window, operand 12, single buffered']
    #allocation8 [shape = 's32[1]{0}', space=sflag, size = 0x4, scoped, tag = 'scoped memory for segment_generator_forward.3']
    %19 = vsyncpa [#allocation3], 0
    %20 = vsyncpa [#allocation5], 0
    %21 = vsyncpa [#allocation8], 0
    // Predicated region
    $region2: #{segment_generator_forward.3} parent=1 // pred_check
      _
    $region3: #{segment_generator_forward.3} parent=1 // pred_check_branch
      %23 = sbr.rel (0) target = $region5
    $region4: #{segment_generator_forward.3} parent=1 // pred_region
      _
    $region5: #{segment_generator_forward.3} parent=1 // pred_fallthru
      _
    // Predicated region
    $region6: #{segment_generator_forward.3} parent=1 // pred_check
      _
    $region7: #{segment_generator_forward.3} parent=1 // pred_check_branch
      %25 = sbr.rel (0) target = $region9
    $region8: #{segment_generator_forward.3} parent=1 // pred_region
      _
    $region9: #{segment_generator_forward.3} parent=1 // pred_fallthru
      _
    // Predicated region
    $region10: #{segment_generator_forward.3} parent=1 // pred_check
      _
    $region11: #{segment_generator_forward.3} parent=1 // pred_check_branch
      %27 = sbr.rel (0) target = $region13
    $region12: #{segment_generator_forward.3} parent=1 // pred_region
      _
    $region13: #{segment_generator_forward.3} parent=1 // pred_fallthru
      _
    // Predicated region
    $region14: #{segment_generator_forward.3} parent=1 // pred_check
      _
    $region15: #{segment_generator_forward.3} parent=1 // pred_check_branch
      %29 = sbr.rel (0) target = $region17
    $region16: #{segment_generator_forward.3} parent=1 // pred_region
      %31 = vsyncadd [#allocation3], 0
      %s32 = sshll.u32 %s3, 4
      %s33 = int_to_ptr.hbm [resolvable:$true] %s32
      %s34 = sshll.u32 [#allocation2], 4
      %s35 = int_to_ptr.vmem [resolvable:$true] %s34
      %40 = dma.hbm_to_vmem [thread:$0]  %s33, 2048, %s35, [#allocation3], 128, 128, 8
    $region17: #{segment_generator_forward.3} parent=1 // pred_fallthru
      _
    // Predicated region
    $region18: #{segment_generator_forward.3} parent=1 // pred_check
      _
    $region19: #{segment_generator_forward.3} parent=1 // pred_check_branch
      %42 = sbr.rel (0) target = $region21
    $region20: #{segment_generator_forward.3} parent=1 // pred_region
      _
    $region21: #{segment_generator_forward.3} parent=1 // pred_fallthru
      _
    // Predicated region
    $region22: #{segment_generator_forward.3} parent=1 // pred_check
      _
    $region23: #{segment_generator_forward.3} parent=1 // pred_check_branch
      %44 = sbr.rel (0) target = $region25
    $region24: #{segment_generator_forward.3} parent=1 // pred_region
      %46 = vsyncadd [#allocation5], 0
      %s47 = sshll.u32 %s5, 4
      %s48 = int_to_ptr.hbm [resolvable:$true] %s47
      %s49 = sshll.u32 [#allocation4], 4
      %s50 = int_to_ptr.vmem [resolvable:$true] %s49
      %55 = dma.hbm_to_vmem [thread:$0]  %s48, 8192, %s50, [#allocation5], 256, 256, 16
    $region25: #{segment_generator_forward.3} parent=1 // pred_fallthru
      _
    // Predicated region
    $region26: #{segment_generator_forward.3} parent=1 // pred_check
      _
    $region27: #{segment_generator_forward.3} parent=1 // pred_check_branch
      %57 = sbr.rel (0) target = $region29
    $region28: #{segment_generator_forward.3} parent=1 // pred_region
      _
    $region29: #{segment_generator_forward.3} parent=1 // pred_fallthru
      _
    // Predicated region
    $region30: #{segment_generator_forward.3} parent=1 // pred_check
      _
    $region31: #{segment_generator_forward.3} parent=1 // pred_check_branch
      %59 = sbr.rel (0) target = $region33
    $region32: #{segment_generator_forward.3} parent=1 // pred_region
      _
    $region33: #{segment_generator_forward.3} parent=1 // pred_fallthru
      _
    // Predicated region
    $region34: #{segment_generator_forward.3} parent=1 // pred_check
      _
    $region35: #{segment_generator_forward.3} parent=1 // pred_check_branch
      %61 = sbr.rel (0) target = $region37
    $region36: #{segment_generator_forward.3} parent=1 // pred_region
      _
    $region37: #{segment_generator_forward.3} parent=1 // pred_fallthru
      _
    // Predicated region
    $region38: #{segment_generator_forward.3} parent=1 // pred_check
      _
    $region39: #{segment_generator_forward.3} parent=1 // pred_check_branch
      %63 = sbr.rel (0) target = $region41
    $region40: #{segment_generator_forward.3} parent=1 // pred_region
      %65 = vsyncadd [#allocation5], 0
      %s66 = sshll.u32 %s9, 4
      %s67 = int_to_ptr.hbm [resolvable:$true] %s66
      %s68 = sshll.u32 [#allocation6], 4
      %s69 = int_to_ptr.vmem [resolvable:$true] %s68
      %74 = dma.hbm_to_vmem [thread:$0]  %s67, 4096, %s69, [#allocation5], 64, 64, 4
    $region41: #{segment_generator_forward.3} parent=1 // pred_fallthru
      _
    // Predicated region
    $region42: #{segment_generator_forward.3} parent=1 // pred_check
      _
    $region43: #{segment_generator_forward.3} parent=1 // pred_check_branch
      %76 = sbr.rel (0) target = $region45
    $region44: #{segment_generator_forward.3} parent=1 // pred_region
      _
    $region45: #{segment_generator_forward.3} parent=1 // pred_fallthru
      _
    // Predicated region
    $region46: #{segment_generator_forward.3} parent=1 // pred_check
      _
    $region47: #{segment_generator_forward.3} parent=1 // pred_check_branch
      %78 = sbr.rel (0) target = $region49
    $region48: #{segment_generator_forward.3} parent=1 // pred_region
      _
    $region49: #{segment_generator_forward.3} parent=1 // pred_fallthru
      _
    // Predicated region
    $region50: #{segment_generator_forward.3} parent=1 // pred_check
      _
    $region51: #{segment_generator_forward.3} parent=1 // pred_check_branch
      %80 = sbr.rel (0) target = $region53
    $region52: #{segment_generator_forward.3} parent=1 // pred_region
      %82 = vsyncadd [#allocation8], 0
      %s83 = sshll.u32 %s12, 4
      %s84 = int_to_ptr.hbm [resolvable:$true] %s83
      %s85 = sshll.u32 [#allocation7], 4
      %s86 = int_to_ptr.vmem [resolvable:$true] %s85
      %91 = dma.hbm_to_vmem [thread:$0]  %s84, 32768, %s86, [#allocation8], 128, 128, 8
    $region53: #{segment_generator_forward.3} parent=1 // pred_fallthru
      _
    // Predicated region
    $region54: #{segment_generator_forward.3} parent=1 // pred_check
      _
    $region55: #{segment_generator_forward.3} parent=1 // pred_check_branch
      %93 = sbr.rel (0) target = $region57
    $region56: #{segment_generator_forward.3} parent=1 // pred_region
      _
    $region57: #{segment_generator_forward.3} parent=1 // pred_fallthru
      _
    // Predicated region
    $region58: #{segment_generator_forward.3} parent=1 // pred_check
      _
    $region59: #{segment_generator_forward.3} parent=1 // pred_check_branch
      %95 = sbr.rel (0) target = $region61
    $region60: #{segment_generator_forward.3} parent=1 // pred_region
      %97 = dma.done [#allocation3], 2048
    $region61: #{segment_generator_forward.3} parent=1 // pred_fallthru
      _
    // Predicated region
    $region62: #{segment_generator_forward.3} parent=1 // pred_check
      _
    $region63: #{segment_generator_forward.3} parent=1 // pred_check_branch
      %99 = sbr.rel (0) target = $region65
    $region64: #{segment_generator_forward.3} parent=1 // pred_region
      %101 = dma.done [#allocation5], 8192
    $region65: #{segment_generator_forward.3} parent=1 // pred_fallthru
      _
    // Predicated region
    $region66: #{segment_generator_forward.3} parent=1 // pred_check
      _
    $region67: #{segment_generator_forward.3} parent=1 // pred_check_branch
      %103 = sbr.rel (0) target = $region69
    $region68: #{segment_generator_forward.3} parent=1 // pred_region
      %105 = dma.done [#allocation5], 4096
    $region69: #{segment_generator_forward.3} parent=1 // pred_fallthru
      _
    // Predicated region
    $region70: #{segment_generator_forward.3} parent=1 // pred_check
      _
    $region71: #{segment_generator_forward.3} parent=1 // pred_check_branch
      %107 = sbr.rel (0) target = $region73
    $region72: #{segment_generator_forward.3} parent=1 // pred_region
      %109 = dma.done [#allocation8], 32768
    $region73: #{segment_generator_forward.3} parent=1 // pred_fallthru
      _
    %v111 = vld [vmem:[%s0] sm:$0x3]
    %v112 = vld [vmem:[%s1] sm:$0xf]
    %v113 = vld [vmem:[%s1 + $0x4] sm:$0xf]
    %v114 = vld [vmem:[%s1 + $0x8] sm:$0xf]
    %v115 = vld [vmem:[%s1 + $0xc] sm:$0xf]
    %v116 = vld [vmem:[%s2] sm:$0x1]
    %v117 = vld [vmem:[#allocation2] sm:$0xff]
    %v118 = vld [vmem:[#allocation2 + $0x8] sm:$0xff]
    %v119 = vld [vmem:[#allocation2 + $0x10] sm:$0xff]
    %v120 = vld [vmem:[#allocation2 + $0x18] sm:$0xff]
    %v121 = vld [vmem:[#allocation2 + $0x20] sm:$0xff]
    %v122 = vld [vmem:[#allocation2 + $0x28] sm:$0xff]
    %v123 = vld [vmem:[#allocation2 + $0x30] sm:$0xff]
    %v124 = vld [vmem:[#allocation2 + $0x38] sm:$0xff]
    %v125 = vld [vmem:[#allocation2 + $0x40] sm:$0xff]
    %v126 = vld [vmem:[#allocation2 + $0x48] sm:$0xff]
    %v127 = vld [vmem:[#allocation2 + $0x50] sm:$0xff]
    %v128 = vld [vmem:[#allocation2 + $0x58] sm:$0xff]
    %v129 = vld [vmem:[#allocation2 + $0x60] sm:$0xff]
    %v130 = vld [vmem:[#allocation2 + $0x68] sm:$0xff]
    %v131 = vld [vmem:[#allocation2 + $0x70] sm:$0xff]
    %v132 = vld [vmem:[#allocation2 + $0x78] sm:$0xff]
    %v133 = vld [vmem:[%s4] sm:$0x3]
    %v134 = vld [vmem:[#allocation4] sm:$0xff]
    %v135 = vld [vmem:[#allocation4 + $0x8] sm:$0xff]
    %v136 = vld [vmem:[#allocation4 + $0x10] sm:$0xff]
    %v137 = vld [vmem:[#allocation4 + $0x18] sm:$0xff]
    %v138 = vld [vmem:[#allocation4 + $0x20] sm:$0xff]
    %v139 = vld [vmem:[#allocation4 + $0x28] sm:$0xff]
    %v140 = vld [vmem:[#allocation4 + $0x30] sm:$0xff]
    %v141 = vld [vmem:[#allocation4 + $0x38] sm:$0xff]
    %v142 = vld [vmem:[#allocation4 + $0x40] sm:$0xff]
    %v143 = vld [vmem:[#allocation4 + $0x48] sm:$0xff]
    %v144 = vld [vmem:[#allocation4 + $0x50] sm:$0xff]
    %v145 = vld [vmem:[#allocation4 + $0x58] sm:$0xff]
    %v146 = vld [vmem:[#allocation4 + $0x60] sm:$0xff]
    %v147 = vld [vmem:[#allocation4 + $0x68] sm:$0xff]
    %v148 = vld [vmem:[#allocation4 + $0x70] sm:$0xff]
    %v149 = vld [vmem:[#allocation4 + $0x78] sm:$0xff]
    %v150 = vld [vmem:[#allocation4 + $0x80] sm:$0xff]
    %v151 = vld [vmem:[#allocation4 + $0x88] sm:$0xff]
    %v152 = vld [vmem:[#allocation4 + $0x90] sm:$0xff]
    %v153 = vld [vmem:[#allocation4 + $0x98] sm:$0xff]
    %v154 = vld [vmem:[#allocation4 + $0xa0] sm:$0xff]
    %v155 = vld [vmem:[#allocation4 + $0xa8] sm:$0xff]
    %v156 = vld [vmem:[#allocation4 + $0xb0] sm:$0xff]
    %v157 = vld [vmem:[#allocation4 + $0xb8] sm:$0xff]
    %v158 = vld [vmem:[#allocation4 + $0xc0] sm:$0xff]
    %v159 = vld [vmem:[#allocation4 + $0xc8] sm:$0xff]
    %v160 = vld [vmem:[#allocation4 + $0xd0] sm:$0xff]
    %v161 = vld [vmem:[#allocation4 + $0xd8] sm:$0xff]
    %v162 = vld [vmem:[#allocation4 + $0xe0] sm:$0xff]
    %v163 = vld [vmem:[#allocation4 + $0xe8] sm:$0xff]
    %v164 = vld [vmem:[#allocation4 + $0xf0] sm:$0xff]
    %v165 = vld [vmem:[#allocation4 + $0xf8] sm:$0xff]
    %v166 = vld [vmem:[#allocation4 + $0x100] sm:$0xff]
    %v167 = vld [vmem:[#allocation4 + $0x108] sm:$0xff]
    %v168 = vld [vmem:[#allocation4 + $0x110] sm:$0xff]
    %v169 = vld [vmem:[#allocation4 + $0x118] sm:$0xff]
    %v170 = vld [vmem:[#allocation4 + $0x120] sm:$0xff]
    %v171 = vld [vmem:[#allocation4 + $0x128] sm:$0xff]
    %v172 = vld [vmem:[#allocation4 + $0x130] sm:$0xff]
    %v173 = vld [vmem:[#allocation4 + $0x138] sm:$0xff]
    %v174 = vld [vmem:[#allocation4 + $0x140] sm:$0xff]
    %v175 = vld [vmem:[#allocation4 + $0x148] sm:$0xff]
    %v176 = vld [vmem:[#allocation4 + $0x150] sm:$0xff]
    %v177 = vld [vmem:[#allocation4 + $0x158] sm:$0xff]
    %v178 = vld [vmem:[#allocation4 + $0x160] sm:$0xff]
    %v179 = vld [vmem:[#allocation4 + $0x168] sm:$0xff]
    %v180 = vld [vmem:[#allocation4 + $0x170] sm:$0xff]
    %v181 = vld [vmem:[#allocation4 + $0x178] sm:$0xff]
    %v182 = vld [vmem:[#allocation4 + $0x180] sm:$0xff]
    %v183 = vld [vmem:[#allocation4 + $0x188] sm:$0xff]
    %v184 = vld [vmem:[#allocation4 + $0x190] sm:$0xff]
    %v185 = vld [vmem:[#allocation4 + $0x198] sm:$0xff]
    %v186 = vld [vmem:[#allocation4 + $0x1a0] sm:$0xff]
    %v187 = vld [vmem:[#allocation4 + $0x1a8] sm:$0xff]
    %v188 = vld [vmem:[#allocation4 + $0x1b0] sm:$0xff]
    %v189 = vld [vmem:[#allocation4 + $0x1b8] sm:$0xff]
    %v190 = vld [vmem:[#allocation4 + $0x1c0] sm:$0xff]
    %v191 = vld [vmem:[#allocation4 + $0x1c8] sm:$0xff]
    %v192 = vld [vmem:[#allocation4 + $0x1d0] sm:$0xff]
    %v193 = vld [vmem:[#allocation4 + $0x1d8] sm:$0xff]
    %v194 = vld [vmem:[#allocation4 + $0x1e0] sm:$0xff]
    %v195 = vld [vmem:[#allocation4 + $0x1e8] sm:$0xff]
    %v196 = vld [vmem:[#allocation4 + $0x1f0] sm:$0xff]
    %v197 = vld [vmem:[#allocation4 + $0x1f8] sm:$0xff]
    %v198 = vld [vmem:[%s6] sm:$0xf]
    %v199 = vld [vmem:[%s7] sm:$0xff]
    %v200 = vld [vmem:[%s7 + $0x8] sm:$0xff]
    %v201 = vld [vmem:[%s7 + $0x10] sm:$0xff]
    %v202 = vld [vmem:[%s7 + $0x18] sm:$0xff]
    %v203 = vld [vmem:[%s7 + $0x20] sm:$0xff]
    %v204 = vld [vmem:[%s7 + $0x28] sm:$0xff]
    %v205 = vld [vmem:[%s7 + $0x30] sm:$0xff]
    %v206 = vld [vmem:[%s7 + $0x38] sm:$0xff]
    %v207 = vld [vmem:[%s7 + $0x40] sm:$0xff]
    %v208 = vld [vmem:[%s7 + $0x48] sm:$0xff]
    %v209 = vld [vmem:[%s7 + $0x50] sm:$0xff]
    %v210 = vld [vmem:[%s7 + $0x58] sm:$0xff]
    %v211 = vld [vmem:[%s7 + $0x60] sm:$0xff]
    %v212 = vld [vmem:[%s7 + $0x68] sm:$0xff]
    %v213 = vld [vmem:[%s7 + $0x70] sm:$0xff]
    %v214 = vld [vmem:[%s7 + $0x78] sm:$0xff]
    %v215 = vld [vmem:[%s7 + $0x80] sm:$0xff]
    %v216 = vld [vmem:[%s7 + $0x88] sm:$0xff]
    %v217 = vld [vmem:[%s7 + $0x90] sm:$0xff]
    %v218 = vld [vmem:[%s7 + $0x98] sm:$0xff]
    %v219 = vld [vmem:[%s7 + $0xa0] sm:$0xff]
    %v220 = vld [vmem:[%s7 + $0xa8] sm:$0xff]
    %v221 = vld [vmem:[%s7 + $0xb0] sm:$0xff]
    %v222 = vld [vmem:[%s7 + $0xb8] sm:$0xff]
    %v223 = vld [vmem:[%s7 + $0xc0] sm:$0xff]
    %v224 = vld [vmem:[%s7 + $0xc8] sm:$0xff]
    %v225 = vld [vmem:[%s7 + $0xd0] sm:$0xff]
    %v226 = vld [vmem:[%s7 + $0xd8] sm:$0xff]
    %v227 = vld [vmem:[%s7 + $0xe0] sm:$0xff]
    %v228 = vld [vmem:[%s7 + $0xe8] sm:$0xff]
    %v229 = vld [vmem:[%s7 + $0xf0] sm:$0xff]
    %v230 = vld [vmem:[%s7 + $0xf8] sm:$0xff]
    %v231 = vld [vmem:[%s7 + $0x100] sm:$0xff]
    %v232 = vld [vmem:[%s7 + $0x108] sm:$0xff]
    %v233 = vld [vmem:[%s7 + $0x110] sm:$0xff]
    %v234 = vld [vmem:[%s7 + $0x118] sm:$0xff]
    %v235 = vld [vmem:[%s7 + $0x120] sm:$0xff]
    %v236 = vld [vmem:[%s7 + $0x128] sm:$0xff]
    %v237 = vld [vmem:[%s7 + $0x130] sm:$0xff]
    %v238 = vld [vmem:[%s7 + $0x138] sm:$0xff]
    %v239 = vld [vmem:[%s7 + $0x140] sm:$0xff]
    %v240 = vld [vmem:[%s7 + $0x148] sm:$0xff]
    %v241 = vld [vmem:[%s7 + $0x150] sm:$0xff]
    %v242 = vld [vmem:[%s7 + $0x158] sm:$0xff]
    %v243 = vld [vmem:[%s7 + $0x160] sm:$0xff]
    %v244 = vld [vmem:[%s7 + $0x168] sm:$0xff]
    %v245 = vld [vmem:[%s7 + $0x170] sm:$0xff]
    %v246 = vld [vmem:[%s7 + $0x178] sm:$0xff]
    %v247 = vld [vmem:[%s7 + $0x180] sm:$0xff]
    %v248 = vld [vmem:[%s7 + $0x188] sm:$0xff]
    %v249 = vld [vmem:[%s7 + $0x190] sm:$0xff]
    %v250 = vld [vmem:[%s7 + $0x198] sm:$0xff]
    %v251 = vld [vmem:[%s7 + $0x1a0] sm:$0xff]
    %v252 = vld [vmem:[%s7 + $0x1a8] sm:$0xff]
    %v253 = vld [vmem:[%s7 + $0x1b0] sm:$0xff]
    %v254 = vld [vmem:[%s7 + $0x1b8] sm:$0xff]
    %v255 = vld [vmem:[%s7 + $0x1c0] sm:$0xff]
    %v256 = vld [vmem:[%s7 + $0x1c8] sm:$0xff]
    %v257 = vld [vmem:[%s7 + $0x1d0] sm:$0xff]
    %v258 = vld [vmem:[%s7 + $0x1d8] sm:$0xff]
    %v259 = vld [vmem:[%s7 + $0x1e0] sm:$0xff]
    %v260 = vld [vmem:[%s7 + $0x1e8] sm:$0xff]
    %v261 = vld [vmem:[%s7 + $0x1f0] sm:$0xff]
    %v262 = vld [vmem:[%s7 + $0x1f8] sm:$0xff]
    %v263 = vld [vmem:[%s7 + $0x200] sm:$0xff]
    %v264 = vld [vmem:[%s7 + $0x208] sm:$0xff]
    %v265 = vld [vmem:[%s7 + $0x210] sm:$0xff]
    %v266 = vld [vmem:[%s7 + $0x218] sm:$0xff]
    %v267 = vld [vmem:[%s7 + $0x220] sm:$0xff]
    %v268 = vld [vmem:[%s7 + $0x228] sm:$0xff]
    %v269 = vld [vmem:[%s7 + $0x230] sm:$0xff]
    %v270 = vld [vmem:[%s7 + $0x238] sm:$0xff]
    %v271 = vld [vmem:[%s7 + $0x240] sm:$0xff]
    %v272 = vld [vmem:[%s7 + $0x248] sm:$0xff]
    %v273 = vld [vmem:[%s7 + $0x250] sm:$0xff]
    %v274 = vld [vmem:[%s7 + $0x258] sm:$0xff]
    %v275 = vld [vmem:[%s7 + $0x260] sm:$0xff]
    %v276 = vld [vmem:[%s7 + $0x268] sm:$0xff]
    %v277 = vld [vmem:[%s7 + $0x270] sm:$0xff]
    %v278 = vld [vmem:[%s7 + $0x278] sm:$0xff]
    %v279 = vld [vmem:[%s7 + $0x280] sm:$0xff]
    %v280 = vld [vmem:[%s7 + $0x288] sm:$0xff]
    %v281 = vld [vmem:[%s7 + $0x290] sm:$0xff]
    %v282 = vld [vmem:[%s7 + $0x298] sm:$0xff]
    %v283 = vld [vmem:[%s7 + $0x2a0] sm:$0xff]
    %v284 = vld [vmem:[%s7 + $0x2a8] sm:$0xff]
    %v285 = vld [vmem:[%s7 + $0x2b0] sm:$0xff]
    %v286 = vld [vmem:[%s7 + $0x2b8] sm:$0xff]
    %v287 = vld [vmem:[%s7 + $0x2c0] sm:$0xff]
    %v288 = vld [vmem:[%s7 + $0x2c8] sm:$0xff]
    %v289 = vld [vmem:[%s7 + $0x2d0] sm:$0xff]
    %v290 = vld [vmem:[%s7 + $0x2d8] sm:$0xff]
    %v291 = vld [vmem:[%s7 + $0x2e0] sm:$0xff]
    %v292 = vld [vmem:[%s7 + $0x2e8] sm:$0xff]
    %v293 = vld [vmem:[%s7 + $0x2f0] sm:$0xff]
    %v294 = vld [vmem:[%s7 + $0x2f8] sm:$0xff]
    %v295 = vld [vmem:[%s7 + $0x300] sm:$0xff]
    %v296 = vld [vmem:[%s7 + $0x308] sm:$0xff]
    %v297 = vld [vmem:[%s7 + $0x310] sm:$0xff]
    %v298 = vld [vmem:[%s7 + $0x318] sm:$0xff]
    %v299 = vld [vmem:[%s7 + $0x320] sm:$0xff]
    %v300 = vld [vmem:[%s7 + $0x328] sm:$0xff]
    %v301 = vld [vmem:[%s7 + $0x330] sm:$0xff]
    %v302 = vld [vmem:[%s7 + $0x338] sm:$0xff]
    %v303 = vld [vmem:[%s7 + $0x340] sm:$0xff]
    %v304 = vld [vmem:[%s7 + $0x348] sm:$0xff]
    %v305 = vld [vmem:[%s7 + $0x350] sm:$0xff]
    %v306 = vld [vmem:[%s7 + $0x358] sm:$0xff]
    %v307 = vld [vmem:[%s7 + $0x360] sm:$0xff]
    %v308 = vld [vmem:[%s7 + $0x368] sm:$0xff]
    %v309 = vld [vmem:[%s7 + $0x370] sm:$0xff]
    %v310 = vld [vmem:[%s7 + $0x378] sm:$0xff]
    %v311 = vld [vmem:[%s7 + $0x380] sm:$0xff]
    %v312 = vld [vmem:[%s7 + $0x388] sm:$0xff]
    %v313 = vld [vmem:[%s7 + $0x390] sm:$0xff]
    %v314 = vld [vmem:[%s7 + $0x398] sm:$0xff]
    %v315 = vld [vmem:[%s7 + $0x3a0] sm:$0xff]
    %v316 = vld [vmem:[%s7 + $0x3a8] sm:$0xff]
    %v317 = vld [vmem:[%s7 + $0x3b0] sm:$0xff]
    %v318 = vld [vmem:[%s7 + $0x3b8] sm:$0xff]
    %v319 = vld [vmem:[%s7 + $0x3c0] sm:$0xff]
    %v320 = vld [vmem:[%s7 + $0x3c8] sm:$0xff]
    %v321 = vld [vmem:[%s7 + $0x3d0] sm:$0xff]
    %v322 = vld [vmem:[%s7 + $0x3d8] sm:$0xff]
    %v323 = vld [vmem:[%s7 + $0x3e0] sm:$0xff]
    %v324 = vld [vmem:[%s7 + $0x3e8] sm:$0xff]
    %v325 = vld [vmem:[%s7 + $0x3f0] sm:$0xff]
    %v326 = vld [vmem:[%s7 + $0x3f8] sm:$0xff]
    %v327 = vld [vmem:[%s8] sm:$0xf]
    %v328 = vpack.c.bf16 %v111, %v111
    %v330 = vperm.slane %v116, 0
    %v336 = vunpack.c.l.b16 %v112
    %v337 = vunpack.c.l.b16 %v113
    %v338 = vunpack.c.l.b16 %v114
    %v339 = vunpack.c.l.b16 %v115
    %v340 = vpack.c.b16 %v337, %v336
    %v341 = vpack.c.b16 %v339, %v338
    %vm344 = vcmask 261120
    %v346 = vsel %vm344, %v328, 0
    %348 = vmatpush.bf16.msra.mxu0 0
    %349 = vmatpush.bf16.msra.mxu0 0
    %350 = vmatpush.bf16.msra.mxu0 0
    %351 = vmatpush.bf16.msra.mxu0 0
    %352 = vmatpush.bf16.msra.mxu0 0
    %353 = vmatpush.bf16.msra.mxu0 0
    %354 = vmatpush.bf16.msra.mxu0 %v341
    %355 = vmatpush.bf16.msra.mxu0 %v340
    %356 = vmatmul.bf16.gmra.mxu0 %v346
    %v357 = vpop.f32.mrf.mxu0
    %v358 = vadd.f32 %v330, %v357
    %v359 = vpop.f32.mrf.mxu0
    %360 = vdwg.mxu0
    %v361 = vpack.c.bf16 %v358, %v358
    %v363 = vperm.slane %v133, 0
    %v364 = vperm.slane %v133, 1
    %v383 = vunpack.c.l.b16 %v117
    %v384 = vunpack.c.h.b16 %v117
    %v385 = vunpack.c.l.b16 %v118
    %v386 = vunpack.c.h.b16 %v118
    %v387 = vunpack.c.l.b16 %v119
    %v388 = vunpack.c.h.b16 %v119
    %v389 = vunpack.c.l.b16 %v120
    %v390 = vunpack.c.h.b16 %v120
    %v391 = vunpack.c.l.b16 %v121
    %v392 = vunpack.c.h.b16 %v121
    %v393 = vunpack.c.l.b16 %v122
    %v394 = vunpack.c.h.b16 %v122
    %v395 = vunpack.c.l.b16 %v123
    %v396 = vunpack.c.h.b16 %v123
    %v397 = vunpack.c.l.b16 %v124
    %v398 = vunpack.c.h.b16 %v124
    %v399 = vunpack.c.l.b16 %v125
    %v400 = vunpack.c.h.b16 %v125
    %v401 = vunpack.c.l.b16 %v126
    %v402 = vunpack.c.h.b16 %v126
    %v403 = vunpack.c.l.b16 %v127
    %v404 = vunpack.c.h.b16 %v127
    %v405 = vunpack.c.l.b16 %v128
    %v406 = vunpack.c.h.b16 %v128
    %v407 = vunpack.c.l.b16 %v129
    %v408 = vunpack.c.h.b16 %v129
    %v409 = vunpack.c.l.b16 %v130
    %v410 = vunpack.c.h.b16 %v130
    %v411 = vunpack.c.l.b16 %v131
    %v412 = vunpack.c.h.b16 %v131
    %v413 = vunpack.c.l.b16 %v132
    %v414 = vunpack.c.h.b16 %v132
    %v415 = vpack.c.b16 %v385, %v383
    %v416 = vpack.c.b16 %v386, %v384
    %v417 = vpack.c.b16 %v389, %v387
    %v418 = vpack.c.b16 %v390, %v388
    %v419 = vpack.c.b16 %v393, %v391
    %v420 = vpack.c.b16 %v394, %v392
    %v421 = vpack.c.b16 %v397, %v395
    %v422 = vpack.c.b16 %v398, %v396
    %v423 = vpack.c.b16 %v401, %v399
    %v424 = vpack.c.b16 %v402, %v400
    %v425 = vpack.c.b16 %v405, %v403
    %v426 = vpack.c.b16 %v406, %v404
    %v427 = vpack.c.b16 %v409, %v407
    %v428 = vpack.c.b16 %v410, %v408
    %v429 = vpack.c.b16 %v413, %v411
    %v430 = vpack.c.b16 %v414, %v412
    %447 = vmatpush.bf16.msra.mxu0 %v429
    %448 = vmatpush.bf16.msra.mxu0 %v427
    %449 = vmatpush.bf16.msra.mxu0 %v425
    %450 = vmatpush.bf16.msra.mxu0 %v423
    %451 = vmatpush.bf16.msra.mxu0 %v421
    %452 = vmatpush.bf16.msra.mxu0 %v419
    %453 = vmatpush.bf16.msra.mxu0 %v417
    %454 = vmatpush.bf16.msra.mxu0 %v415
    %455 = vmatmul.bf16.gmra.mxu0 %v361
    %v456 = vpop.f32.mrf.mxu0
    %v457 = vadd.f32 %v363, %v456
    %v458 = vpop.f32.mrf.mxu0
    %459 = vdwg.mxu0
    %460 = vmatpush.bf16.msra.mxu0 %v430
    %461 = vmatpush.bf16.msra.mxu0 %v428
    %462 = vmatpush.bf16.msra.mxu0 %v426
    %463 = vmatpush.bf16.msra.mxu0 %v424
    %464 = vmatpush.bf16.msra.mxu0 %v422
    %465 = vmatpush.bf16.msra.mxu0 %v420
    %466 = vmatpush.bf16.msra.mxu0 %v418
    %467 = vmatpush.bf16.msra.mxu0 %v416
    %468 = vmatmul.bf16.gmra.mxu0 %v361
    %v469 = vpop.f32.mrf.mxu0
    %v470 = vadd.f32 %v364, %v469
    %v471 = vpop.f32.mrf.mxu0
    %472 = vdwg.mxu0
    %vm473 = vcmp.gt.f32.partialorder %v457, 0.0
    %vm474 = vcmp.gt.f32.partialorder %v470, 0.0
    %v475 = vmul.f32 %v457, 0.2
    %v476 = vmul.f32 %v470, 0.2
    %v477 = vsel %vm473, %v457, %v475
    %v478 = vsel %vm474, %v470, %v476
    %v479 = vpack.c.bf16 %v477, %v477
    %v480 = vpack.c.bf16 %v478, %v478
    %v482 = vperm.slane %v198, 0
    %v483 = vperm.slane %v198, 1
    %v484 = vperm.slane %v198, 2
    %v485 = vperm.slane %v198, 3
    %v554 = vunpack.c.l.b16 %v134
    %v555 = vunpack.c.h.b16 %v134
    %v556 = vunpack.c.l.b16 %v135
    %v557 = vunpack.c.h.b16 %v135
    %v558 = vunpack.c.l.b16 %v136
    %v559 = vunpack.c.h.b16 %v136
    %v560 = vunpack.c.l.b16 %v137
    %v561 = vunpack.c.h.b16 %v137
    %v562 = vunpack.c.l.b16 %v138
    %v563 = vunpack.c.h.b16 %v138
    %v564 = vunpack.c.l.b16 %v139
    %v565 = vunpack.c.h.b16 %v139
    %v566 = vunpack.c.l.b16 %v140
    %v567 = vunpack.c.h.b16 %v140
    %v568 = vunpack.c.l.b16 %v141
    %v569 = vunpack.c.h.b16 %v141
    %v570 = vunpack.c.l.b16 %v142
    %v571 = vunpack.c.h.b16 %v142
    %v572 = vunpack.c.l.b16 %v143
    %v573 = vunpack.c.h.b16 %v143
    %v574 = vunpack.c.l.b16 %v144
    %v575 = vunpack.c.h.b16 %v144
    %v576 = vunpack.c.l.b16 %v145
    %v577 = vunpack.c.h.b16 %v145
    %v578 = vunpack.c.l.b16 %v146
    %v579 = vunpack.c.h.b16 %v146
    %v580 = vunpack.c.l.b16 %v147
    %v581 = vunpack.c.h.b16 %v147
    %v582 = vunpack.c.l.b16 %v148
    %v583 = vunpack.c.h.b16 %v148
    %v584 = vunpack.c.l.b16 %v149
    %v585 = vunpack.c.h.b16 %v149
    %v586 = vunpack.c.l.b16 %v150
    %v587 = vunpack.c.h.b16 %v150
    %v588 = vunpack.c.l.b16 %v151
    %v589 = vunpack.c.h.b16 %v151
    %v590 = vunpack.c.l.b16 %v152
    %v591 = vunpack.c.h.b16 %v152
    %v592 = vunpack.c.l.b16 %v153
    %v593 = vunpack.c.h.b16 %v153
    %v594 = vunpack.c.l.b16 %v154
    %v595 = vunpack.c.h.b16 %v154
    %v596 = vunpack.c.l.b16 %v155
    %v597 = vunpack.c.h.b16 %v155
    %v598 = vunpack.c.l.b16 %v156
    %v599 = vunpack.c.h.b16 %v156
    %v600 = vunpack.c.l.b16 %v157
    %v601 = vunpack.c.h.b16 %v157
    %v602 = vunpack.c.l.b16 %v158
    %v603 = vunpack.c.h.b16 %v158
    %v604 = vunpack.c.l.b16 %v159
    %v605 = vunpack.c.h.b16 %v159
    %v606 = vunpack.c.l.b16 %v160
    %v607 = vunpack.c.h.b16 %v160
    %v608 = vunpack.c.l.b16 %v161
    %v609 = vunpack.c.h.b16 %v161
    %v610 = vunpack.c.l.b16 %v162
    %v611 = vunpack.c.h.b16 %v162
    %v612 = vunpack.c.l.b16 %v163
    %v613 = vunpack.c.h.b16 %v163
    %v614 = vunpack.c.l.b16 %v164
    %v615 = vunpack.c.h.b16 %v164
    %v616 = vunpack.c.l.b16 %v165
    %v617 = vunpack.c.h.b16 %v165
    %v618 = vunpack.c.l.b16 %v166
    %v619 = vunpack.c.h.b16 %v166
    %v620 = vunpack.c.l.b16 %v167
    %v621 = vunpack.c.h.b16 %v167
    %v622 = vunpack.c.l.b16 %v168
    %v623 = vunpack.c.h.b16 %v168
    %v624 = vunpack.c.l.b16 %v169
    %v625 = vunpack.c.h.b16 %v169
    %v626 = vunpack.c.l.b16 %v170
    %v627 = vunpack.c.h.b16 %v170
    %v628 = vunpack.c.l.b16 %v171
    %v629 = vunpack.c.h.b16 %v171
    %v630 = vunpack.c.l.b16 %v172
    %v631 = vunpack.c.h.b16 %v172
    %v632 = vunpack.c.l.b16 %v173
    %v633 = vunpack.c.h.b16 %v173
    %v634 = vunpack.c.l.b16 %v174
    %v635 = vunpack.c.h.b16 %v174
    %v636 = vunpack.c.l.b16 %v175
    %v637 = vunpack.c.h.b16 %v175
    %v638 = vunpack.c.l.b16 %v176
    %v639 = vunpack.c.h.b16 %v176
    %v640 = vunpack.c.l.b16 %v177
    %v641 = vunpack.c.h.b16 %v177
    %v642 = vunpack.c.l.b16 %v178
    %v643 = vunpack.c.h.b16 %v178
    %v644 = vunpack.c.l.b16 %v179
    %v645 = vunpack.c.h.b16 %v179
    %v646 = vunpack.c.l.b16 %v180
    %v647 = vunpack.c.h.b16 %v180
    %v648 = vunpack.c.l.b16 %v181
    %v649 = vunpack.c.h.b16 %v181
    %v650 = vunpack.c.l.b16 %v182
    %v651 = vunpack.c.h.b16 %v182
    %v652 = vunpack.c.l.b16 %v183
    %v653 = vunpack.c.h.b16 %v183
    %v654 = vunpack.c.l.b16 %v184
    %v655 = vunpack.c.h.b16 %v184
    %v656 = vunpack.c.l.b16 %v185
    %v657 = vunpack.c.h.b16 %v185
    %v658 = vunpack.c.l.b16 %v186
    %v659 = vunpack.c.h.b16 %v186
    %v660 = vunpack.c.l.b16 %v187
    %v661 = vunpack.c.h.b16 %v187
    %v662 = vunpack.c.l.b16 %v188
    %v663 = vunpack.c.h.b16 %v188
    %v664 = vunpack.c.l.b16 %v189
    %v665 = vunpack.c.h.b16 %v189
    %v666 = vunpack.c.l.b16 %v190
    %v667 = vunpack.c.h.b16 %v190
    %v668 = vunpack.c.l.b16 %v191
    %v669 = vunpack.c.h.b16 %v191
    %v670 = vunpack.c.l.b16 %v192
    %v671 = vunpack.c.h.b16 %v192
    %v672 = vunpack.c.l.b16 %v193
    %v673 = vunpack.c.h.b16 %v193
    %v674 = vunpack.c.l.b16 %v194
    %v675 = vunpack.c.h.b16 %v194
    %v676 = vunpack.c.l.b16 %v195
    %v677 = vunpack.c.h.b16 %v195
    %v678 = vunpack.c.l.b16 %v196
    %v679 = vunpack.c.h.b16 %v196
    %v680 = vunpack.c.l.b16 %v197
    %v681 = vunpack.c.h.b16 %v197
    %v682 = vpack.c.b16 %v558, %v554
    %v683 = vpack.c.b16 %v559, %v555
    %v684 = vpack.c.b16 %v560, %v556
    %v685 = vpack.c.b16 %v561, %v557
    %v686 = vpack.c.b16 %v566, %v562
    %v687 = vpack.c.b16 %v567, %v563
    %v688 = vpack.c.b16 %v568, %v564
    %v689 = vpack.c.b16 %v569, %v565
    %v690 = vpack.c.b16 %v574, %v570
    %v691 = vpack.c.b16 %v575, %v571
    %v692 = vpack.c.b16 %v576, %v572
    %v693 = vpack.c.b16 %v577, %v573
    %v694 = vpack.c.b16 %v582, %v578
    %v695 = vpack.c.b16 %v583, %v579
    %v696 = vpack.c.b16 %v584, %v580
    %v697 = vpack.c.b16 %v585, %v581
    %v698 = vpack.c.b16 %v590, %v586
    %v699 = vpack.c.b16 %v591, %v587
    %v700 = vpack.c.b16 %v592, %v588
    %v701 = vpack.c.b16 %v593, %v589
    %v702 = vpack.c.b16 %v598, %v594
    %v703 = vpack.c.b16 %v599, %v595
    %v704 = vpack.c.b16 %v600, %v596
    %v705 = vpack.c.b16 %v601, %v597
    %v706 = vpack.c.b16 %v606, %v602
    %v707 = vpack.c.b16 %v607, %v603
    %v708 = vpack.c.b16 %v608, %v604
    %v709 = vpack.c.b16 %v609, %v605
    %v710 = vpack.c.b16 %v614, %v610
    %v711 = vpack.c.b16 %v615, %v611
    %v712 = vpack.c.b16 %v616, %v612
    %v713 = vpack.c.b16 %v617, %v613
    %v714 = vpack.c.b16 %v622, %v618
    %v715 = vpack.c.b16 %v623, %v619
    %v716 = vpack.c.b16 %v624, %v620
    %v717 = vpack.c.b16 %v625, %v621
    %v718 = vpack.c.b16 %v630, %v626
    %v719 = vpack.c.b16 %v631, %v627
    %v720 = vpack.c.b16 %v632, %v628
    %v721 = vpack.c.b16 %v633, %v629
    %v722 = vpack.c.b16 %v638, %v634
    %v723 = vpack.c.b16 %v639, %v635
    %v724 = vpack.c.b16 %v640, %v636
    %v725 = vpack.c.b16 %v641, %v637
    %v726 = vpack.c.b16 %v646, %v642
    %v727 = vpack.c.b16 %v647, %v643
    %v728 = vpack.c.b16 %v648, %v644
    %v729 = vpack.c.b16 %v649, %v645
    %v730 = vpack.c.b16 %v654, %v650
    %v731 = vpack.c.b16 %v655, %v651
    %v732 = vpack.c.b16 %v656, %v652
    %v733 = vpack.c.b16 %v657, %v653
    %v734 = vpack.c.b16 %v662, %v658
    %v735 = vpack.c.b16 %v663, %v659
    %v736 = vpack.c.b16 %v664, %v660
    %v737 = vpack.c.b16 %v665, %v661
    %v738 = vpack.c.b16 %v670, %v666
    %v739 = vpack.c.b16 %v671, %v667
    %v740 = vpack.c.b16 %v672, %v668
    %v741 = vpack.c.b16 %v673, %v669
    %v742 = vpack.c.b16 %v678, %v674
    %v743 = vpack.c.b16 %v679, %v675
    %v744 = vpack.c.b16 %v680, %v676
    %v745 = vpack.c.b16 %v681, %v677
    %810 = vmatpush.bf16.msra.mxu0 %v710
    %811 = vmatpush.bf16.msra.mxu0 %v706
    %812 = vmatpush.bf16.msra.mxu0 %v702
    %813 = vmatpush.bf16.msra.mxu0 %v698
    %814 = vmatpush.bf16.msra.mxu0 %v694
    %815 = vmatpush.bf16.msra.mxu0 %v690
    %816 = vmatpush.bf16.msra.mxu0 %v686
    %817 = vmatpush.bf16.msra.mxu0 %v682
    %818 = vmatmul.bf16.gmra.mxu0 %v479
    %v819 = vpop.f32.mrf.mxu0
    %v820 = vadd.f32 %v482, %v819
    %v821 = vpop.f32.mrf.mxu0
    %822 = vdwg.mxu0
    %823 = vmatpush.bf16.msra.mxu0 %v742
    %824 = vmatpush.bf16.msra.mxu0 %v738
    %825 = vmatpush.bf16.msra.mxu0 %v734
    %826 = vmatpush.bf16.msra.mxu0 %v730
    %827 = vmatpush.bf16.msra.mxu0 %v726
    %828 = vmatpush.bf16.msra.mxu0 %v722
    %829 = vmatpush.bf16.msra.mxu0 %v718
    %830 = vmatpush.bf16.msra.mxu0 %v714
    %831 = vmatmul.bf16.gmra.mxu0 %v480
    %v832 = vpop.f32.mrf.mxu0
    %v833 = vadd.f32 %v820, %v832
    %v834 = vpop.f32.mrf.mxu0
    %835 = vdwg.mxu0
    %836 = vmatpush.bf16.msra.mxu0 %v711
    %837 = vmatpush.bf16.msra.mxu0 %v707
    %838 = vmatpush.bf16.msra.mxu0 %v703
    %839 = vmatpush.bf16.msra.mxu0 %v699
    %840 = vmatpush.bf16.msra.mxu0 %v695
    %841 = vmatpush.bf16.msra.mxu0 %v691
    %842 = vmatpush.bf16.msra.mxu0 %v687
    %843 = vmatpush.bf16.msra.mxu0 %v683
    %844 = vmatmul.bf16.gmra.mxu0 %v479
    %v845 = vpop.f32.mrf.mxu0
    %v846 = vadd.f32 %v483, %v845
    %v847 = vpop.f32.mrf.mxu0
    %848 = vdwg.mxu0
    %849 = vmatpush.bf16.msra.mxu0 %v743
    %850 = vmatpush.bf16.msra.mxu0 %v739
    %851 = vmatpush.bf16.msra.mxu0 %v735
    %852 = vmatpush.bf16.msra.mxu0 %v731
    %853 = vmatpush.bf16.msra.mxu0 %v727
    %854 = vmatpush.bf16.msra.mxu0 %v723
    %855 = vmatpush.bf16.msra.mxu0 %v719
    %856 = vmatpush.bf16.msra.mxu0 %v715
    %857 = vmatmul.bf16.gmra.mxu0 %v480
    %v858 = vpop.f32.mrf.mxu0
    %v859 = vadd.f32 %v846, %v858
    %v860 = vpop.f32.mrf.mxu0
    %861 = vdwg.mxu0
    %862 = vmatpush.bf16.msra.mxu0 %v712
    %863 = vmatpush.bf16.msra.mxu0 %v708
    %864 = vmatpush.bf16.msra.mxu0 %v704
    %865 = vmatpush.bf16.msra.mxu0 %v700
    %866 = vmatpush.bf16.msra.mxu0 %v696
    %867 = vmatpush.bf16.msra.mxu0 %v692
    %868 = vmatpush.bf16.msra.mxu0 %v688
    %869 = vmatpush.bf16.msra.mxu0 %v684
    %870 = vmatmul.bf16.gmra.mxu0 %v479
    %v871 = vpop.f32.mrf.mxu0
    %v872 = vadd.f32 %v484, %v871
    %v873 = vpop.f32.mrf.mxu0
    %874 = vdwg.mxu0
    %875 = vmatpush.bf16.msra.mxu0 %v744
    %876 = vmatpush.bf16.msra.mxu0 %v740
    %877 = vmatpush.bf16.msra.mxu0 %v736
    %878 = vmatpush.bf16.msra.mxu0 %v732
    %879 = vmatpush.bf16.msra.mxu0 %v728
    %880 = vmatpush.bf16.msra.mxu0 %v724
    %881 = vmatpush.bf16.msra.mxu0 %v720
    %882 = vmatpush.bf16.msra.mxu0 %v716
    %883 = vmatmul.bf16.gmra.mxu0 %v480
    %v884 = vpop.f32.mrf.mxu0
    %v885 = vadd.f32 %v872, %v884
    %v886 = vpop.f32.mrf.mxu0
    %887 = vdwg.mxu0
    %888 = vmatpush.bf16.msra.mxu0 %v713
    %889 = vmatpush.bf16.msra.mxu0 %v709
    %890 = vmatpush.bf16.msra.mxu0 %v705
    %891 = vmatpush.bf16.msra.mxu0 %v701
    %892 = vmatpush.bf16.msra.mxu0 %v697
    %893 = vmatpush.bf16.msra.mxu0 %v693
    %894 = vmatpush.bf16.msra.mxu0 %v689
    %895 = vmatpush.bf16.msra.mxu0 %v685
    %896 = vmatmul.bf16.gmra.mxu0 %v479
    %v897 = vpop.f32.mrf.mxu0
    %v898 = vadd.f32 %v485, %v897
    %v899 = vpop.f32.mrf.mxu0
    %900 = vdwg.mxu0
    %901 = vmatpush.bf16.msra.mxu0 %v745
    %902 = vmatpush.bf16.msra.mxu0 %v741
    %903 = vmatpush.bf16.msra.mxu0 %v737
    %904 = vmatpush.bf16.msra.mxu0 %v733
    %905 = vmatpush.bf16.msra.mxu0 %v729
    %906 = vmatpush.bf16.msra.mxu0 %v725
    %907 = vmatpush.bf16.msra.mxu0 %v721
    %908 = vmatpush.bf16.msra.mxu0 %v717
    %909 = vmatmul.bf16.gmra.mxu0 %v480
    %v910 = vpop.f32.mrf.mxu0
    %v911 = vadd.f32 %v898, %v910
    %v912 = vpop.f32.mrf.mxu0
    %913 = vdwg.mxu0
    %vm914 = vcmp.gt.f32.partialorder %v833, 0.0
    %vm915 = vcmp.gt.f32.partialorder %v859, 0.0
    %vm916 = vcmp.gt.f32.partialorder %v885, 0.0
    %vm917 = vcmp.gt.f32.partialorder %v911, 0.0
    %v918 = vmul.f32 %v833, 0.2
    %v919 = vmul.f32 %v859, 0.2
    %v920 = vmul.f32 %v885, 0.2
    %v921 = vmul.f32 %v911, 0.2
    %v922 = vsel %vm914, %v833, %v918
    %v923 = vsel %vm915, %v859, %v919
    %v924 = vsel %vm916, %v885, %v920
    %v925 = vsel %vm917, %v911, %v921
    %v926 = vpack.c.bf16 %v922, %v922
    %v927 = vpack.c.bf16 %v923, %v923
    %v928 = vpack.c.bf16 %v924, %v924
    %v929 = vpack.c.bf16 %v925, %v925
    %v931 = vperm.slane %v327, 0
    %v932 = vperm.slane %v327, 1
    %v933 = vperm.slane %v327, 2
    %v934 = vperm.slane %v327, 3
    %v1067 = vunpack.c.l.b16 %v199
    %v1068 = vunpack.c.h.b16 %v199
    %v1069 = vunpack.c.l.b16 %v200
    %v1070 = vunpack.c.h.b16 %v200
    %v1071 = vunpack.c.l.b16 %v201
    %v1072 = vunpack.c.h.b16 %v201
    %v1073 = vunpack.c.l.b16 %v202
    %v1074 = vunpack.c.h.b16 %v202
    %v1075 = vunpack.c.l.b16 %v203
    %v1076 = vunpack.c.h.b16 %v203
    %v1077 = vunpack.c.l.b16 %v204
    %v1078 = vunpack.c.h.b16 %v204
    %v1079 = vunpack.c.l.b16 %v205
    %v1080 = vunpack.c.h.b16 %v205
    %v1081 = vunpack.c.l.b16 %v206
    %v1082 = vunpack.c.h.b16 %v206
    %v1083 = vunpack.c.l.b16 %v207
    %v1084 = vunpack.c.h.b16 %v207
    %v1085 = vunpack.c.l.b16 %v208
    %v1086 = vunpack.c.h.b16 %v208
    %v1087 = vunpack.c.l.b16 %v209
    %v1088 = vunpack.c.h.b16 %v209
    %v1089 = vunpack.c.l.b16 %v210
    %v1090 = vunpack.c.h.b16 %v210
    %v1091 = vunpack.c.l.b16 %v211
    %v1092 = vunpack.c.h.b16 %v211
    %v1093 = vunpack.c.l.b16 %v212
    %v1094 = vunpack.c.h.b16 %v212
    %v1095 = vunpack.c.l.b16 %v213
    %v1096 = vunpack.c.h.b16 %v213
    %v1097 = vunpack.c.l.b16 %v214
    %v1098 = vunpack.c.h.b16 %v214
    %v1099 = vunpack.c.l.b16 %v215
    %v1100 = vunpack.c.h.b16 %v215
    %v1101 = vunpack.c.l.b16 %v216
    %v1102 = vunpack.c.h.b16 %v216
    %v1103 = vunpack.c.l.b16 %v217
    %v1104 = vunpack.c.h.b16 %v217
    %v1105 = vunpack.c.l.b16 %v218
    %v1106 = vunpack.c.h.b16 %v218
    %v1107 = vunpack.c.l.b16 %v219
    %v1108 = vunpack.c.h.b16 %v219
    %v1109 = vunpack.c.l.b16 %v220
    %v1110 = vunpack.c.h.b16 %v220
    %v1111 = vunpack.c.l.b16 %v221
    %v1112 = vunpack.c.h.b16 %v221
    %v1113 = vunpack.c.l.b16 %v222
    %v1114 = vunpack.c.h.b16 %v222
    %v1115 = vunpack.c.l.b16 %v223
    %v1116 = vunpack.c.h.b16 %v223
    %v1117 = vunpack.c.l.b16 %v224
    %v1118 = vunpack.c.h.b16 %v224
    %v1119 = vunpack.c.l.b16 %v225
    %v1120 = vunpack.c.h.b16 %v225
    %v1121 = vunpack.c.l.b16 %v226
    %v1122 = vunpack.c.h.b16 %v226
    %v1123 = vunpack.c.l.b16 %v227
    %v1124 = vunpack.c.h.b16 %v227
    %v1125 = vunpack.c.l.b16 %v228
    %v1126 = vunpack.c.h.b16 %v228
    %v1127 = vunpack.c.l.b16 %v229
    %v1128 = vunpack.c.h.b16 %v229
    %v1129 = vunpack.c.l.b16 %v230
    %v1130 = vunpack.c.h.b16 %v230
    %v1131 = vunpack.c.l.b16 %v231
    %v1132 = vunpack.c.h.b16 %v231
    %v1133 = vunpack.c.l.b16 %v232
    %v1134 = vunpack.c.h.b16 %v232
    %v1135 = vunpack.c.l.b16 %v233
    %v1136 = vunpack.c.h.b16 %v233
    %v1137 = vunpack.c.l.b16 %v234
    %v1138 = vunpack.c.h.b16 %v234
    %v1139 = vunpack.c.l.b16 %v235
    %v1140 = vunpack.c.h.b16 %v235
    %v1141 = vunpack.c.l.b16 %v236
    %v1142 = vunpack.c.h.b16 %v236
    %v1143 = vunpack.c.l.b16 %v237
    %v1144 = vunpack.c.h.b16 %v237
    %v1145 = vunpack.c.l.b16 %v238
    %v1146 = vunpack.c.h.b16 %v238
    %v1147 = vunpack.c.l.b16 %v239
    %v1148 = vunpack.c.h.b16 %v239
    %v1149 = vunpack.c.l.b16 %v240
    %v1150 = vunpack.c.h.b16 %v240
    %v1151 = vunpack.c.l.b16 %v241
    %v1152 = vunpack.c.h.b16 %v241
    %v1153 = vunpack.c.l.b16 %v242
    %v1154 = vunpack.c.h.b16 %v242
    %v1155 = vunpack.c.l.b16 %v243
    %v1156 = vunpack.c.h.b16 %v243
    %v1157 = vunpack.c.l.b16 %v244
    %v1158 = vunpack.c.h.b16 %v244
    %v1159 = vunpack.c.l.b16 %v245
    %v1160 = vunpack.c.h.b16 %v245
    %v1161 = vunpack.c.l.b16 %v246
    %v1162 = vunpack.c.h.b16 %v246
    %v1163 = vunpack.c.l.b16 %v247
    %v1164 = vunpack.c.h.b16 %v247
    %v1165 = vunpack.c.l.b16 %v248
    %v1166 = vunpack.c.h.b16 %v248
    %v1167 = vunpack.c.l.b16 %v249
    %v1168 = vunpack.c.h.b16 %v249
    %v1169 = vunpack.c.l.b16 %v250
    %v1170 = vunpack.c.h.b16 %v250
    %v1171 = vunpack.c.l.b16 %v251
    %v1172 = vunpack.c.h.b16 %v251
    %v1173 = vunpack.c.l.b16 %v252
    %v1174 = vunpack.c.h.b16 %v252
    %v1175 = vunpack.c.l.b16 %v253
    %v1176 = vunpack.c.h.b16 %v253
    %v1177 = vunpack.c.l.b16 %v254
    %v1178 = vunpack.c.h.b16 %v254
    %v1179 = vunpack.c.l.b16 %v255
    %v1180 = vunpack.c.h.b16 %v255
    %v1181 = vunpack.c.l.b16 %v256
    %v1182 = vunpack.c.h.b16 %v256
    %v1183 = vunpack.c.l.b16 %v257
    %v1184 = vunpack.c.h.b16 %v257
    %v1185 = vunpack.c.l.b16 %v258
    %v1186 = vunpack.c.h.b16 %v258
    %v1187 = vunpack.c.l.b16 %v259
    %v1188 = vunpack.c.h.b16 %v259
    %v1189 = vunpack.c.l.b16 %v260
    %v1190 = vunpack.c.h.b16 %v260
    %v1191 = vunpack.c.l.b16 %v261
    %v1192 = vunpack.c.h.b16 %v261
    %v1193 = vunpack.c.l.b16 %v262
    %v1194 = vunpack.c.h.b16 %v262
    %v1195 = vunpack.c.l.b16 %v263
    %v1196 = vunpack.c.h.b16 %v263
    %v1197 = vunpack.c.l.b16 %v264
    %v1198 = vunpack.c.h.b16 %v264
    %v1199 = vunpack.c.l.b16 %v265
    %v1200 = vunpack.c.h.b16 %v265
    %v1201 = vunpack.c.l.b16 %v266
    %v1202 = vunpack.c.h.b16 %v266
    %v1203 = vunpack.c.l.b16 %v267
    %v1204 = vunpack.c.h.b16 %v267
    %v1205 = vunpack.c.l.b16 %v268
    %v1206 = vunpack.c.h.b16 %v268
    %v1207 = vunpack.c.l.b16 %v269
    %v1208 = vunpack.c.h.b16 %v269
    %v1209 = vunpack.c.l.b16 %v270
    %v1210 = vunpack.c.h.b16 %v270
    %v1211 = vunpack.c.l.b16 %v271
    %v1212 = vunpack.c.h.b16 %v271
    %v1213 = vunpack.c.l.b16 %v272
    %v1214 = vunpack.c.h.b16 %v272
    %v1215 = vunpack.c.l.b16 %v273
    %v1216 = vunpack.c.h.b16 %v273
    %v1217 = vunpack.c.l.b16 %v274
    %v1218 = vunpack.c.h.b16 %v274
    %v1219 = vunpack.c.l.b16 %v275
    %v1220 = vunpack.c.h.b16 %v275
    %v1221 = vunpack.c.l.b16 %v276
    %v1222 = vunpack.c.h.b16 %v276
    %v1223 = vunpack.c.l.b16 %v277
    %v1224 = vunpack.c.h.b16 %v277
    %v1225 = vunpack.c.l.b16 %v278
    %v1226 = vunpack.c.h.b16 %v278
    %v1227 = vunpack.c.l.b16 %v279
    %v1228 = vunpack.c.h.b16 %v279
    %v1229 = vunpack.c.l.b16 %v280
    %v1230 = vunpack.c.h.b16 %v280
    %v1231 = vunpack.c.l.b16 %v281
    %v1232 = vunpack.c.h.b16 %v281
    %v1233 = vunpack.c.l.b16 %v282
    %v1234 = vunpack.c.h.b16 %v282
    %v1235 = vunpack.c.l.b16 %v283
    %v1236 = vunpack.c.h.b16 %v283
    %v1237 = vunpack.c.l.b16 %v284
    %v1238 = vunpack.c.h.b16 %v284
    %v1239 = vunpack.c.l.b16 %v285
    %v1240 = vunpack.c.h.b16 %v285
    %v1241 = vunpack.c.l.b16 %v286
    %v1242 = vunpack.c.h.b16 %v286
    %v1243 = vunpack.c.l.b16 %v287
    %v1244 = vunpack.c.h.b16 %v287
    %v1245 = vunpack.c.l.b16 %v288
    %v1246 = vunpack.c.h.b16 %v288
    %v1247 = vunpack.c.l.b16 %v289
    %v1248 = vunpack.c.h.b16 %v289
    %v1249 = vunpack.c.l.b16 %v290
    %v1250 = vunpack.c.h.b16 %v290
    %v1251 = vunpack.c.l.b16 %v291
    %v1252 = vunpack.c.h.b16 %v291
    %v1253 = vunpack.c.l.b16 %v292
    %v1254 = vunpack.c.h.b16 %v292
    %v1255 = vunpack.c.l.b16 %v293
    %v1256 = vunpack.c.h.b16 %v293
    %v1257 = vunpack.c.l.b16 %v294
    %v1258 = vunpack.c.h.b16 %v294
    %v1259 = vunpack.c.l.b16 %v295
    %v1260 = vunpack.c.h.b16 %v295
    %v1261 = vunpack.c.l.b16 %v296
    %v1262 = vunpack.c.h.b16 %v296
    %v1263 = vunpack.c.l.b16 %v297
    %v1264 = vunpack.c.h.b16 %v297
    %v1265 = vunpack.c.l.b16 %v298
    %v1266 = vunpack.c.h.b16 %v298
    %v1267 = vunpack.c.l.b16 %v299
    %v1268 = vunpack.c.h.b16 %v299
    %v1269 = vunpack.c.l.b16 %v300
    %v1270 = vunpack.c.h.b16 %v300
    %v1271 = vunpack.c.l.b16 %v301
    %v1272 = vunpack.c.h.b16 %v301
    %v1273 = vunpack.c.l.b16 %v302
    %v1274 = vunpack.c.h.b16 %v302
    %v1275 = vunpack.c.l.b16 %v303
    %v1276 = vunpack.c.h.b16 %v303
    %v1277 = vunpack.c.l.b16 %v304
    %v1278 = vunpack.c.h.b16 %v304
    %v1279 = vunpack.c.l.b16 %v305
    %v1280 = vunpack.c.h.b16 %v305
    %v1281 = vunpack.c.l.b16 %v306
    %v1282 = vunpack.c.h.b16 %v306
    %v1283 = vunpack.c.l.b16 %v307
    %v1284 = vunpack.c.h.b16 %v307
    %v1285 = vunpack.c.l.b16 %v308
    %v1286 = vunpack.c.h.b16 %v308
    %v1287 = vunpack.c.l.b16 %v309
    %v1288 = vunpack.c.h.b16 %v309
    %v1289 = vunpack.c.l.b16 %v310
    %v1290 = vunpack.c.h.b16 %v310
    %v1291 = vunpack.c.l.b16 %v311
    %v1292 = vunpack.c.h.b16 %v311
    %v1293 = vunpack.c.l.b16 %v312
    %v1294 = vunpack.c.h.b16 %v312
    %v1295 = vunpack.c.l.b16 %v313
    %v1296 = vunpack.c.h.b16 %v313
    %v1297 = vunpack.c.l.b16 %v314
    %v1298 = vunpack.c.h.b16 %v314
    %v1299 = vunpack.c.l.b16 %v315
    %v1300 = vunpack.c.h.b16 %v315
    %v1301 = vunpack.c.l.b16 %v316
    %v1302 = vunpack.c.h.b16 %v316
    %v1303 = vunpack.c.l.b16 %v317
    %v1304 = vunpack.c.h.b16 %v317
    %v1305 = vunpack.c.l.b16 %v318
    %v1306 = vunpack.c.h.b16 %v318
    %v1307 = vunpack.c.l.b16 %v319
    %v1308 = vunpack.c.h.b16 %v319
    %v1309 = vunpack.c.l.b16 %v320
    %v1310 = vunpack.c.h.b16 %v320
    %v1311 = vunpack.c.l.b16 %v321
    %v1312 = vunpack.c.h.b16 %v321
    %v1313 = vunpack.c.l.b16 %v322
    %v1314 = vunpack.c.h.b16 %v322
    %v1315 = vunpack.c.l.b16 %v323
    %v1316 = vunpack.c.h.b16 %v323
    %v1317 = vunpack.c.l.b16 %v324
    %v1318 = vunpack.c.h.b16 %v324
    %v1319 = vunpack.c.l.b16 %v325
    %v1320 = vunpack.c.h.b16 %v325
    %v1321 = vunpack.c.l.b16 %v326
    %v1322 = vunpack.c.h.b16 %v326
    %v1323 = vpack.c.b16 %v1071, %v1067
    %v1324 = vpack.c.b16 %v1072, %v1068
    %v1325 = vpack.c.b16 %v1073, %v1069
    %v1326 = vpack.c.b16 %v1074, %v1070
    %v1327 = vpack.c.b16 %v1079, %v1075
    %v1328 = vpack.c.b16 %v1080, %v1076
    %v1329 = vpack.c.b16 %v1081, %v1077
    %v1330 = vpack.c.b16 %v1082, %v1078
    %v1331 = vpack.c.b16 %v1087, %v1083
    %v1332 = vpack.c.b16 %v1088, %v1084
    %v1333 = vpack.c.b16 %v1089, %v1085
    %v1334 = vpack.c.b16 %v1090, %v1086
    %v1335 = vpack.c.b16 %v1095, %v1091
    %v1336 = vpack.c.b16 %v1096, %v1092
    %v1337 = vpack.c.b16 %v1097, %v1093
    %v1338 = vpack.c.b16 %v1098, %v1094
    %v1339 = vpack.c.b16 %v1103, %v1099
    %v1340 = vpack.c.b16 %v1104, %v1100
    %v1341 = vpack.c.b16 %v1105, %v1101
    %v1342 = vpack.c.b16 %v1106, %v1102
    %v1343 = vpack.c.b16 %v1111, %v1107
    %v1344 = vpack.c.b16 %v1112, %v1108
    %v1345 = vpack.c.b16 %v1113, %v1109
    %v1346 = vpack.c.b16 %v1114, %v1110
    %v1347 = vpack.c.b16 %v1119, %v1115
    %v1348 = vpack.c.b16 %v1120, %v1116
    %v1349 = vpack.c.b16 %v1121, %v1117
    %v1350 = vpack.c.b16 %v1122, %v1118
    %v1351 = vpack.c.b16 %v1127, %v1123
    %v1352 = vpack.c.b16 %v1128, %v1124
    %v1353 = vpack.c.b16 %v1129, %v1125
    %v1354 = vpack.c.b16 %v1130, %v1126
    %v1355 = vpack.c.b16 %v1135, %v1131
    %v1356 = vpack.c.b16 %v1136, %v1132
    %v1357 = vpack.c.b16 %v1137, %v1133
    %v1358 = vpack.c.b16 %v1138, %v1134
    %v1359 = vpack.c.b16 %v1143, %v1139
    %v1360 = vpack.c.b16 %v1144, %v1140
    %v1361 = vpack.c.b16 %v1145, %v1141
    %v1362 = vpack.c.b16 %v1146, %v1142
    %v1363 = vpack.c.b16 %v1151, %v1147
    %v1364 = vpack.c.b16 %v1152, %v1148
    %v1365 = vpack.c.b16 %v1153, %v1149
    %v1366 = vpack.c.b16 %v1154, %v1150
    %v1367 = vpack.c.b16 %v1159, %v1155
    %v1368 = vpack.c.b16 %v1160, %v1156
    %v1369 = vpack.c.b16 %v1161, %v1157
    %v1370 = vpack.c.b16 %v1162, %v1158
    %v1371 = vpack.c.b16 %v1167, %v1163
    %v1372 = vpack.c.b16 %v1168, %v1164
    %v1373 = vpack.c.b16 %v1169, %v1165
    %v1374 = vpack.c.b16 %v1170, %v1166
    %v1375 = vpack.c.b16 %v1175, %v1171
    %v1376 = vpack.c.b16 %v1176, %v1172
    %v1377 = vpack.c.b16 %v1177, %v1173
    %v1378 = vpack.c.b16 %v1178, %v1174
    %v1379 = vpack.c.b16 %v1183, %v1179
    %v1380 = vpack.c.b16 %v1184, %v1180
    %v1381 = vpack.c.b16 %v1185, %v1181
    %v1382 = vpack.c.b16 %v1186, %v1182
    %v1383 = vpack.c.b16 %v1191, %v1187
    %v1384 = vpack.c.b16 %v1192, %v1188
    %v1385 = vpack.c.b16 %v1193, %v1189
    %v1386 = vpack.c.b16 %v1194, %v1190
    %v1387 = vpack.c.b16 %v1199, %v1195
    %v1388 = vpack.c.b16 %v1200, %v1196
    %v1389 = vpack.c.b16 %v1201, %v1197
    %v1390 = vpack.c.b16 %v1202, %v1198
    %v1391 = vpack.c.b16 %v1207, %v1203
    %v1392 = vpack.c.b16 %v1208, %v1204
    %v1393 = vpack.c.b16 %v1209, %v1205
    %v1394 = vpack.c.b16 %v1210, %v1206
    %v1395 = vpack.c.b16 %v1215, %v1211
    %v1396 = vpack.c.b16 %v1216, %v1212
    %v1397 = vpack.c.b16 %v1217, %v1213
    %v1398 = vpack.c.b16 %v1218, %v1214
    %v1399 = vpack.c.b16 %v1223, %v1219
    %v1400 = vpack.c.b16 %v1224, %v1220
    %v1401 = vpack.c.b16 %v1225, %v1221
    %v1402 = vpack.c.b16 %v1226, %v1222
    %v1403 = vpack.c.b16 %v1231, %v1227
    %v1404 = vpack.c.b16 %v1232, %v1228
    %v1405 = vpack.c.b16 %v1233, %v1229
    %v1406 = vpack.c.b16 %v1234, %v1230
    %v1407 = vpack.c.b16 %v1239, %v1235
    %v1408 = vpack.c.b16 %v1240, %v1236
    %v1409 = vpack.c.b16 %v1241, %v1237
    %v1410 = vpack.c.b16 %v1242, %v1238
    %v1411 = vpack.c.b16 %v1247, %v1243
    %v1412 = vpack.c.b16 %v1248, %v1244
    %v1413 = vpack.c.b16 %v1249, %v1245
    %v1414 = vpack.c.b16 %v1250, %v1246
    %v1415 = vpack.c.b16 %v1255, %v1251
    %v1416 = vpack.c.b16 %v1256, %v1252
    %v1417 = vpack.c.b16 %v1257, %v1253
    %v1418 = vpack.c.b16 %v1258, %v1254
    %v1419 = vpack.c.b16 %v1263, %v1259
    %v1420 = vpack.c.b16 %v1264, %v1260
    %v1421 = vpack.c.b16 %v1265, %v1261
    %v1422 = vpack.c.b16 %v1266, %v1262
    %v1423 = vpack.c.b16 %v1271, %v1267
    %v1424 = vpack.c.b16 %v1272, %v1268
    %v1425 = vpack.c.b16 %v1273, %v1269
    %v1426 = vpack.c.b16 %v1274, %v1270
    %v1427 = vpack.c.b16 %v1279, %v1275
    %v1428 = vpack.c.b16 %v1280, %v1276
    %v1429 = vpack.c.b16 %v1281, %v1277
    %v1430 = vpack.c.b16 %v1282, %v1278
    %v1431 = vpack.c.b16 %v1287, %v1283
    %v1432 = vpack.c.b16 %v1288, %v1284
    %v1433 = vpack.c.b16 %v1289, %v1285
    %v1434 = vpack.c.b16 %v1290, %v1286
    %v1435 = vpack.c.b16 %v1295, %v1291
    %v1436 = vpack.c.b16 %v1296, %v1292
    %v1437 = vpack.c.b16 %v1297, %v1293
    %v1438 = vpack.c.b16 %v1298, %v1294
    %v1439 = vpack.c.b16 %v1303, %v1299
    %v1440 = vpack.c.b16 %v1304, %v1300
    %v1441 = vpack.c.b16 %v1305, %v1301
    %v1442 = vpack.c.b16 %v1306, %v1302
    %v1443 = vpack.c.b16 %v1311, %v1307
    %v1444 = vpack.c.b16 %v1312, %v1308
    %v1445 = vpack.c.b16 %v1313, %v1309
    %v1446 = vpack.c.b16 %v1314, %v1310
    %v1447 = vpack.c.b16 %v1319, %v1315
    %v1448 = vpack.c.b16 %v1320, %v1316
    %v1449 = vpack.c.b16 %v1321, %v1317
    %v1450 = vpack.c.b16 %v1322, %v1318
    %1579 = vmatpush.bf16.msra.mxu0 %v1351
    %1580 = vmatpush.bf16.msra.mxu0 %v1347
    %1581 = vmatpush.bf16.msra.mxu0 %v1343
    %1582 = vmatpush.bf16.msra.mxu0 %v1339
    %1583 = vmatpush.bf16.msra.mxu0 %v1335
    %1584 = vmatpush.bf16.msra.mxu0 %v1331
    %1585 = vmatpush.bf16.msra.mxu0 %v1327
    %1586 = vmatpush.bf16.msra.mxu0 %v1323
    %1587 = vmatmul.bf16.gmra.mxu0 %v926
    %v1588 = vpop.f32.mrf.mxu0
    %v1589 = vadd.f32 %v931, %v1588
    %v1590 = vpop.f32.mrf.mxu0
    %1591 = vdwg.mxu0
    %1592 = vmatpush.bf16.msra.mxu0 %v1383
    %1593 = vmatpush.bf16.msra.mxu0 %v1379
    %1594 = vmatpush.bf16.msra.mxu0 %v1375
    %1595 = vmatpush.bf16.msra.mxu0 %v1371
    %1596 = vmatpush.bf16.msra.mxu0 %v1367
    %1597 = vmatpush.bf16.msra.mxu0 %v1363
    %1598 = vmatpush.bf16.msra.mxu0 %v1359
    %1599 = vmatpush.bf16.msra.mxu0 %v1355
    %1600 = vmatmul.bf16.gmra.mxu0 %v927
    %v1601 = vpop.f32.mrf.mxu0
    %v1602 = vadd.f32 %v1589, %v1601
    %v1603 = vpop.f32.mrf.mxu0
    %1604 = vdwg.mxu0
    %1605 = vmatpush.bf16.msra.mxu0 %v1415
    %1606 = vmatpush.bf16.msra.mxu0 %v1411
    %1607 = vmatpush.bf16.msra.mxu0 %v1407
    %1608 = vmatpush.bf16.msra.mxu0 %v1403
    %1609 = vmatpush.bf16.msra.mxu0 %v1399
    %1610 = vmatpush.bf16.msra.mxu0 %v1395
    %1611 = vmatpush.bf16.msra.mxu0 %v1391
    %1612 = vmatpush.bf16.msra.mxu0 %v1387
    %1613 = vmatmul.bf16.gmra.mxu0 %v928
    %v1614 = vpop.f32.mrf.mxu0
    %v1615 = vadd.f32 %v1602, %v1614
    %v1616 = vpop.f32.mrf.mxu0
    %1617 = vdwg.mxu0
    %1618 = vmatpush.bf16.msra.mxu0 %v1447
    %1619 = vmatpush.bf16.msra.mxu0 %v1443
    %1620 = vmatpush.bf16.msra.mxu0 %v1439
    %1621 = vmatpush.bf16.msra.mxu0 %v1435
    %1622 = vmatpush.bf16.msra.mxu0 %v1431
    %1623 = vmatpush.bf16.msra.mxu0 %v1427
    %1624 = vmatpush.bf16.msra.mxu0 %v1423
    %1625 = vmatpush.bf16.msra.mxu0 %v1419
    %1626 = vmatmul.bf16.gmra.mxu0 %v929
    %v1627 = vpop.f32.mrf.mxu0
    %v1628 = vadd.f32 %v1615, %v1627
    %v1629 = vpop.f32.mrf.mxu0
    %1630 = vdwg.mxu0
    %1631 = vmatpush.bf16.msra.mxu0 %v1352
    %1632 = vmatpush.bf16.msra.mxu0 %v1348
    %1633 = vmatpush.bf16.msra.mxu0 %v1344
    %1634 = vmatpush.bf16.msra.mxu0 %v1340
    %1635 = vmatpush.bf16.msra.mxu0 %v1336
    %1636 = vmatpush.bf16.msra.mxu0 %v1332
    %1637 = vmatpush.bf16.msra.mxu0 %v1328
    %1638 = vmatpush.bf16.msra.mxu0 %v1324
    %1639 = vmatmul.bf16.gmra.mxu0 %v926
    %v1640 = vpop.f32.mrf.mxu0
    %v1641 = vadd.f32 %v932, %v1640
    %v1642 = vpop.f32.mrf.mxu0
    %1643 = vdwg.mxu0
    %1644 = vmatpush.bf16.msra.mxu0 %v1384
    %1645 = vmatpush.bf16.msra.mxu0 %v1380
    %1646 = vmatpush.bf16.msra.mxu0 %v1376
    %1647 = vmatpush.bf16.msra.mxu0 %v1372
    %1648 = vmatpush.bf16.msra.mxu0 %v1368
    %1649 = vmatpush.bf16.msra.mxu0 %v1364
    %1650 = vmatpush.bf16.msra.mxu0 %v1360
    %1651 = vmatpush.bf16.msra.mxu0 %v1356
    %1652 = vmatmul.bf16.gmra.mxu0 %v927
    %v1653 = vpop.f32.mrf.mxu0
    %v1654 = vadd.f32 %v1641, %v1653
    %v1655 = vpop.f32.mrf.mxu0
    %1656 = vdwg.mxu0
    %1657 = vmatpush.bf16.msra.mxu0 %v1416
    %1658 = vmatpush.bf16.msra.mxu0 %v1412
    %1659 = vmatpush.bf16.msra.mxu0 %v1408
    %1660 = vmatpush.bf16.msra.mxu0 %v1404
    %1661 = vmatpush.bf16.msra.mxu0 %v1400
    %1662 = vmatpush.bf16.msra.mxu0 %v1396
    %1663 = vmatpush.bf16.msra.mxu0 %v1392
    %1664 = vmatpush.bf16.msra.mxu0 %v1388
    %1665 = vmatmul.bf16.gmra.mxu0 %v928
    %v1666 = vpop.f32.mrf.mxu0
    %v1667 = vadd.f32 %v1654, %v1666
    %v1668 = vpop.f32.mrf.mxu0
    %1669 = vdwg.mxu0
    %1670 = vmatpush.bf16.msra.mxu0 %v1448
    %1671 = vmatpush.bf16.msra.mxu0 %v1444
    %1672 = vmatpush.bf16.msra.mxu0 %v1440
    %1673 = vmatpush.bf16.msra.mxu0 %v1436
    %1674 = vmatpush.bf16.msra.mxu0 %v1432
    %1675 = vmatpush.bf16.msra.mxu0 %v1428
    %1676 = vmatpush.bf16.msra.mxu0 %v1424
    %1677 = vmatpush.bf16.msra.mxu0 %v1420
    %1678 = vmatmul.bf16.gmra.mxu0 %v929
    %v1679 = vpop.f32.mrf.mxu0
    %v1680 = vadd.f32 %v1667, %v1679
    %v1681 = vpop.f32.mrf.mxu0
    %1682 = vdwg.mxu0
    %1683 = vmatpush.bf16.msra.mxu0 %v1353
    %1684 = vmatpush.bf16.msra.mxu0 %v1349
    %1685 = vmatpush.bf16.msra.mxu0 %v1345
    %1686 = vmatpush.bf16.msra.mxu0 %v1341
    %1687 = vmatpush.bf16.msra.mxu0 %v1337
    %1688 = vmatpush.bf16.msra.mxu0 %v1333
    %1689 = vmatpush.bf16.msra.mxu0 %v1329
    %1690 = vmatpush.bf16.msra.mxu0 %v1325
    %1691 = vmatmul.bf16.gmra.mxu0 %v926
    %v1692 = vpop.f32.mrf.mxu0
    %v1693 = vadd.f32 %v933, %v1692
    %v1694 = vpop.f32.mrf.mxu0
    %1695 = vdwg.mxu0
    %1696 = vmatpush.bf16.msra.mxu0 %v1385
    %1697 = vmatpush.bf16.msra.mxu0 %v1381
    %1698 = vmatpush.bf16.msra.mxu0 %v1377
    %1699 = vmatpush.bf16.msra.mxu0 %v1373
    %1700 = vmatpush.bf16.msra.mxu0 %v1369
    %1701 = vmatpush.bf16.msra.mxu0 %v1365
    %1702 = vmatpush.bf16.msra.mxu0 %v1361
    %1703 = vmatpush.bf16.msra.mxu0 %v1357
    %1704 = vmatmul.bf16.gmra.mxu0 %v927
    %v1705 = vpop.f32.mrf.mxu0
    %v1706 = vadd.f32 %v1693, %v1705
    %v1707 = vpop.f32.mrf.mxu0
    %1708 = vdwg.mxu0
    %1709 = vmatpush.bf16.msra.mxu0 %v1417
    %1710 = vmatpush.bf16.msra.mxu0 %v1413
    %1711 = vmatpush.bf16.msra.mxu0 %v1409
    %1712 = vmatpush.bf16.msra.mxu0 %v1405
    %1713 = vmatpush.bf16.msra.mxu0 %v1401
    %1714 = vmatpush.bf16.msra.mxu0 %v1397
    %1715 = vmatpush.bf16.msra.mxu0 %v1393
    %1716 = vmatpush.bf16.msra.mxu0 %v1389
    %1717 = vmatmul.bf16.gmra.mxu0 %v928
    %v1718 = vpop.f32.mrf.mxu0
    %v1719 = vadd.f32 %v1706, %v1718
    %v1720 = vpop.f32.mrf.mxu0
    %1721 = vdwg.mxu0
    %1722 = vmatpush.bf16.msra.mxu0 %v1449
    %1723 = vmatpush.bf16.msra.mxu0 %v1445
    %1724 = vmatpush.bf16.msra.mxu0 %v1441
    %1725 = vmatpush.bf16.msra.mxu0 %v1437
    %1726 = vmatpush.bf16.msra.mxu0 %v1433
    %1727 = vmatpush.bf16.msra.mxu0 %v1429
    %1728 = vmatpush.bf16.msra.mxu0 %v1425
    %1729 = vmatpush.bf16.msra.mxu0 %v1421
    %1730 = vmatmul.bf16.gmra.mxu0 %v929
    %v1731 = vpop.f32.mrf.mxu0
    %v1732 = vadd.f32 %v1719, %v1731
    %v1733 = vpop.f32.mrf.mxu0
    %1734 = vdwg.mxu0
    %1735 = vmatpush.bf16.msra.mxu0 %v1354
    %1736 = vmatpush.bf16.msra.mxu0 %v1350
    %1737 = vmatpush.bf16.msra.mxu0 %v1346
    %1738 = vmatpush.bf16.msra.mxu0 %v1342
    %1739 = vmatpush.bf16.msra.mxu0 %v1338
    %1740 = vmatpush.bf16.msra.mxu0 %v1334
    %1741 = vmatpush.bf16.msra.mxu0 %v1330
    %1742 = vmatpush.bf16.msra.mxu0 %v1326
    %1743 = vmatmul.bf16.gmra.mxu0 %v926
    %v1744 = vpop.f32.mrf.mxu0
    %v1745 = vadd.f32 %v934, %v1744
    %v1746 = vpop.f32.mrf.mxu0
    %1747 = vdwg.mxu0
    %1748 = vmatpush.bf16.msra.mxu0 %v1386
    %1749 = vmatpush.bf16.msra.mxu0 %v1382
    %1750 = vmatpush.bf16.msra.mxu0 %v1378
    %1751 = vmatpush.bf16.msra.mxu0 %v1374
    %1752 = vmatpush.bf16.msra.mxu0 %v1370
    %1753 = vmatpush.bf16.msra.mxu0 %v1366
    %1754 = vmatpush.bf16.msra.mxu0 %v1362
    %1755 = vmatpush.bf16.msra.mxu0 %v1358
    %1756 = vmatmul.bf16.gmra.mxu0 %v927
    %v1757 = vpop.f32.mrf.mxu0
    %v1758 = vadd.f32 %v1745, %v1757
    %v1759 = vpop.f32.mrf.mxu0
    %1760 = vdwg.mxu0
    %1761 = vmatpush.bf16.msra.mxu0 %v1418
    %1762 = vmatpush.bf16.msra.mxu0 %v1414
    %1763 = vmatpush.bf16.msra.mxu0 %v1410
    %1764 = vmatpush.bf16.msra.mxu0 %v1406
    %1765 = vmatpush.bf16.msra.mxu0 %v1402
    %1766 = vmatpush.bf16.msra.mxu0 %v1398
    %1767 = vmatpush.bf16.msra.mxu0 %v1394
    %1768 = vmatpush.bf16.msra.mxu0 %v1390
    %1769 = vmatmul.bf16.gmra.mxu0 %v928
    %v1770 = vpop.f32.mrf.mxu0
    %v1771 = vadd.f32 %v1758, %v1770
    %v1772 = vpop.f32.mrf.mxu0
    %1773 = vdwg.mxu0
    %1774 = vmatpush.bf16.msra.mxu0 %v1450
    %1775 = vmatpush.bf16.msra.mxu0 %v1446
    %1776 = vmatpush.bf16.msra.mxu0 %v1442
    %1777 = vmatpush.bf16.msra.mxu0 %v1438
    %1778 = vmatpush.bf16.msra.mxu0 %v1434
    %1779 = vmatpush.bf16.msra.mxu0 %v1430
    %1780 = vmatpush.bf16.msra.mxu0 %v1426
    %1781 = vmatpush.bf16.msra.mxu0 %v1422
    %1782 = vmatmul.bf16.gmra.mxu0 %v929
    %v1783 = vpop.f32.mrf.mxu0
    %v1784 = vadd.f32 %v1771, %v1783
    %v1785 = vpop.f32.mrf.mxu0
    %1786 = vdwg.mxu0
    %v1787 = vld [vmem:[#allocation6] sm:$0xf]
    %v1788 = vld [vmem:[#allocation6 + $0x4] sm:$0xf]
    %v1789 = vld [vmem:[#allocation6 + $0x8] sm:$0xf]
    %v1790 = vld [vmem:[#allocation6 + $0xc] sm:$0xf]
    %v1791 = vld [vmem:[#allocation6 + $0x10] sm:$0xf]
    %v1792 = vld [vmem:[#allocation6 + $0x14] sm:$0xf]
    %v1793 = vld [vmem:[#allocation6 + $0x18] sm:$0xf]
    %v1794 = vld [vmem:[#allocation6 + $0x1c] sm:$0xf]
    %v1795 = vld [vmem:[#allocation6 + $0x20] sm:$0xf]
    %v1796 = vld [vmem:[#allocation6 + $0x24] sm:$0xf]
    %v1797 = vld [vmem:[#allocation6 + $0x28] sm:$0xf]
    %v1798 = vld [vmem:[#allocation6 + $0x2c] sm:$0xf]
    %v1799 = vld [vmem:[#allocation6 + $0x30] sm:$0xf]
    %v1800 = vld [vmem:[#allocation6 + $0x34] sm:$0xf]
    %v1801 = vld [vmem:[#allocation6 + $0x38] sm:$0xf]
    %v1802 = vld [vmem:[#allocation6 + $0x3c] sm:$0xf]
    %v1803 = vld [vmem:[#allocation6 + $0x40] sm:$0xf]
    %v1804 = vld [vmem:[#allocation6 + $0x44] sm:$0xf]
    %v1805 = vld [vmem:[#allocation6 + $0x48] sm:$0xf]
    %v1806 = vld [vmem:[#allocation6 + $0x4c] sm:$0xf]
    %v1807 = vld [vmem:[#allocation6 + $0x50] sm:$0xf]
    %v1808 = vld [vmem:[#allocation6 + $0x54] sm:$0xf]
    %v1809 = vld [vmem:[#allocation6 + $0x58] sm:$0xf]
    %v1810 = vld [vmem:[#allocation6 + $0x5c] sm:$0xf]
    %v1811 = vld [vmem:[#allocation6 + $0x60] sm:$0xf]
    %v1812 = vld [vmem:[#allocation6 + $0x64] sm:$0xf]
    %v1813 = vld [vmem:[#allocation6 + $0x68] sm:$0xf]
    %v1814 = vld [vmem:[#allocation6 + $0x6c] sm:$0xf]
    %v1815 = vld [vmem:[#allocation6 + $0x70] sm:$0xf]
    %v1816 = vld [vmem:[#allocation6 + $0x74] sm:$0xf]
    %v1817 = vld [vmem:[#allocation6 + $0x78] sm:$0xf]
    %v1818 = vld [vmem:[#allocation6 + $0x7c] sm:$0xf]
    %v1819 = vld [vmem:[#allocation6 + $0x80] sm:$0xf]
    %v1820 = vld [vmem:[#allocation6 + $0x84] sm:$0xf]
    %v1821 = vld [vmem:[#allocation6 + $0x88] sm:$0xf]
    %v1822 = vld [vmem:[#allocation6 + $0x8c] sm:$0xf]
    %v1823 = vld [vmem:[#allocation6 + $0x90] sm:$0xf]
    %v1824 = vld [vmem:[#allocation6 + $0x94] sm:$0xf]
    %v1825 = vld [vmem:[#allocation6 + $0x98] sm:$0xf]
    %v1826 = vld [vmem:[#allocation6 + $0x9c] sm:$0xf]
    %v1827 = vld [vmem:[#allocation6 + $0xa0] sm:$0xf]
    %v1828 = vld [vmem:[#allocation6 + $0xa4] sm:$0xf]
    %v1829 = vld [vmem:[#allocation6 + $0xa8] sm:$0xf]
    %v1830 = vld [vmem:[#allocation6 + $0xac] sm:$0xf]
    %v1831 = vld [vmem:[#allocation6 + $0xb0] sm:$0xf]
    %v1832 = vld [vmem:[#allocation6 + $0xb4] sm:$0xf]
    %v1833 = vld [vmem:[#allocation6 + $0xb8] sm:$0xf]
    %v1834 = vld [vmem:[#allocation6 + $0xbc] sm:$0xf]
    %v1835 = vld [vmem:[#allocation6 + $0xc0] sm:$0xf]
    %v1836 = vld [vmem:[#allocation6 + $0xc4] sm:$0xf]
    %v1837 = vld [vmem:[#allocation6 + $0xc8] sm:$0xf]
    %v1838 = vld [vmem:[#allocation6 + $0xcc] sm:$0xf]
    %v1839 = vld [vmem:[#allocation6 + $0xd0] sm:$0xf]
    %v1840 = vld [vmem:[#allocation6 + $0xd4] sm:$0xf]
    %v1841 = vld [vmem:[#allocation6 + $0xd8] sm:$0xf]
    %v1842 = vld [vmem:[#allocation6 + $0xdc] sm:$0xf]
    %v1843 = vld [vmem:[#allocation6 + $0xe0] sm:$0xf]
    %v1844 = vld [vmem:[#allocation6 + $0xe4] sm:$0xf]
    %v1845 = vld [vmem:[#allocation6 + $0xe8] sm:$0xf]
    %v1846 = vld [vmem:[#allocation6 + $0xec] sm:$0xf]
    %v1847 = vld [vmem:[#allocation6 + $0xf0] sm:$0xf]
    %v1848 = vld [vmem:[#allocation6 + $0xf4] sm:$0xf]
    %v1849 = vld [vmem:[#allocation6 + $0xf8] sm:$0xf]
    %v1850 = vld [vmem:[#allocation6 + $0xfc] sm:$0xf]
    %v1851 = vpack.c.bf16 %v1628, %v1628
    %v1852 = vpack.c.bf16 %v1680, %v1680
    %v1853 = vpack.c.bf16 %v1732, %v1732
    %v1854 = vpack.c.bf16 %v1784, %v1784
    %v1855 = vld [vmem:[%s10] sm:$0x1]
    %v1857 = vperm.slane %v1855, 0
    %v1923 = vunpack.c.l.b16 %v1787
    %v1924 = vunpack.c.l.b16 %v1788
    %v1925 = vunpack.c.l.b16 %v1789
    %v1926 = vunpack.c.l.b16 %v1790
    %v1927 = vunpack.c.l.b16 %v1791
    %v1928 = vunpack.c.l.b16 %v1792
    %v1929 = vunpack.c.l.b16 %v1793
    %v1930 = vunpack.c.l.b16 %v1794
    %v1931 = vunpack.c.l.b16 %v1795
    %v1932 = vunpack.c.l.b16 %v1796
    %v1933 = vunpack.c.l.b16 %v1797
    %v1934 = vunpack.c.l.b16 %v1798
    %v1935 = vunpack.c.l.b16 %v1799
    %v1936 = vunpack.c.l.b16 %v1800
    %v1937 = vunpack.c.l.b16 %v1801
    %v1938 = vunpack.c.l.b16 %v1802
    %v1939 = vunpack.c.l.b16 %v1803
    %v1940 = vunpack.c.l.b16 %v1804
    %v1941 = vunpack.c.l.b16 %v1805
    %v1942 = vunpack.c.l.b16 %v1806
    %v1943 = vunpack.c.l.b16 %v1807
    %v1944 = vunpack.c.l.b16 %v1808
    %v1945 = vunpack.c.l.b16 %v1809
    %v1946 = vunpack.c.l.b16 %v1810
    %v1947 = vunpack.c.l.b16 %v1811
    %v1948 = vunpack.c.l.b16 %v1812
    %v1949 = vunpack.c.l.b16 %v1813
    %v1950 = vunpack.c.l.b16 %v1814
    %v1951 = vunpack.c.l.b16 %v1815
    %v1952 = vunpack.c.l.b16 %v1816
    %v1953 = vunpack.c.l.b16 %v1817
    %v1954 = vunpack.c.l.b16 %v1818
    %v1955 = vunpack.c.l.b16 %v1819
    %v1956 = vunpack.c.l.b16 %v1820
    %v1957 = vunpack.c.l.b16 %v1821
    %v1958 = vunpack.c.l.b16 %v1822
    %v1959 = vunpack.c.l.b16 %v1823
    %v1960 = vunpack.c.l.b16 %v1824
    %v1961 = vunpack.c.l.b16 %v1825
    %v1962 = vunpack.c.l.b16 %v1826
    %v1963 = vunpack.c.l.b16 %v1827
    %v1964 = vunpack.c.l.b16 %v1828
    %v1965 = vunpack.c.l.b16 %v1829
    %v1966 = vunpack.c.l.b16 %v1830
    %v1967 = vunpack.c.l.b16 %v1831
    %v1968 = vunpack.c.l.b16 %v1832
    %v1969 = vunpack.c.l.b16 %v1833
    %v1970 = vunpack.c.l.b16 %v1834
    %v1971 = vunpack.c.l.b16 %v1835
    %v1972 = vunpack.c.l.b16 %v1836
    %v1973 = vunpack.c.l.b16 %v1837
    %v1974 = vunpack.c.l.b16 %v1838
    %v1975 = vunpack.c.l.b16 %v1839
    %v1976 = vunpack.c.l.b16 %v1840
    %v1977 = vunpack.c.l.b16 %v1841
    %v1978 = vunpack.c.l.b16 %v1842
    %v1979 = vunpack.c.l.b16 %v1843
    %v1980 = vunpack.c.l.b16 %v1844
    %v1981 = vunpack.c.l.b16 %v1845
    %v1982 = vunpack.c.l.b16 %v1846
    %v1983 = vunpack.c.l.b16 %v1847
    %v1984 = vunpack.c.l.b16 %v1848
    %v1985 = vunpack.c.l.b16 %v1849
    %v1986 = vunpack.c.l.b16 %v1850
    %v1987 = vpack.c.b16 %v1924, %v1923
    %v1988 = vpack.c.b16 %v1926, %v1925
    %v1989 = vpack.c.b16 %v1928, %v1927
    %v1990 = vpack.c.b16 %v1930, %v1929
    %v1991 = vpack.c.b16 %v1932, %v1931
    %v1992 = vpack.c.b16 %v1934, %v1933
    %v1993 = vpack.c.b16 %v1936, %v1935
    %v1994 = vpack.c.b16 %v1938, %v1937
    %v1995 = vpack.c.b16 %v1940, %v1939
    %v1996 = vpack.c.b16 %v1942, %v1941
    %v1997 = vpack.c.b16 %v1944, %v1943
    %v1998 = vpack.c.b16 %v1946, %v1945
    %v1999 = vpack.c.b16 %v1948, %v1947
    %v2000 = vpack.c.b16 %v1950, %v1949
    %v2001 = vpack.c.b16 %v1952, %v1951
    %v2002 = vpack.c.b16 %v1954, %v1953
    %v2003 = vpack.c.b16 %v1956, %v1955
    %v2004 = vpack.c.b16 %v1958, %v1957
    %v2005 = vpack.c.b16 %v1960, %v1959
    %v2006 = vpack.c.b16 %v1962, %v1961
    %v2007 = vpack.c.b16 %v1964, %v1963
    %v2008 = vpack.c.b16 %v1966, %v1965
    %v2009 = vpack.c.b16 %v1968, %v1967
    %v2010 = vpack.c.b16 %v1970, %v1969
    %v2011 = vpack.c.b16 %v1972, %v1971
    %v2012 = vpack.c.b16 %v1974, %v1973
    %v2013 = vpack.c.b16 %v1976, %v1975
    %v2014 = vpack.c.b16 %v1978, %v1977
    %v2015 = vpack.c.b16 %v1980, %v1979
    %v2016 = vpack.c.b16 %v1982, %v1981
    %v2017 = vpack.c.b16 %v1984, %v1983
    %v2018 = vpack.c.b16 %v1986, %v1985
    %2051 = vmatpush.bf16.msra.mxu0 %v1994
    %2052 = vmatpush.bf16.msra.mxu0 %v1993
    %2053 = vmatpush.bf16.msra.mxu0 %v1992
    %2054 = vmatpush.bf16.msra.mxu0 %v1991
    %2055 = vmatpush.bf16.msra.mxu0 %v1990
    %2056 = vmatpush.bf16.msra.mxu0 %v1989
    %2057 = vmatpush.bf16.msra.mxu0 %v1988
    %2058 = vmatpush.bf16.msra.mxu0 %v1987
    %2059 = vmatmul.bf16.gmra.mxu0 %v1851
    %v2060 = vpop.f32.mrf.mxu0
    %v2061 = vadd.f32 %v1857, %v2060
    %v2062 = vpop.f32.mrf.mxu0
    %2063 = vdwg.mxu0
    %2064 = vmatpush.bf16.msra.mxu0 %v2002
    %2065 = vmatpush.bf16.msra.mxu0 %v2001
    %2066 = vmatpush.bf16.msra.mxu0 %v2000
    %2067 = vmatpush.bf16.msra.mxu0 %v1999
    %2068 = vmatpush.bf16.msra.mxu0 %v1998
    %2069 = vmatpush.bf16.msra.mxu0 %v1997
    %2070 = vmatpush.bf16.msra.mxu0 %v1996
    %2071 = vmatpush.bf16.msra.mxu0 %v1995
    %2072 = vmatmul.bf16.gmra.mxu0 %v1852
    %v2073 = vpop.f32.mrf.mxu0
    %v2074 = vadd.f32 %v2061, %v2073
    %v2075 = vpop.f32.mrf.mxu0
    %2076 = vdwg.mxu0
    %2077 = vmatpush.bf16.msra.mxu0 %v2010
    %2078 = vmatpush.bf16.msra.mxu0 %v2009
    %2079 = vmatpush.bf16.msra.mxu0 %v2008
    %2080 = vmatpush.bf16.msra.mxu0 %v2007
    %2081 = vmatpush.bf16.msra.mxu0 %v2006
    %2082 = vmatpush.bf16.msra.mxu0 %v2005
    %2083 = vmatpush.bf16.msra.mxu0 %v2004
    %2084 = vmatpush.bf16.msra.mxu0 %v2003
    %2085 = vmatmul.bf16.gmra.mxu0 %v1853
    %v2086 = vpop.f32.mrf.mxu0
    %v2087 = vadd.f32 %v2074, %v2086
    %v2088 = vpop.f32.mrf.mxu0
    %2089 = vdwg.mxu0
    %2090 = vmatpush.bf16.msra.mxu0 %v2018
    %2091 = vmatpush.bf16.msra.mxu0 %v2017
    %2092 = vmatpush.bf16.msra.mxu0 %v2016
    %2093 = vmatpush.bf16.msra.mxu0 %v2015
    %2094 = vmatpush.bf16.msra.mxu0 %v2014
    %2095 = vmatpush.bf16.msra.mxu0 %v2013
    %2096 = vmatpush.bf16.msra.mxu0 %v2012
    %2097 = vmatpush.bf16.msra.mxu0 %v2011
    %2098 = vmatmul.bf16.gmra.mxu0 %v1854
    %v2099 = vpop.f32.mrf.mxu0
    %v2100 = vadd.f32 %v2087, %v2099
    %v2101 = vpop.f32.mrf.mxu0
    %2102 = vdwg.mxu0
    %v2103 = vand.u32 2147483647, %v2100
    %v2104 = vld [vmem:[%s11] sm:$0xff]
    %v2105 = vld [vmem:[%s11 + $0x8] sm:$0xff]
    %v2106 = vpack.c.bf16 %v2103, %v2103
    %v2109 = vunpack.c.l.b16 %v2104
    %v2110 = vunpack.c.h.b16 %v2104
    %v2111 = vunpack.c.l.b16 %v2105
    %v2112 = vunpack.c.h.b16 %v2105
    %v2113 = vpack.c.b16 %v2111, %v2109
    %v2114 = vpack.c.b16 %v2112, %v2110
    %vm2117 = vcmask 130048
    %v2119 = vsel %vm2117, %v2106, 0
    %2121 = vmatpush.bf16.msra.mxu0 0
    %2122 = vmatpush.bf16.msra.mxu0 0
    %2123 = vmatpush.bf16.msra.mxu0 0
    %2124 = vmatpush.bf16.msra.mxu0 0
    %2125 = vmatpush.bf16.msra.mxu0 0
    %2126 = vmatpush.bf16.msra.mxu0 0
    %2127 = vmatpush.bf16.msra.mxu0 0
    %2128 = vmatpush.bf16.msra.mxu0 %v2113
    %2129 = vmatmul.bf16.gmra.mxu0 %v2119
    %v2130 = vpop.f32.mrf.mxu0
    %v2131 = vadd.f32 0.0, %v2130
    %v2132 = vpop.f32.mrf.mxu0
    %2133 = vdwg.mxu0
    %2134 = vmatpush.bf16.msra.mxu0 0
    %2135 = vmatpush.bf16.msra.mxu0 0
    %2136 = vmatpush.bf16.msra.mxu0 0
    %2137 = vmatpush.bf16.msra.mxu0 0
    %2138 = vmatpush.bf16.msra.mxu0 0
    %2139 = vmatpush.bf16.msra.mxu0 0
    %2140 = vmatpush.bf16.msra.mxu0 0
    %2141 = vmatpush.bf16.msra.mxu0 %v2114
    %2142 = vmatmul.bf16.gmra.mxu0 %v2119
    %v2143 = vpop.f32.mrf.mxu0
    %v2144 = vadd.f32 0.0, %v2143
    %v2145 = vpop.f32.mrf.mxu0
    %2146 = vdwg.mxu0
    %v2147 = vld [vmem:[#allocation7] sm:$0xff]
    %v2148 = vld [vmem:[#allocation7 + $0x8] sm:$0xff]
    %v2149 = vld [vmem:[#allocation7 + $0x10] sm:$0xff]
    %v2150 = vld [vmem:[#allocation7 + $0x18] sm:$0xff]
    %v2151 = vld [vmem:[#allocation7 + $0x20] sm:$0xff]
    %v2152 = vld [vmem:[#allocation7 + $0x28] sm:$0xff]
    %v2153 = vld [vmem:[#allocation7 + $0x30] sm:$0xff]
    %v2154 = vld [vmem:[#allocation7 + $0x38] sm:$0xff]
    %v2155 = vld [vmem:[#allocation7 + $0x40] sm:$0xff]
    %v2156 = vld [vmem:[#allocation7 + $0x48] sm:$0xff]
    %v2157 = vld [vmem:[#allocation7 + $0x50] sm:$0xff]
    %v2158 = vld [vmem:[#allocation7 + $0x58] sm:$0xff]
    %v2159 = vld [vmem:[#allocation7 + $0x60] sm:$0xff]
    %v2160 = vld [vmem:[#allocation7 + $0x68] sm:$0xff]
    %v2161 = vld [vmem:[#allocation7 + $0x70] sm:$0xff]
    %v2162 = vld [vmem:[#allocation7 + $0x78] sm:$0xff]
    %v2163 = vld [vmem:[#allocation7 + $0x80] sm:$0xff]
    %v2164 = vld [vmem:[#allocation7 + $0x88] sm:$0xff]
    %v2165 = vld [vmem:[#allocation7 + $0x90] sm:$0xff]
    %v2166 = vld [vmem:[#allocation7 + $0x98] sm:$0xff]
    %v2167 = vld [vmem:[#allocation7 + $0xa0] sm:$0xff]
    %v2168 = vld [vmem:[#allocation7 + $0xa8] sm:$0xff]
    %v2169 = vld [vmem:[#allocation7 + $0xb0] sm:$0xff]
    %v2170 = vld [vmem:[#allocation7 + $0xb8] sm:$0xff]
    %v2171 = vld [vmem:[#allocation7 + $0xc0] sm:$0xff]
    %v2172 = vld [vmem:[#allocation7 + $0xc8] sm:$0xff]
    %v2173 = vld [vmem:[#allocation7 + $0xd0] sm:$0xff]
    %v2174 = vld [vmem:[#allocation7 + $0xd8] sm:$0xff]
    %v2175 = vld [vmem:[#allocation7 + $0xe0] sm:$0xff]
    %v2176 = vld [vmem:[#allocation7 + $0xe8] sm:$0xff]
    %v2177 = vld [vmem:[#allocation7 + $0xf0] sm:$0xff]
    %v2178 = vld [vmem:[#allocation7 + $0xf8] sm:$0xff]
    %v2179 = vld [vmem:[#allocation7 + $0x100] sm:$0xff]
    %v2180 = vld [vmem:[#allocation7 + $0x108] sm:$0xff]
    %v2181 = vld [vmem:[#allocation7 + $0x110] sm:$0xff]
    %v2182 = vld [vmem:[#allocation7 + $0x118] sm:$0xff]
    %v2183 = vld [vmem:[#allocation7 + $0x120] sm:$0xff]
    %v2184 = vld [vmem:[#allocation7 + $0x128] sm:$0xff]
    %v2185 = vld [vmem:[#allocation7 + $0x130] sm:$0xff]
    %v2186 = vld [vmem:[#allocation7 + $0x138] sm:$0xff]
    %v2187 = vld [vmem:[#allocation7 + $0x140] sm:$0xff]
    %v2188 = vld [vmem:[#allocation7 + $0x148] sm:$0xff]
    %v2189 = vld [vmem:[#allocation7 + $0x150] sm:$0xff]
    %v2190 = vld [vmem:[#allocation7 + $0x158] sm:$0xff]
    %v2191 = vld [vmem:[#allocation7 + $0x160] sm:$0xff]
    %v2192 = vld [vmem:[#allocation7 + $0x168] sm:$0xff]
    %v2193 = vld [vmem:[#allocation7 + $0x170] sm:$0xff]
    %v2194 = vld [vmem:[#allocation7 + $0x178] sm:$0xff]
    %v2195 = vld [vmem:[#allocation7 + $0x180] sm:$0xff]
    %v2196 = vld [vmem:[#allocation7 + $0x188] sm:$0xff]
    %v2197 = vld [vmem:[#allocation7 + $0x190] sm:$0xff]
    %v2198 = vld [vmem:[#allocation7 + $0x198] sm:$0xff]
    %v2199 = vld [vmem:[#allocation7 + $0x1a0] sm:$0xff]
    %v2200 = vld [vmem:[#allocation7 + $0x1a8] sm:$0xff]
    %v2201 = vld [vmem:[#allocation7 + $0x1b0] sm:$0xff]
    %v2202 = vld [vmem:[#allocation7 + $0x1b8] sm:$0xff]
    %v2203 = vld [vmem:[#allocation7 + $0x1c0] sm:$0xff]
    %v2204 = vld [vmem:[#allocation7 + $0x1c8] sm:$0xff]
    %v2205 = vld [vmem:[#allocation7 + $0x1d0] sm:$0xff]
    %v2206 = vld [vmem:[#allocation7 + $0x1d8] sm:$0xff]
    %v2207 = vld [vmem:[#allocation7 + $0x1e0] sm:$0xff]
    %v2208 = vld [vmem:[#allocation7 + $0x1e8] sm:$0xff]
    %v2209 = vld [vmem:[#allocation7 + $0x1f0] sm:$0xff]
    %v2210 = vld [vmem:[#allocation7 + $0x1f8] sm:$0xff]
    %v2211 = vld [vmem:[%s13] sm:$0x3]
    %v2213 = vperm.slane %v2211, 0
    %v2214 = vperm.slane %v2211, 1
    %v2281 = vunpack.c.l.b16 %v2147
    %v2282 = vunpack.c.h.b16 %v2147
    %v2283 = vunpack.c.l.b16 %v2148
    %v2284 = vunpack.c.h.b16 %v2148
    %v2285 = vunpack.c.l.b16 %v2149
    %v2286 = vunpack.c.h.b16 %v2149
    %v2287 = vunpack.c.l.b16 %v2150
    %v2288 = vunpack.c.h.b16 %v2150
    %v2289 = vunpack.c.l.b16 %v2151
    %v2290 = vunpack.c.h.b16 %v2151
    %v2291 = vunpack.c.l.b16 %v2152
    %v2292 = vunpack.c.h.b16 %v2152
    %v2293 = vunpack.c.l.b16 %v2153
    %v2294 = vunpack.c.h.b16 %v2153
    %v2295 = vunpack.c.l.b16 %v2154
    %v2296 = vunpack.c.h.b16 %v2154
    %v2297 = vunpack.c.l.b16 %v2155
    %v2298 = vunpack.c.h.b16 %v2155
    %v2299 = vunpack.c.l.b16 %v2156
    %v2300 = vunpack.c.h.b16 %v2156
    %v2301 = vunpack.c.l.b16 %v2157
    %v2302 = vunpack.c.h.b16 %v2157
    %v2303 = vunpack.c.l.b16 %v2158
    %v2304 = vunpack.c.h.b16 %v2158
    %v2305 = vunpack.c.l.b16 %v2159
    %v2306 = vunpack.c.h.b16 %v2159
    %v2307 = vunpack.c.l.b16 %v2160
    %v2308 = vunpack.c.h.b16 %v2160
    %v2309 = vunpack.c.l.b16 %v2161
    %v2310 = vunpack.c.h.b16 %v2161
    %v2311 = vunpack.c.l.b16 %v2162
    %v2312 = vunpack.c.h.b16 %v2162
    %v2313 = vunpack.c.l.b16 %v2163
    %v2314 = vunpack.c.h.b16 %v2163
    %v2315 = vunpack.c.l.b16 %v2164
    %v2316 = vunpack.c.h.b16 %v2164
    %v2317 = vunpack.c.l.b16 %v2165
    %v2318 = vunpack.c.h.b16 %v2165
    %v2319 = vunpack.c.l.b16 %v2166
    %v2320 = vunpack.c.h.b16 %v2166
    %v2321 = vunpack.c.l.b16 %v2167
    %v2322 = vunpack.c.h.b16 %v2167
    %v2323 = vunpack.c.l.b16 %v2168
    %v2324 = vunpack.c.h.b16 %v2168
    %v2325 = vunpack.c.l.b16 %v2169
    %v2326 = vunpack.c.h.b16 %v2169
    %v2327 = vunpack.c.l.b16 %v2170
    %v2328 = vunpack.c.h.b16 %v2170
    %v2329 = vunpack.c.l.b16 %v2171
    %v2330 = vunpack.c.h.b16 %v2171
    %v2331 = vunpack.c.l.b16 %v2172
    %v2332 = vunpack.c.h.b16 %v2172
    %v2333 = vunpack.c.l.b16 %v2173
    %v2334 = vunpack.c.h.b16 %v2173
    %v2335 = vunpack.c.l.b16 %v2174
    %v2336 = vunpack.c.h.b16 %v2174
    %v2337 = vunpack.c.l.b16 %v2175
    %v2338 = vunpack.c.h.b16 %v2175
    %v2339 = vunpack.c.l.b16 %v2176
    %v2340 = vunpack.c.h.b16 %v2176
    %v2341 = vunpack.c.l.b16 %v2177
    %v2342 = vunpack.c.h.b16 %v2177
    %v2343 = vunpack.c.l.b16 %v2178
    %v2344 = vunpack.c.h.b16 %v2178
    %v2345 = vunpack.c.l.b16 %v2179
    %v2346 = vunpack.c.h.b16 %v2179
    %v2347 = vunpack.c.l.b16 %v2180
    %v2348 = vunpack.c.h.b16 %v2180
    %v2349 = vunpack.c.l.b16 %v2181
    %v2350 = vunpack.c.h.b16 %v2181
    %v2351 = vunpack.c.l.b16 %v2182
    %v2352 = vunpack.c.h.b16 %v2182
    %v2353 = vunpack.c.l.b16 %v2183
    %v2354 = vunpack.c.h.b16 %v2183
    %v2355 = vunpack.c.l.b16 %v2184
    %v2356 = vunpack.c.h.b16 %v2184
    %v2357 = vunpack.c.l.b16 %v2185
    %v2358 = vunpack.c.h.b16 %v2185
    %v2359 = vunpack.c.l.b16 %v2186
    %v2360 = vunpack.c.h.b16 %v2186
    %v2361 = vunpack.c.l.b16 %v2187
    %v2362 = vunpack.c.h.b16 %v2187
    %v2363 = vunpack.c.l.b16 %v2188
    %v2364 = vunpack.c.h.b16 %v2188
    %v2365 = vunpack.c.l.b16 %v2189
    %v2366 = vunpack.c.h.b16 %v2189
    %v2367 = vunpack.c.l.b16 %v2190
    %v2368 = vunpack.c.h.b16 %v2190
    %v2369 = vunpack.c.l.b16 %v2191
    %v2370 = vunpack.c.h.b16 %v2191
    %v2371 = vunpack.c.l.b16 %v2192
    %v2372 = vunpack.c.h.b16 %v2192
    %v2373 = vunpack.c.l.b16 %v2193
    %v2374 = vunpack.c.h.b16 %v2193
    %v2375 = vunpack.c.l.b16 %v2194
    %v2376 = vunpack.c.h.b16 %v2194
    %v2377 = vunpack.c.l.b16 %v2195
    %v2378 = vunpack.c.h.b16 %v2195
    %v2379 = vunpack.c.l.b16 %v2196
    %v2380 = vunpack.c.h.b16 %v2196
    %v2381 = vunpack.c.l.b16 %v2197
    %v2382 = vunpack.c.h.b16 %v2197
    %v2383 = vunpack.c.l.b16 %v2198
    %v2384 = vunpack.c.h.b16 %v2198
    %v2385 = vunpack.c.l.b16 %v2199
    %v2386 = vunpack.c.h.b16 %v2199
    %v2387 = vunpack.c.l.b16 %v2200
    %v2388 = vunpack.c.h.b16 %v2200
    %v2389 = vunpack.c.l.b16 %v2201
    %v2390 = vunpack.c.h.b16 %v2201
    %v2391 = vunpack.c.l.b16 %v2202
    %v2392 = vunpack.c.h.b16 %v2202
    %v2393 = vunpack.c.l.b16 %v2203
    %v2394 = vunpack.c.h.b16 %v2203
    %v2395 = vunpack.c.l.b16 %v2204
    %v2396 = vunpack.c.h.b16 %v2204
    %v2397 = vunpack.c.l.b16 %v2205
    %v2398 = vunpack.c.h.b16 %v2205
    %v2399 = vunpack.c.l.b16 %v2206
    %v2400 = vunpack.c.h.b16 %v2206
    %v2401 = vunpack.c.l.b16 %v2207
    %v2402 = vunpack.c.h.b16 %v2207
    %v2403 = vunpack.c.l.b16 %v2208
    %v2404 = vunpack.c.h.b16 %v2208
    %v2405 = vunpack.c.l.b16 %v2209
    %v2406 = vunpack.c.h.b16 %v2209
    %v2407 = vunpack.c.l.b16 %v2210
    %v2408 = vunpack.c.h.b16 %v2210
    %v2409 = vpack.c.b16 %v2283, %v2281
    %v2410 = vpack.c.b16 %v2284, %v2282
    %v2411 = vpack.c.b16 %v2287, %v2285
    %v2412 = vpack.c.b16 %v2288, %v2286
    %v2413 = vpack.c.b16 %v2291, %v2289
    %v2414 = vpack.c.b16 %v2292, %v2290
    %v2415 = vpack.c.b16 %v2295, %v2293
    %v2416 = vpack.c.b16 %v2296, %v2294
    %v2417 = vpack.c.b16 %v2299, %v2297
    %v2418 = vpack.c.b16 %v2300, %v2298
    %v2419 = vpack.c.b16 %v2303, %v2301
    %v2420 = vpack.c.b16 %v2304, %v2302
    %v2421 = vpack.c.b16 %v2307, %v2305
    %v2422 = vpack.c.b16 %v2308, %v2306
    %v2423 = vpack.c.b16 %v2311, %v2309
    %v2424 = vpack.c.b16 %v2312, %v2310
    %v2425 = vpack.c.b16 %v2315, %v2313
    %v2426 = vpack.c.b16 %v2316, %v2314
    %v2427 = vpack.c.b16 %v2319, %v2317
    %v2428 = vpack.c.b16 %v2320, %v2318
    %v2429 = vpack.c.b16 %v2323, %v2321
    %v2430 = vpack.c.b16 %v2324, %v2322
    %v2431 = vpack.c.b16 %v2327, %v2325
    %v2432 = vpack.c.b16 %v2328, %v2326
    %v2433 = vpack.c.b16 %v2331, %v2329
    %v2434 = vpack.c.b16 %v2332, %v2330
    %v2435 = vpack.c.b16 %v2335, %v2333
    %v2436 = vpack.c.b16 %v2336, %v2334
    %v2437 = vpack.c.b16 %v2339, %v2337
    %v2438 = vpack.c.b16 %v2340, %v2338
    %v2439 = vpack.c.b16 %v2343, %v2341
    %v2440 = vpack.c.b16 %v2344, %v2342
    %v2441 = vpack.c.b16 %v2347, %v2345
    %v2442 = vpack.c.b16 %v2348, %v2346
    %v2443 = vpack.c.b16 %v2351, %v2349
    %v2444 = vpack.c.b16 %v2352, %v2350
    %v2445 = vpack.c.b16 %v2355, %v2353
    %v2446 = vpack.c.b16 %v2356, %v2354
    %v2447 = vpack.c.b16 %v2359, %v2357
    %v2448 = vpack.c.b16 %v2360, %v2358
    %v2449 = vpack.c.b16 %v2363, %v2361
    %v2450 = vpack.c.b16 %v2364, %v2362
    %v2451 = vpack.c.b16 %v2367, %v2365
    %v2452 = vpack.c.b16 %v2368, %v2366
    %v2453 = vpack.c.b16 %v2371, %v2369
    %v2454 = vpack.c.b16 %v2372, %v2370
    %v2455 = vpack.c.b16 %v2375, %v2373
    %v2456 = vpack.c.b16 %v2376, %v2374
    %v2457 = vpack.c.b16 %v2379, %v2377
    %v2458 = vpack.c.b16 %v2380, %v2378
    %v2459 = vpack.c.b16 %v2383, %v2381
    %v2460 = vpack.c.b16 %v2384, %v2382
    %v2461 = vpack.c.b16 %v2387, %v2385
    %v2462 = vpack.c.b16 %v2388, %v2386
    %v2463 = vpack.c.b16 %v2391, %v2389
    %v2464 = vpack.c.b16 %v2392, %v2390
    %v2465 = vpack.c.b16 %v2395, %v2393
    %v2466 = vpack.c.b16 %v2396, %v2394
    %v2467 = vpack.c.b16 %v2399, %v2397
    %v2468 = vpack.c.b16 %v2400, %v2398
    %v2469 = vpack.c.b16 %v2403, %v2401
    %v2470 = vpack.c.b16 %v2404, %v2402
    %v2471 = vpack.c.b16 %v2407, %v2405
    %v2472 = vpack.c.b16 %v2408, %v2406
    %2537 = vmatpush.bf16.msra.mxu0 %v2423
    %2538 = vmatpush.bf16.msra.mxu0 %v2421
    %2539 = vmatpush.bf16.msra.mxu0 %v2419
    %2540 = vmatpush.bf16.msra.mxu0 %v2417
    %2541 = vmatpush.bf16.msra.mxu0 %v2415
    %2542 = vmatpush.bf16.msra.mxu0 %v2413
    %2543 = vmatpush.bf16.msra.mxu0 %v2411
    %2544 = vmatpush.bf16.msra.mxu0 %v2409
    %2545 = vmatmul.bf16.gmra.mxu0 %v1851
    %v2546 = vpop.f32.mrf.mxu0
    %v2547 = vadd.f32 %v2213, %v2546
    %v2548 = vpop.f32.mrf.mxu0
    %2549 = vdwg.mxu0
    %2550 = vmatpush.bf16.msra.mxu0 %v2439
    %2551 = vmatpush.bf16.msra.mxu0 %v2437
    %2552 = vmatpush.bf16.msra.mxu0 %v2435
    %2553 = vmatpush.bf16.msra.mxu0 %v2433
    %2554 = vmatpush.bf16.msra.mxu0 %v2431
    %2555 = vmatpush.bf16.msra.mxu0 %v2429
    %2556 = vmatpush.bf16.msra.mxu0 %v2427
    %2557 = vmatpush.bf16.msra.mxu0 %v2425
    %2558 = vmatmul.bf16.gmra.mxu0 %v1852
    %v2559 = vpop.f32.mrf.mxu0
    %v2560 = vadd.f32 %v2547, %v2559
    %v2561 = vpop.f32.mrf.mxu0
    %2562 = vdwg.mxu0
    %2563 = vmatpush.bf16.msra.mxu0 %v2455
    %2564 = vmatpush.bf16.msra.mxu0 %v2453
    %2565 = vmatpush.bf16.msra.mxu0 %v2451
    %2566 = vmatpush.bf16.msra.mxu0 %v2449
    %2567 = vmatpush.bf16.msra.mxu0 %v2447
    %2568 = vmatpush.bf16.msra.mxu0 %v2445
    %2569 = vmatpush.bf16.msra.mxu0 %v2443
    %2570 = vmatpush.bf16.msra.mxu0 %v2441
    %2571 = vmatmul.bf16.gmra.mxu0 %v1853
    %v2572 = vpop.f32.mrf.mxu0
    %v2573 = vadd.f32 %v2560, %v2572
    %v2574 = vpop.f32.mrf.mxu0
    %2575 = vdwg.mxu0
    %2576 = vmatpush.bf16.msra.mxu0 %v2471
    %2577 = vmatpush.bf16.msra.mxu0 %v2469
    %2578 = vmatpush.bf16.msra.mxu0 %v2467
    %2579 = vmatpush.bf16.msra.mxu0 %v2465
    %2580 = vmatpush.bf16.msra.mxu0 %v2463
    %2581 = vmatpush.bf16.msra.mxu0 %v2461
    %2582 = vmatpush.bf16.msra.mxu0 %v2459
    %2583 = vmatpush.bf16.msra.mxu0 %v2457
    %2584 = vmatmul.bf16.gmra.mxu0 %v1854
    %v2585 = vpop.f32.mrf.mxu0
    %v2586 = vadd.f32 %v2573, %v2585
    %v2587 = vpop.f32.mrf.mxu0
    %2588 = vdwg.mxu0
    %2589 = vmatpush.bf16.msra.mxu0 %v2424
    %2590 = vmatpush.bf16.msra.mxu0 %v2422
    %2591 = vmatpush.bf16.msra.mxu0 %v2420
    %2592 = vmatpush.bf16.msra.mxu0 %v2418
    %2593 = vmatpush.bf16.msra.mxu0 %v2416
    %2594 = vmatpush.bf16.msra.mxu0 %v2414
    %2595 = vmatpush.bf16.msra.mxu0 %v2412
    %2596 = vmatpush.bf16.msra.mxu0 %v2410
    %2597 = vmatmul.bf16.gmra.mxu0 %v1851
    %v2598 = vpop.f32.mrf.mxu0
    %v2599 = vadd.f32 %v2214, %v2598
    %v2600 = vpop.f32.mrf.mxu0
    %2601 = vdwg.mxu0
    %2602 = vmatpush.bf16.msra.mxu0 %v2440
    %2603 = vmatpush.bf16.msra.mxu0 %v2438
    %2604 = vmatpush.bf16.msra.mxu0 %v2436
    %2605 = vmatpush.bf16.msra.mxu0 %v2434
    %2606 = vmatpush.bf16.msra.mxu0 %v2432
    %2607 = vmatpush.bf16.msra.mxu0 %v2430
    %2608 = vmatpush.bf16.msra.mxu0 %v2428
    %2609 = vmatpush.bf16.msra.mxu0 %v2426
    %2610 = vmatmul.bf16.gmra.mxu0 %v1852
    %v2611 = vpop.f32.mrf.mxu0
    %v2612 = vadd.f32 %v2599, %v2611
    %v2613 = vpop.f32.mrf.mxu0
    %2614 = vdwg.mxu0
    %2615 = vmatpush.bf16.msra.mxu0 %v2456
    %2616 = vmatpush.bf16.msra.mxu0 %v2454
    %2617 = vmatpush.bf16.msra.mxu0 %v2452
    %2618 = vmatpush.bf16.msra.mxu0 %v2450
    %2619 = vmatpush.bf16.msra.mxu0 %v2448
    %2620 = vmatpush.bf16.msra.mxu0 %v2446
    %2621 = vmatpush.bf16.msra.mxu0 %v2444
    %2622 = vmatpush.bf16.msra.mxu0 %v2442
    %2623 = vmatmul.bf16.gmra.mxu0 %v1853
    %v2624 = vpop.f32.mrf.mxu0
    %v2625 = vadd.f32 %v2612, %v2624
    %v2626 = vpop.f32.mrf.mxu0
    %2627 = vdwg.mxu0
    %2628 = vmatpush.bf16.msra.mxu0 %v2472
    %2629 = vmatpush.bf16.msra.mxu0 %v2470
    %2630 = vmatpush.bf16.msra.mxu0 %v2468
    %2631 = vmatpush.bf16.msra.mxu0 %v2466
    %2632 = vmatpush.bf16.msra.mxu0 %v2464
    %2633 = vmatpush.bf16.msra.mxu0 %v2462
    %2634 = vmatpush.bf16.msra.mxu0 %v2460
    %2635 = vmatpush.bf16.msra.mxu0 %v2458
    %2636 = vmatmul.bf16.gmra.mxu0 %v1854
    %v2637 = vpop.f32.mrf.mxu0
    %v2638 = vadd.f32 %v2625, %v2637
    %v2639 = vpop.f32.mrf.mxu0
    %2640 = vdwg.mxu0
    %v2641 = vtanh.pop %v2586
    %v2642 = vtanh.pop %v2638
    %v2643 = vmul.f32 %v2641, %v2131
    %v2644 = vmul.f32 %v2642, %v2144
    %s2645 = scalar_lea.vmem [#allocation7], 512
    %v2646 = vld [vmem:[%s2645] sm:$0xff]
    %v2647 = vld [vmem:[%s2645 + $0x8] sm:$0xff]
    %v2648 = vld [vmem:[%s2645 + $0x10] sm:$0xff]
    %v2649 = vld [vmem:[%s2645 + $0x18] sm:$0xff]
    %v2650 = vld [vmem:[%s2645 + $0x20] sm:$0xff]
    %v2651 = vld [vmem:[%s2645 + $0x28] sm:$0xff]
    %v2652 = vld [vmem:[%s2645 + $0x30] sm:$0xff]
    %v2653 = vld [vmem:[%s2645 + $0x38] sm:$0xff]
    %v2654 = vld [vmem:[%s2645 + $0x40] sm:$0xff]
    %v2655 = vld [vmem:[%s2645 + $0x48] sm:$0xff]
    %v2656 = vld [vmem:[%s2645 + $0x50] sm:$0xff]
    %v2657 = vld [vmem:[%s2645 + $0x58] sm:$0xff]
    %v2658 = vld [vmem:[%s2645 + $0x60] sm:$0xff]
    %v2659 = vld [vmem:[%s2645 + $0x68] sm:$0xff]
    %v2660 = vld [vmem:[%s2645 + $0x70] sm:$0xff]
    %v2661 = vld [vmem:[%s2645 + $0x78] sm:$0xff]
    %v2662 = vld [vmem:[%s2645 + $0x80] sm:$0xff]
    %v2663 = vld [vmem:[%s2645 + $0x88] sm:$0xff]
    %v2664 = vld [vmem:[%s2645 + $0x90] sm:$0xff]
    %v2665 = vld [vmem:[%s2645 + $0x98] sm:$0xff]
    %v2666 = vld [vmem:[%s2645 + $0xa0] sm:$0xff]
    %v2667 = vld [vmem:[%s2645 + $0xa8] sm:$0xff]
    %v2668 = vld [vmem:[%s2645 + $0xb0] sm:$0xff]
    %v2669 = vld [vmem:[%s2645 + $0xb8] sm:$0xff]
    %v2670 = vld [vmem:[%s2645 + $0xc0] sm:$0xff]
    %v2671 = vld [vmem:[%s2645 + $0xc8] sm:$0xff]
    %v2672 = vld [vmem:[%s2645 + $0xd0] sm:$0xff]
    %v2673 = vld [vmem:[%s2645 + $0xd8] sm:$0xff]
    %v2674 = vld [vmem:[%s2645 + $0xe0] sm:$0xff]
    %v2675 = vld [vmem:[%s2645 + $0xe8] sm:$0xff]
    %v2676 = vld [vmem:[%s2645 + $0xf0] sm:$0xff]
    %v2677 = vld [vmem:[%s2645 + $0xf8] sm:$0xff]
    %v2678 = vld [vmem:[%s2645 + $0x100] sm:$0xff]
    %v2679 = vld [vmem:[%s2645 + $0x108] sm:$0xff]
    %v2680 = vld [vmem:[%s2645 + $0x110] sm:$0xff]
    %v2681 = vld [vmem:[%s2645 + $0x118] sm:$0xff]
    %v2682 = vld [vmem:[%s2645 + $0x120] sm:$0xff]
    %v2683 = vld [vmem:[%s2645 + $0x128] sm:$0xff]
    %v2684 = vld [vmem:[%s2645 + $0x130] sm:$0xff]
    %v2685 = vld [vmem:[%s2645 + $0x138] sm:$0xff]
    %v2686 = vld [vmem:[%s2645 + $0x140] sm:$0xff]
    %v2687 = vld [vmem:[%s2645 + $0x148] sm:$0xff]
    %v2688 = vld [vmem:[%s2645 + $0x150] sm:$0xff]
    %v2689 = vld [vmem:[%s2645 + $0x158] sm:$0xff]
    %v2690 = vld [vmem:[%s2645 + $0x160] sm:$0xff]
    %v2691 = vld [vmem:[%s2645 + $0x168] sm:$0xff]
    %v2692 = vld [vmem:[%s2645 + $0x170] sm:$0xff]
    %v2693 = vld [vmem:[%s2645 + $0x178] sm:$0xff]
    %v2694 = vld [vmem:[%s2645 + $0x180] sm:$0xff]
    %v2695 = vld [vmem:[%s2645 + $0x188] sm:$0xff]
    %v2696 = vld [vmem:[%s2645 + $0x190] sm:$0xff]
    %v2697 = vld [vmem:[%s2645 + $0x198] sm:$0xff]
    %v2698 = vld [vmem:[%s2645 + $0x1a0] sm:$0xff]
    %v2699 = vld [vmem:[%s2645 + $0x1a8] sm:$0xff]
    %v2700 = vld [vmem:[%s2645 + $0x1b0] sm:$0xff]
    %v2701 = vld [vmem:[%s2645 + $0x1b8] sm:$0xff]
    %v2702 = vld [vmem:[%s2645 + $0x1c0] sm:$0xff]
    %v2703 = vld [vmem:[%s2645 + $0x1c8] sm:$0xff]
    %v2704 = vld [vmem:[%s2645 + $0x1d0] sm:$0xff]
    %v2705 = vld [vmem:[%s2645 + $0x1d8] sm:$0xff]
    %v2706 = vld [vmem:[%s2645 + $0x1e0] sm:$0xff]
    %v2707 = vld [vmem:[%s2645 + $0x1e8] sm:$0xff]
    %v2708 = vld [vmem:[%s2645 + $0x1f0] sm:$0xff]
    %v2709 = vld [vmem:[%s2645 + $0x1f8] sm:$0xff]
    %s2710 = scalar_lea.vmem %s13, 2
    %v2711 = vld [vmem:[%s2710] sm:$0x3]
    %v2713 = vperm.slane %v2711, 0
    %v2714 = vperm.slane %v2711, 1
    %v2781 = vunpack.c.l.b16 %v2646
    %v2782 = vunpack.c.h.b16 %v2646
    %v2783 = vunpack.c.l.b16 %v2647
    %v2784 = vunpack.c.h.b16 %v2647
    %v2785 = vunpack.c.l.b16 %v2648
    %v2786 = vunpack.c.h.b16 %v2648
    %v2787 = vunpack.c.l.b16 %v2649
    %v2788 = vunpack.c.h.b16 %v2649
    %v2789 = vunpack.c.l.b16 %v2650
    %v2790 = vunpack.c.h.b16 %v2650
    %v2791 = vunpack.c.l.b16 %v2651
    %v2792 = vunpack.c.h.b16 %v2651
    %v2793 = vunpack.c.l.b16 %v2652
    %v2794 = vunpack.c.h.b16 %v2652
    %v2795 = vunpack.c.l.b16 %v2653
    %v2796 = vunpack.c.h.b16 %v2653
    %v2797 = vunpack.c.l.b16 %v2654
    %v2798 = vunpack.c.h.b16 %v2654
    %v2799 = vunpack.c.l.b16 %v2655
    %v2800 = vunpack.c.h.b16 %v2655
    %v2801 = vunpack.c.l.b16 %v2656
    %v2802 = vunpack.c.h.b16 %v2656
    %v2803 = vunpack.c.l.b16 %v2657
    %v2804 = vunpack.c.h.b16 %v2657
    %v2805 = vunpack.c.l.b16 %v2658
    %v2806 = vunpack.c.h.b16 %v2658
    %v2807 = vunpack.c.l.b16 %v2659
    %v2808 = vunpack.c.h.b16 %v2659
    %v2809 = vunpack.c.l.b16 %v2660
    %v2810 = vunpack.c.h.b16 %v2660
    %v2811 = vunpack.c.l.b16 %v2661
    %v2812 = vunpack.c.h.b16 %v2661
    %v2813 = vunpack.c.l.b16 %v2662
    %v2814 = vunpack.c.h.b16 %v2662
    %v2815 = vunpack.c.l.b16 %v2663
    %v2816 = vunpack.c.h.b16 %v2663
    %v2817 = vunpack.c.l.b16 %v2664
    %v2818 = vunpack.c.h.b16 %v2664
    %v2819 = vunpack.c.l.b16 %v2665
    %v2820 = vunpack.c.h.b16 %v2665
    %v2821 = vunpack.c.l.b16 %v2666
    %v2822 = vunpack.c.h.b16 %v2666
    %v2823 = vunpack.c.l.b16 %v2667
    %v2824 = vunpack.c.h.b16 %v2667
    %v2825 = vunpack.c.l.b16 %v2668
    %v2826 = vunpack.c.h.b16 %v2668
    %v2827 = vunpack.c.l.b16 %v2669
    %v2828 = vunpack.c.h.b16 %v2669
    %v2829 = vunpack.c.l.b16 %v2670
    %v2830 = vunpack.c.h.b16 %v2670
    %v2831 = vunpack.c.l.b16 %v2671
    %v2832 = vunpack.c.h.b16 %v2671
    %v2833 = vunpack.c.l.b16 %v2672
    %v2834 = vunpack.c.h.b16 %v2672
    %v2835 = vunpack.c.l.b16 %v2673
    %v2836 = vunpack.c.h.b16 %v2673
    %v2837 = vunpack.c.l.b16 %v2674
    %v2838 = vunpack.c.h.b16 %v2674
    %v2839 = vunpack.c.l.b16 %v2675
    %v2840 = vunpack.c.h.b16 %v2675
    %v2841 = vunpack.c.l.b16 %v2676
    %v2842 = vunpack.c.h.b16 %v2676
    %v2843 = vunpack.c.l.b16 %v2677
    %v2844 = vunpack.c.h.b16 %v2677
    %v2845 = vunpack.c.l.b16 %v2678
    %v2846 = vunpack.c.h.b16 %v2678
    %v2847 = vunpack.c.l.b16 %v2679
    %v2848 = vunpack.c.h.b16 %v2679
    %v2849 = vunpack.c.l.b16 %v2680
    %v2850 = vunpack.c.h.b16 %v2680
    %v2851 = vunpack.c.l.b16 %v2681
    %v2852 = vunpack.c.h.b16 %v2681
    %v2853 = vunpack.c.l.b16 %v2682
    %v2854 = vunpack.c.h.b16 %v2682
    %v2855 = vunpack.c.l.b16 %v2683
    %v2856 = vunpack.c.h.b16 %v2683
    %v2857 = vunpack.c.l.b16 %v2684
    %v2858 = vunpack.c.h.b16 %v2684
    %v2859 = vunpack.c.l.b16 %v2685
    %v2860 = vunpack.c.h.b16 %v2685
    %v2861 = vunpack.c.l.b16 %v2686
    %v2862 = vunpack.c.h.b16 %v2686
    %v2863 = vunpack.c.l.b16 %v2687
    %v2864 = vunpack.c.h.b16 %v2687
    %v2865 = vunpack.c.l.b16 %v2688
    %v2866 = vunpack.c.h.b16 %v2688
    %v2867 = vunpack.c.l.b16 %v2689
    %v2868 = vunpack.c.h.b16 %v2689
    %v2869 = vunpack.c.l.b16 %v2690
    %v2870 = vunpack.c.h.b16 %v2690
    %v2871 = vunpack.c.l.b16 %v2691
    %v2872 = vunpack.c.h.b16 %v2691
    %v2873 = vunpack.c.l.b16 %v2692
    %v2874 = vunpack.c.h.b16 %v2692
    %v2875 = vunpack.c.l.b16 %v2693
    %v2876 = vunpack.c.h.b16 %v2693
    %v2877 = vunpack.c.l.b16 %v2694
    %v2878 = vunpack.c.h.b16 %v2694
    %v2879 = vunpack.c.l.b16 %v2695
    %v2880 = vunpack.c.h.b16 %v2695
    %v2881 = vunpack.c.l.b16 %v2696
    %v2882 = vunpack.c.h.b16 %v2696
    %v2883 = vunpack.c.l.b16 %v2697
    %v2884 = vunpack.c.h.b16 %v2697
    %v2885 = vunpack.c.l.b16 %v2698
    %v2886 = vunpack.c.h.b16 %v2698
    %v2887 = vunpack.c.l.b16 %v2699
    %v2888 = vunpack.c.h.b16 %v2699
    %v2889 = vunpack.c.l.b16 %v2700
    %v2890 = vunpack.c.h.b16 %v2700
    %v2891 = vunpack.c.l.b16 %v2701
    %v2892 = vunpack.c.h.b16 %v2701
    %v2893 = vunpack.c.l.b16 %v2702
    %v2894 = vunpack.c.h.b16 %v2702
    %v2895 = vunpack.c.l.b16 %v2703
    %v2896 = vunpack.c.h.b16 %v2703
    %v2897 = vunpack.c.l.b16 %v2704
    %v2898 = vunpack.c.h.b16 %v2704
    %v2899 = vunpack.c.l.b16 %v2705
    %v2900 = vunpack.c.h.b16 %v2705
    %v2901 = vunpack.c.l.b16 %v2706
    %v2902 = vunpack.c.h.b16 %v2706
    %v2903 = vunpack.c.l.b16 %v2707
    %v2904 = vunpack.c.h.b16 %v2707
    %v2905 = vunpack.c.l.b16 %v2708
    %v2906 = vunpack.c.h.b16 %v2708
    %v2907 = vunpack.c.l.b16 %v2709
    %v2908 = vunpack.c.h.b16 %v2709
    %v2909 = vpack.c.b16 %v2783, %v2781
    %v2910 = vpack.c.b16 %v2784, %v2782
    %v2911 = vpack.c.b16 %v2787, %v2785
    %v2912 = vpack.c.b16 %v2788, %v2786
    %v2913 = vpack.c.b16 %v2791, %v2789
    %v2914 = vpack.c.b16 %v2792, %v2790
    %v2915 = vpack.c.b16 %v2795, %v2793
    %v2916 = vpack.c.b16 %v2796, %v2794
    %v2917 = vpack.c.b16 %v2799, %v2797
    %v2918 = vpack.c.b16 %v2800, %v2798
    %v2919 = vpack.c.b16 %v2803, %v2801
    %v2920 = vpack.c.b16 %v2804, %v2802
    %v2921 = vpack.c.b16 %v2807, %v2805
    %v2922 = vpack.c.b16 %v2808, %v2806
    %v2923 = vpack.c.b16 %v2811, %v2809
    %v2924 = vpack.c.b16 %v2812, %v2810
    %v2925 = vpack.c.b16 %v2815, %v2813
    %v2926 = vpack.c.b16 %v2816, %v2814
    %v2927 = vpack.c.b16 %v2819, %v2817
    %v2928 = vpack.c.b16 %v2820, %v2818
    %v2929 = vpack.c.b16 %v2823, %v2821
    %v2930 = vpack.c.b16 %v2824, %v2822
    %v2931 = vpack.c.b16 %v2827, %v2825
    %v2932 = vpack.c.b16 %v2828, %v2826
    %v2933 = vpack.c.b16 %v2831, %v2829
    %v2934 = vpack.c.b16 %v2832, %v2830
    %v2935 = vpack.c.b16 %v2835, %v2833
    %v2936 = vpack.c.b16 %v2836, %v2834
    %v2937 = vpack.c.b16 %v2839, %v2837
    %v2938 = vpack.c.b16 %v2840, %v2838
    %v2939 = vpack.c.b16 %v2843, %v2841
    %v2940 = vpack.c.b16 %v2844, %v2842
    %v2941 = vpack.c.b16 %v2847, %v2845
    %v2942 = vpack.c.b16 %v2848, %v2846
    %v2943 = vpack.c.b16 %v2851, %v2849
    %v2944 = vpack.c.b16 %v2852, %v2850
    %v2945 = vpack.c.b16 %v2855, %v2853
    %v2946 = vpack.c.b16 %v2856, %v2854
    %v2947 = vpack.c.b16 %v2859, %v2857
    %v2948 = vpack.c.b16 %v2860, %v2858
    %v2949 = vpack.c.b16 %v2863, %v2861
    %v2950 = vpack.c.b16 %v2864, %v2862
    %v2951 = vpack.c.b16 %v2867, %v2865
    %v2952 = vpack.c.b16 %v2868, %v2866
    %v2953 = vpack.c.b16 %v2871, %v2869
    %v2954 = vpack.c.b16 %v2872, %v2870
    %v2955 = vpack.c.b16 %v2875, %v2873
    %v2956 = vpack.c.b16 %v2876, %v2874
    %v2957 = vpack.c.b16 %v2879, %v2877
    %v2958 = vpack.c.b16 %v2880, %v2878
    %v2959 = vpack.c.b16 %v2883, %v2881
    %v2960 = vpack.c.b16 %v2884, %v2882
    %v2961 = vpack.c.b16 %v2887, %v2885
    %v2962 = vpack.c.b16 %v2888, %v2886
    %v2963 = vpack.c.b16 %v2891, %v2889
    %v2964 = vpack.c.b16 %v2892, %v2890
    %v2965 = vpack.c.b16 %v2895, %v2893
    %v2966 = vpack.c.b16 %v2896, %v2894
    %v2967 = vpack.c.b16 %v2899, %v2897
    %v2968 = vpack.c.b16 %v2900, %v2898
    %v2969 = vpack.c.b16 %v2903, %v2901
    %v2970 = vpack.c.b16 %v2904, %v2902
    %v2971 = vpack.c.b16 %v2907, %v2905
    %v2972 = vpack.c.b16 %v2908, %v2906
    %3037 = vmatpush.bf16.msra.mxu0 %v2923
    %3038 = vmatpush.bf16.msra.mxu0 %v2921
    %3039 = vmatpush.bf16.msra.mxu0 %v2919
    %3040 = vmatpush.bf16.msra.mxu0 %v2917
    %3041 = vmatpush.bf16.msra.mxu0 %v2915
    %3042 = vmatpush.bf16.msra.mxu0 %v2913
    %3043 = vmatpush.bf16.msra.mxu0 %v2911
    %3044 = vmatpush.bf16.msra.mxu0 %v2909
    %3045 = vmatmul.bf16.gmra.mxu0 %v1851
    %v3046 = vpop.f32.mrf.mxu0
    %v3047 = vadd.f32 %v2713, %v3046
    %v3048 = vpop.f32.mrf.mxu0
    %3049 = vdwg.mxu0
    %3050 = vmatpush.bf16.msra.mxu0 %v2939
    %3051 = vmatpush.bf16.msra.mxu0 %v2937
    %3052 = vmatpush.bf16.msra.mxu0 %v2935
    %3053 = vmatpush.bf16.msra.mxu0 %v2933
    %3054 = vmatpush.bf16.msra.mxu0 %v2931
    %3055 = vmatpush.bf16.msra.mxu0 %v2929
    %3056 = vmatpush.bf16.msra.mxu0 %v2927
    %3057 = vmatpush.bf16.msra.mxu0 %v2925
    %3058 = vmatmul.bf16.gmra.mxu0 %v1852
    %v3059 = vpop.f32.mrf.mxu0
    %v3060 = vadd.f32 %v3047, %v3059
    %v3061 = vpop.f32.mrf.mxu0
    %3062 = vdwg.mxu0
    %3063 = vmatpush.bf16.msra.mxu0 %v2955
    %3064 = vmatpush.bf16.msra.mxu0 %v2953
    %3065 = vmatpush.bf16.msra.mxu0 %v2951
    %3066 = vmatpush.bf16.msra.mxu0 %v2949
    %3067 = vmatpush.bf16.msra.mxu0 %v2947
    %3068 = vmatpush.bf16.msra.mxu0 %v2945
    %3069 = vmatpush.bf16.msra.mxu0 %v2943
    %3070 = vmatpush.bf16.msra.mxu0 %v2941
    %3071 = vmatmul.bf16.gmra.mxu0 %v1853
    %v3072 = vpop.f32.mrf.mxu0
    %v3073 = vadd.f32 %v3060, %v3072
    %v3074 = vpop.f32.mrf.mxu0
    %3075 = vdwg.mxu0
    %3076 = vmatpush.bf16.msra.mxu0 %v2971
    %3077 = vmatpush.bf16.msra.mxu0 %v2969
    %3078 = vmatpush.bf16.msra.mxu0 %v2967
    %3079 = vmatpush.bf16.msra.mxu0 %v2965
    %3080 = vmatpush.bf16.msra.mxu0 %v2963
    %3081 = vmatpush.bf16.msra.mxu0 %v2961
    %3082 = vmatpush.bf16.msra.mxu0 %v2959
    %3083 = vmatpush.bf16.msra.mxu0 %v2957
    %3084 = vmatmul.bf16.gmra.mxu0 %v1854
    %v3085 = vpop.f32.mrf.mxu0
    %v3086 = vadd.f32 %v3073, %v3085
    %v3087 = vpop.f32.mrf.mxu0
    %3088 = vdwg.mxu0
    %3089 = vmatpush.bf16.msra.mxu0 %v2924
    %3090 = vmatpush.bf16.msra.mxu0 %v2922
    %3091 = vmatpush.bf16.msra.mxu0 %v2920
    %3092 = vmatpush.bf16.msra.mxu0 %v2918
    %3093 = vmatpush.bf16.msra.mxu0 %v2916
    %3094 = vmatpush.bf16.msra.mxu0 %v2914
    %3095 = vmatpush.bf16.msra.mxu0 %v2912
    %3096 = vmatpush.bf16.msra.mxu0 %v2910
    %3097 = vmatmul.bf16.gmra.mxu0 %v1851
    %v3098 = vpop.f32.mrf.mxu0
    %v3099 = vadd.f32 %v2714, %v3098
    %v3100 = vpop.f32.mrf.mxu0
    %3101 = vdwg.mxu0
    %3102 = vmatpush.bf16.msra.mxu0 %v2940
    %3103 = vmatpush.bf16.msra.mxu0 %v2938
    %3104 = vmatpush.bf16.msra.mxu0 %v2936
    %3105 = vmatpush.bf16.msra.mxu0 %v2934
    %3106 = vmatpush.bf16.msra.mxu0 %v2932
    %3107 = vmatpush.bf16.msra.mxu0 %v2930
    %3108 = vmatpush.bf16.msra.mxu0 %v2928
    %3109 = vmatpush.bf16.msra.mxu0 %v2926
    %3110 = vmatmul.bf16.gmra.mxu0 %v1852
    %v3111 = vpop.f32.mrf.mxu0
    %v3112 = vadd.f32 %v3099, %v3111
    %v3113 = vpop.f32.mrf.mxu0
    %3114 = vdwg.mxu0
    %3115 = vmatpush.bf16.msra.mxu0 %v2956
    %3116 = vmatpush.bf16.msra.mxu0 %v2954
    %3117 = vmatpush.bf16.msra.mxu0 %v2952
    %3118 = vmatpush.bf16.msra.mxu0 %v2950
    %3119 = vmatpush.bf16.msra.mxu0 %v2948
    %3120 = vmatpush.bf16.msra.mxu0 %v2946
    %3121 = vmatpush.bf16.msra.mxu0 %v2944
    %3122 = vmatpush.bf16.msra.mxu0 %v2942
    %3123 = vmatmul.bf16.gmra.mxu0 %v1853
    %v3124 = vpop.f32.mrf.mxu0
    %v3125 = vadd.f32 %v3112, %v3124
    %v3126 = vpop.f32.mrf.mxu0
    %3127 = vdwg.mxu0
    %3128 = vmatpush.bf16.msra.mxu0 %v2972
    %3129 = vmatpush.bf16.msra.mxu0 %v2970
    %3130 = vmatpush.bf16.msra.mxu0 %v2968
    %3131 = vmatpush.bf16.msra.mxu0 %v2966
    %3132 = vmatpush.bf16.msra.mxu0 %v2964
    %3133 = vmatpush.bf16.msra.mxu0 %v2962
    %3134 = vmatpush.bf16.msra.mxu0 %v2960
    %3135 = vmatpush.bf16.msra.mxu0 %v2958
    %3136 = vmatmul.bf16.gmra.mxu0 %v1854
    %v3137 = vpop.f32.mrf.mxu0
    %v3138 = vadd.f32 %v3125, %v3137
    %v3139 = vpop.f32.mrf.mxu0
    %3140 = vdwg.mxu0
    %v3141 = vtanh.pop %v3086
    %v3142 = vtanh.pop %v3138
    %v3143 = vmul.f32 %v3141, %v2131
    %v3144 = vmul.f32 %v3142, %v2144
    %s3145 = scalar_lea.vmem [#allocation7], 1024
    %v3146 = vld [vmem:[%s3145] sm:$0xff]
    %v3147 = vld [vmem:[%s3145 + $0x8] sm:$0xff]
    %v3148 = vld [vmem:[%s3145 + $0x10] sm:$0xff]
    %v3149 = vld [vmem:[%s3145 + $0x18] sm:$0xff]
    %v3150 = vld [vmem:[%s3145 + $0x20] sm:$0xff]
    %v3151 = vld [vmem:[%s3145 + $0x28] sm:$0xff]
    %v3152 = vld [vmem:[%s3145 + $0x30] sm:$0xff]
    %v3153 = vld [vmem:[%s3145 + $0x38] sm:$0xff]
    %v3154 = vld [vmem:[%s3145 + $0x40] sm:$0xff]
    %v3155 = vld [vmem:[%s3145 + $0x48] sm:$0xff]
    %v3156 = vld [vmem:[%s3145 + $0x50] sm:$0xff]
    %v3157 = vld [vmem:[%s3145 + $0x58] sm:$0xff]
    %v3158 = vld [vmem:[%s3145 + $0x60] sm:$0xff]
    %v3159 = vld [vmem:[%s3145 + $0x68] sm:$0xff]
    %v3160 = vld [vmem:[%s3145 + $0x70] sm:$0xff]
    %v3161 = vld [vmem:[%s3145 + $0x78] sm:$0xff]
    %v3162 = vld [vmem:[%s3145 + $0x80] sm:$0xff]
    %v3163 = vld [vmem:[%s3145 + $0x88] sm:$0xff]
    %v3164 = vld [vmem:[%s3145 + $0x90] sm:$0xff]
    %v3165 = vld [vmem:[%s3145 + $0x98] sm:$0xff]
    %v3166 = vld [vmem:[%s3145 + $0xa0] sm:$0xff]
    %v3167 = vld [vmem:[%s3145 + $0xa8] sm:$0xff]
    %v3168 = vld [vmem:[%s3145 + $0xb0] sm:$0xff]
    %v3169 = vld [vmem:[%s3145 + $0xb8] sm:$0xff]
    %v3170 = vld [vmem:[%s3145 + $0xc0] sm:$0xff]
    %v3171 = vld [vmem:[%s3145 + $0xc8] sm:$0xff]
    %v3172 = vld [vmem:[%s3145 + $0xd0] sm:$0xff]
    %v3173 = vld [vmem:[%s3145 + $0xd8] sm:$0xff]
    %v3174 = vld [vmem:[%s3145 + $0xe0] sm:$0xff]
    %v3175 = vld [vmem:[%s3145 + $0xe8] sm:$0xff]
    %v3176 = vld [vmem:[%s3145 + $0xf0] sm:$0xff]
    %v3177 = vld [vmem:[%s3145 + $0xf8] sm:$0xff]
    %v3178 = vld [vmem:[%s3145 + $0x100] sm:$0xff]
    %v3179 = vld [vmem:[%s3145 + $0x108] sm:$0xff]
    %v3180 = vld [vmem:[%s3145 + $0x110] sm:$0xff]
    %v3181 = vld [vmem:[%s3145 + $0x118] sm:$0xff]
    %v3182 = vld [vmem:[%s3145 + $0x120] sm:$0xff]
    %v3183 = vld [vmem:[%s3145 + $0x128] sm:$0xff]
    %v3184 = vld [vmem:[%s3145 + $0x130] sm:$0xff]
    %v3185 = vld [vmem:[%s3145 + $0x138] sm:$0xff]
    %v3186 = vld [vmem:[%s3145 + $0x140] sm:$0xff]
    %v3187 = vld [vmem:[%s3145 + $0x148] sm:$0xff]
    %v3188 = vld [vmem:[%s3145 + $0x150] sm:$0xff]
    %v3189 = vld [vmem:[%s3145 + $0x158] sm:$0xff]
    %v3190 = vld [vmem:[%s3145 + $0x160] sm:$0xff]
    %v3191 = vld [vmem:[%s3145 + $0x168] sm:$0xff]
    %v3192 = vld [vmem:[%s3145 + $0x170] sm:$0xff]
    %v3193 = vld [vmem:[%s3145 + $0x178] sm:$0xff]
    %v3194 = vld [vmem:[%s3145 + $0x180] sm:$0xff]
    %v3195 = vld [vmem:[%s3145 + $0x188] sm:$0xff]
    %v3196 = vld [vmem:[%s3145 + $0x190] sm:$0xff]
    %v3197 = vld [vmem:[%s3145 + $0x198] sm:$0xff]
    %v3198 = vld [vmem:[%s3145 + $0x1a0] sm:$0xff]
    %v3199 = vld [vmem:[%s3145 + $0x1a8] sm:$0xff]
    %v3200 = vld [vmem:[%s3145 + $0x1b0] sm:$0xff]
    %v3201 = vld [vmem:[%s3145 + $0x1b8] sm:$0xff]
    %v3202 = vld [vmem:[%s3145 + $0x1c0] sm:$0xff]
    %v3203 = vld [vmem:[%s3145 + $0x1c8] sm:$0xff]
    %v3204 = vld [vmem:[%s3145 + $0x1d0] sm:$0xff]
    %v3205 = vld [vmem:[%s3145 + $0x1d8] sm:$0xff]
    %v3206 = vld [vmem:[%s3145 + $0x1e0] sm:$0xff]
    %v3207 = vld [vmem:[%s3145 + $0x1e8] sm:$0xff]
    %v3208 = vld [vmem:[%s3145 + $0x1f0] sm:$0xff]
    %v3209 = vld [vmem:[%s3145 + $0x1f8] sm:$0xff]
    %s3210 = scalar_lea.vmem %s13, 4
    %v3211 = vld [vmem:[%s3210] sm:$0x3]
    %v3213 = vperm.slane %v3211, 0
    %v3214 = vperm.slane %v3211, 1
    %v3281 = vunpack.c.l.b16 %v3146
    %v3282 = vunpack.c.h.b16 %v3146
    %v3283 = vunpack.c.l.b16 %v3147
    %v3284 = vunpack.c.h.b16 %v3147
    %v3285 = vunpack.c.l.b16 %v3148
    %v3286 = vunpack.c.h.b16 %v3148
    %v3287 = vunpack.c.l.b16 %v3149
    %v3288 = vunpack.c.h.b16 %v3149
    %v3289 = vunpack.c.l.b16 %v3150
    %v3290 = vunpack.c.h.b16 %v3150
    %v3291 = vunpack.c.l.b16 %v3151
    %v3292 = vunpack.c.h.b16 %v3151
    %v3293 = vunpack.c.l.b16 %v3152
    %v3294 = vunpack.c.h.b16 %v3152
    %v3295 = vunpack.c.l.b16 %v3153
    %v3296 = vunpack.c.h.b16 %v3153
    %v3297 = vunpack.c.l.b16 %v3154
    %v3298 = vunpack.c.h.b16 %v3154
    %v3299 = vunpack.c.l.b16 %v3155
    %v3300 = vunpack.c.h.b16 %v3155
    %v3301 = vunpack.c.l.b16 %v3156
    %v3302 = vunpack.c.h.b16 %v3156
    %v3303 = vunpack.c.l.b16 %v3157
    %v3304 = vunpack.c.h.b16 %v3157
    %v3305 = vunpack.c.l.b16 %v3158
    %v3306 = vunpack.c.h.b16 %v3158
    %v3307 = vunpack.c.l.b16 %v3159
    %v3308 = vunpack.c.h.b16 %v3159
    %v3309 = vunpack.c.l.b16 %v3160
    %v3310 = vunpack.c.h.b16 %v3160
    %v3311 = vunpack.c.l.b16 %v3161
    %v3312 = vunpack.c.h.b16 %v3161
    %v3313 = vunpack.c.l.b16 %v3162
    %v3314 = vunpack.c.h.b16 %v3162
    %v3315 = vunpack.c.l.b16 %v3163
    %v3316 = vunpack.c.h.b16 %v3163
    %v3317 = vunpack.c.l.b16 %v3164
    %v3318 = vunpack.c.h.b16 %v3164
    %v3319 = vunpack.c.l.b16 %v3165
    %v3320 = vunpack.c.h.b16 %v3165
    %v3321 = vunpack.c.l.b16 %v3166
    %v3322 = vunpack.c.h.b16 %v3166
    %v3323 = vunpack.c.l.b16 %v3167
    %v3324 = vunpack.c.h.b16 %v3167
    %v3325 = vunpack.c.l.b16 %v3168
    %v3326 = vunpack.c.h.b16 %v3168
    %v3327 = vunpack.c.l.b16 %v3169
    %v3328 = vunpack.c.h.b16 %v3169
    %v3329 = vunpack.c.l.b16 %v3170
    %v3330 = vunpack.c.h.b16 %v3170
    %v3331 = vunpack.c.l.b16 %v3171
    %v3332 = vunpack.c.h.b16 %v3171
    %v3333 = vunpack.c.l.b16 %v3172
    %v3334 = vunpack.c.h.b16 %v3172
    %v3335 = vunpack.c.l.b16 %v3173
    %v3336 = vunpack.c.h.b16 %v3173
    %v3337 = vunpack.c.l.b16 %v3174
    %v3338 = vunpack.c.h.b16 %v3174
    %v3339 = vunpack.c.l.b16 %v3175
    %v3340 = vunpack.c.h.b16 %v3175
    %v3341 = vunpack.c.l.b16 %v3176
    %v3342 = vunpack.c.h.b16 %v3176
    %v3343 = vunpack.c.l.b16 %v3177
    %v3344 = vunpack.c.h.b16 %v3177
    %v3345 = vunpack.c.l.b16 %v3178
    %v3346 = vunpack.c.h.b16 %v3178
    %v3347 = vunpack.c.l.b16 %v3179
    %v3348 = vunpack.c.h.b16 %v3179
    %v3349 = vunpack.c.l.b16 %v3180
    %v3350 = vunpack.c.h.b16 %v3180
    %v3351 = vunpack.c.l.b16 %v3181
    %v3352 = vunpack.c.h.b16 %v3181
    %v3353 = vunpack.c.l.b16 %v3182
    %v3354 = vunpack.c.h.b16 %v3182
    %v3355 = vunpack.c.l.b16 %v3183
    %v3356 = vunpack.c.h.b16 %v3183
    %v3357 = vunpack.c.l.b16 %v3184
    %v3358 = vunpack.c.h.b16 %v3184
    %v3359 = vunpack.c.l.b16 %v3185
    %v3360 = vunpack.c.h.b16 %v3185
    %v3361 = vunpack.c.l.b16 %v3186
    %v3362 = vunpack.c.h.b16 %v3186
    %v3363 = vunpack.c.l.b16 %v3187
    %v3364 = vunpack.c.h.b16 %v3187
    %v3365 = vunpack.c.l.b16 %v3188
    %v3366 = vunpack.c.h.b16 %v3188
    %v3367 = vunpack.c.l.b16 %v3189
    %v3368 = vunpack.c.h.b16 %v3189
    %v3369 = vunpack.c.l.b16 %v3190
    %v3370 = vunpack.c.h.b16 %v3190
    %v3371 = vunpack.c.l.b16 %v3191
    %v3372 = vunpack.c.h.b16 %v3191
    %v3373 = vunpack.c.l.b16 %v3192
    %v3374 = vunpack.c.h.b16 %v3192
    %v3375 = vunpack.c.l.b16 %v3193
    %v3376 = vunpack.c.h.b16 %v3193
    %v3377 = vunpack.c.l.b16 %v3194
    %v3378 = vunpack.c.h.b16 %v3194
    %v3379 = vunpack.c.l.b16 %v3195
    %v3380 = vunpack.c.h.b16 %v3195
    %v3381 = vunpack.c.l.b16 %v3196
    %v3382 = vunpack.c.h.b16 %v3196
    %v3383 = vunpack.c.l.b16 %v3197
    %v3384 = vunpack.c.h.b16 %v3197
    %v3385 = vunpack.c.l.b16 %v3198
    %v3386 = vunpack.c.h.b16 %v3198
    %v3387 = vunpack.c.l.b16 %v3199
    %v3388 = vunpack.c.h.b16 %v3199
    %v3389 = vunpack.c.l.b16 %v3200
    %v3390 = vunpack.c.h.b16 %v3200
    %v3391 = vunpack.c.l.b16 %v3201
    %v3392 = vunpack.c.h.b16 %v3201
    %v3393 = vunpack.c.l.b16 %v3202
    %v3394 = vunpack.c.h.b16 %v3202
    %v3395 = vunpack.c.l.b16 %v3203
    %v3396 = vunpack.c.h.b16 %v3203
    %v3397 = vunpack.c.l.b16 %v3204
    %v3398 = vunpack.c.h.b16 %v3204
    %v3399 = vunpack.c.l.b16 %v3205
    %v3400 = vunpack.c.h.b16 %v3205
    %v3401 = vunpack.c.l.b16 %v3206
    %v3402 = vunpack.c.h.b16 %v3206
    %v3403 = vunpack.c.l.b16 %v3207
    %v3404 = vunpack.c.h.b16 %v3207
    %v3405 = vunpack.c.l.b16 %v3208
    %v3406 = vunpack.c.h.b16 %v3208
    %v3407 = vunpack.c.l.b16 %v3209
    %v3408 = vunpack.c.h.b16 %v3209
    %v3409 = vpack.c.b16 %v3283, %v3281
    %v3410 = vpack.c.b16 %v3284, %v3282
    %v3411 = vpack.c.b16 %v3287, %v3285
    %v3412 = vpack.c.b16 %v3288, %v3286
    %v3413 = vpack.c.b16 %v3291, %v3289
    %v3414 = vpack.c.b16 %v3292, %v3290
    %v3415 = vpack.c.b16 %v3295, %v3293
    %v3416 = vpack.c.b16 %v3296, %v3294
    %v3417 = vpack.c.b16 %v3299, %v3297
    %v3418 = vpack.c.b16 %v3300, %v3298
    %v3419 = vpack.c.b16 %v3303, %v3301
    %v3420 = vpack.c.b16 %v3304, %v3302
    %v3421 = vpack.c.b16 %v3307, %v3305
    %v3422 = vpack.c.b16 %v3308, %v3306
    %v3423 = vpack.c.b16 %v3311, %v3309
    %v3424 = vpack.c.b16 %v3312, %v3310
    %v3425 = vpack.c.b16 %v3315, %v3313
    %v3426 = vpack.c.b16 %v3316, %v3314
    %v3427 = vpack.c.b16 %v3319, %v3317
    %v3428 = vpack.c.b16 %v3320, %v3318
    %v3429 = vpack.c.b16 %v3323, %v3321
    %v3430 = vpack.c.b16 %v3324, %v3322
    %v3431 = vpack.c.b16 %v3327, %v3325
    %v3432 = vpack.c.b16 %v3328, %v3326
    %v3433 = vpack.c.b16 %v3331, %v3329
    %v3434 = vpack.c.b16 %v3332, %v3330
    %v3435 = vpack.c.b16 %v3335, %v3333
    %v3436 = vpack.c.b16 %v3336, %v3334
    %v3437 = vpack.c.b16 %v3339, %v3337
    %v3438 = vpack.c.b16 %v3340, %v3338
    %v3439 = vpack.c.b16 %v3343, %v3341
    %v3440 = vpack.c.b16 %v3344, %v3342
    %v3441 = vpack.c.b16 %v3347, %v3345
    %v3442 = vpack.c.b16 %v3348, %v3346
    %v3443 = vpack.c.b16 %v3351, %v3349
    %v3444 = vpack.c.b16 %v3352, %v3350
    %v3445 = vpack.c.b16 %v3355, %v3353
    %v3446 = vpack.c.b16 %v3356, %v3354
    %v3447 = vpack.c.b16 %v3359, %v3357
    %v3448 = vpack.c.b16 %v3360, %v3358
    %v3449 = vpack.c.b16 %v3363, %v3361
    %v3450 = vpack.c.b16 %v3364, %v3362
    %v3451 = vpack.c.b16 %v3367, %v3365
    %v3452 = vpack.c.b16 %v3368, %v3366
    %v3453 = vpack.c.b16 %v3371, %v3369
    %v3454 = vpack.c.b16 %v3372, %v3370
    %v3455 = vpack.c.b16 %v3375, %v3373
    %v3456 = vpack.c.b16 %v3376, %v3374
    %v3457 = vpack.c.b16 %v3379, %v3377
    %v3458 = vpack.c.b16 %v3380, %v3378
    %v3459 = vpack.c.b16 %v3383, %v3381
    %v3460 = vpack.c.b16 %v3384, %v3382
    %v3461 = vpack.c.b16 %v3387, %v3385
    %v3462 = vpack.c.b16 %v3388, %v3386
    %v3463 = vpack.c.b16 %v3391, %v3389
    %v3464 = vpack.c.b16 %v3392, %v3390
    %v3465 = vpack.c.b16 %v3395, %v3393
    %v3466 = vpack.c.b16 %v3396, %v3394
    %v3467 = vpack.c.b16 %v3399, %v3397
    %v3468 = vpack.c.b16 %v3400, %v3398
    %v3469 = vpack.c.b16 %v3403, %v3401
    %v3470 = vpack.c.b16 %v3404, %v3402
    %v3471 = vpack.c.b16 %v3407, %v3405
    %v3472 = vpack.c.b16 %v3408, %v3406
    %3537 = vmatpush.bf16.msra.mxu0 %v3423
    %3538 = vmatpush.bf16.msra.mxu0 %v3421
    %3539 = vmatpush.bf16.msra.mxu0 %v3419
    %3540 = vmatpush.bf16.msra.mxu0 %v3417
    %3541 = vmatpush.bf16.msra.mxu0 %v3415
    %3542 = vmatpush.bf16.msra.mxu0 %v3413
    %3543 = vmatpush.bf16.msra.mxu0 %v3411
    %3544 = vmatpush.bf16.msra.mxu0 %v3409
    %3545 = vmatmul.bf16.gmra.mxu0 %v1851
    %v3546 = vpop.f32.mrf.mxu0
    %v3547 = vadd.f32 %v3213, %v3546
    %v3548 = vpop.f32.mrf.mxu0
    %3549 = vdwg.mxu0
    %3550 = vmatpush.bf16.msra.mxu0 %v3439
    %3551 = vmatpush.bf16.msra.mxu0 %v3437
    %3552 = vmatpush.bf16.msra.mxu0 %v3435
    %3553 = vmatpush.bf16.msra.mxu0 %v3433
    %3554 = vmatpush.bf16.msra.mxu0 %v3431
    %3555 = vmatpush.bf16.msra.mxu0 %v3429
    %3556 = vmatpush.bf16.msra.mxu0 %v3427
    %3557 = vmatpush.bf16.msra.mxu0 %v3425
    %3558 = vmatmul.bf16.gmra.mxu0 %v1852
    %v3559 = vpop.f32.mrf.mxu0
    %v3560 = vadd.f32 %v3547, %v3559
    %v3561 = vpop.f32.mrf.mxu0
    %3562 = vdwg.mxu0
    %3563 = vmatpush.bf16.msra.mxu0 %v3455
    %3564 = vmatpush.bf16.msra.mxu0 %v3453
    %3565 = vmatpush.bf16.msra.mxu0 %v3451
    %3566 = vmatpush.bf16.msra.mxu0 %v3449
    %3567 = vmatpush.bf16.msra.mxu0 %v3447
    %3568 = vmatpush.bf16.msra.mxu0 %v3445
    %3569 = vmatpush.bf16.msra.mxu0 %v3443
    %3570 = vmatpush.bf16.msra.mxu0 %v3441
    %3571 = vmatmul.bf16.gmra.mxu0 %v1853
    %v3572 = vpop.f32.mrf.mxu0
    %v3573 = vadd.f32 %v3560, %v3572
    %v3574 = vpop.f32.mrf.mxu0
    %3575 = vdwg.mxu0
    %3576 = vmatpush.bf16.msra.mxu0 %v3471
    %3577 = vmatpush.bf16.msra.mxu0 %v3469
    %3578 = vmatpush.bf16.msra.mxu0 %v3467
    %3579 = vmatpush.bf16.msra.mxu0 %v3465
    %3580 = vmatpush.bf16.msra.mxu0 %v3463
    %3581 = vmatpush.bf16.msra.mxu0 %v3461
    %3582 = vmatpush.bf16.msra.mxu0 %v3459
    %3583 = vmatpush.bf16.msra.mxu0 %v3457
    %3584 = vmatmul.bf16.gmra.mxu0 %v1854
    %v3585 = vpop.f32.mrf.mxu0
    %v3586 = vadd.f32 %v3573, %v3585
    %v3587 = vpop.f32.mrf.mxu0
    %3588 = vdwg.mxu0
    %3589 = vmatpush.bf16.msra.mxu0 %v3424
    %3590 = vmatpush.bf16.msra.mxu0 %v3422
    %3591 = vmatpush.bf16.msra.mxu0 %v3420
    %3592 = vmatpush.bf16.msra.mxu0 %v3418
    %3593 = vmatpush.bf16.msra.mxu0 %v3416
    %3594 = vmatpush.bf16.msra.mxu0 %v3414
    %3595 = vmatpush.bf16.msra.mxu0 %v3412
    %3596 = vmatpush.bf16.msra.mxu0 %v3410
    %3597 = vmatmul.bf16.gmra.mxu0 %v1851
    %v3598 = vpop.f32.mrf.mxu0
    %v3599 = vadd.f32 %v3214, %v3598
    %v3600 = vpop.f32.mrf.mxu0
    %3601 = vdwg.mxu0
    %3602 = vmatpush.bf16.msra.mxu0 %v3440
    %3603 = vmatpush.bf16.msra.mxu0 %v3438
    %3604 = vmatpush.bf16.msra.mxu0 %v3436
    %3605 = vmatpush.bf16.msra.mxu0 %v3434
    %3606 = vmatpush.bf16.msra.mxu0 %v3432
    %3607 = vmatpush.bf16.msra.mxu0 %v3430
    %3608 = vmatpush.bf16.msra.mxu0 %v3428
    %3609 = vmatpush.bf16.msra.mxu0 %v3426
    %3610 = vmatmul.bf16.gmra.mxu0 %v1852
    %v3611 = vpop.f32.mrf.mxu0
    %v3612 = vadd.f32 %v3599, %v3611
    %v3613 = vpop.f32.mrf.mxu0
    %3614 = vdwg.mxu0
    %3615 = vmatpush.bf16.msra.mxu0 %v3456
    %3616 = vmatpush.bf16.msra.mxu0 %v3454
    %3617 = vmatpush.bf16.msra.mxu0 %v3452
    %3618 = vmatpush.bf16.msra.mxu0 %v3450
    %3619 = vmatpush.bf16.msra.mxu0 %v3448
    %3620 = vmatpush.bf16.msra.mxu0 %v3446
    %3621 = vmatpush.bf16.msra.mxu0 %v3444
    %3622 = vmatpush.bf16.msra.mxu0 %v3442
    %3623 = vmatmul.bf16.gmra.mxu0 %v1853
    %v3624 = vpop.f32.mrf.mxu0
    %v3625 = vadd.f32 %v3612, %v3624
    %v3626 = vpop.f32.mrf.mxu0
    %3627 = vdwg.mxu0
    %3628 = vmatpush.bf16.msra.mxu0 %v3472
    %3629 = vmatpush.bf16.msra.mxu0 %v3470
    %3630 = vmatpush.bf16.msra.mxu0 %v3468
    %3631 = vmatpush.bf16.msra.mxu0 %v3466
    %3632 = vmatpush.bf16.msra.mxu0 %v3464
    %3633 = vmatpush.bf16.msra.mxu0 %v3462
    %3634 = vmatpush.bf16.msra.mxu0 %v3460
    %3635 = vmatpush.bf16.msra.mxu0 %v3458
    %3636 = vmatmul.bf16.gmra.mxu0 %v1854
    %v3637 = vpop.f32.mrf.mxu0
    %v3638 = vadd.f32 %v3625, %v3637
    %v3639 = vpop.f32.mrf.mxu0
    %3640 = vdwg.mxu0
    %v3641 = vtanh.pop %v3586
    %v3642 = vtanh.pop %v3638
    %v3643 = vmul.f32 %v3641, %v2131
    %v3644 = vmul.f32 %v3642, %v2144
    %s3645 = scalar_lea.vmem [#allocation7], 1536
    %v3646 = vld [vmem:[%s3645] sm:$0xff]
    %v3647 = vld [vmem:[%s3645 + $0x8] sm:$0xff]
    %v3648 = vld [vmem:[%s3645 + $0x10] sm:$0xff]
    %v3649 = vld [vmem:[%s3645 + $0x18] sm:$0xff]
    %v3650 = vld [vmem:[%s3645 + $0x20] sm:$0xff]
    %v3651 = vld [vmem:[%s3645 + $0x28] sm:$0xff]
    %v3652 = vld [vmem:[%s3645 + $0x30] sm:$0xff]
    %v3653 = vld [vmem:[%s3645 + $0x38] sm:$0xff]
    %v3654 = vld [vmem:[%s3645 + $0x40] sm:$0xff]
    %v3655 = vld [vmem:[%s3645 + $0x48] sm:$0xff]
    %v3656 = vld [vmem:[%s3645 + $0x50] sm:$0xff]
    %v3657 = vld [vmem:[%s3645 + $0x58] sm:$0xff]
    %v3658 = vld [vmem:[%s3645 + $0x60] sm:$0xff]
    %v3659 = vld [vmem:[%s3645 + $0x68] sm:$0xff]
    %v3660 = vld [vmem:[%s3645 + $0x70] sm:$0xff]
    %v3661 = vld [vmem:[%s3645 + $0x78] sm:$0xff]
    %v3662 = vld [vmem:[%s3645 + $0x80] sm:$0xff]
    %v3663 = vld [vmem:[%s3645 + $0x88] sm:$0xff]
    %v3664 = vld [vmem:[%s3645 + $0x90] sm:$0xff]
    %v3665 = vld [vmem:[%s3645 + $0x98] sm:$0xff]
    %v3666 = vld [vmem:[%s3645 + $0xa0] sm:$0xff]
    %v3667 = vld [vmem:[%s3645 + $0xa8] sm:$0xff]
    %v3668 = vld [vmem:[%s3645 + $0xb0] sm:$0xff]
    %v3669 = vld [vmem:[%s3645 + $0xb8] sm:$0xff]
    %v3670 = vld [vmem:[%s3645 + $0xc0] sm:$0xff]
    %v3671 = vld [vmem:[%s3645 + $0xc8] sm:$0xff]
    %v3672 = vld [vmem:[%s3645 + $0xd0] sm:$0xff]
    %v3673 = vld [vmem:[%s3645 + $0xd8] sm:$0xff]
    %v3674 = vld [vmem:[%s3645 + $0xe0] sm:$0xff]
    %v3675 = vld [vmem:[%s3645 + $0xe8] sm:$0xff]
    %v3676 = vld [vmem:[%s3645 + $0xf0] sm:$0xff]
    %v3677 = vld [vmem:[%s3645 + $0xf8] sm:$0xff]
    %v3678 = vld [vmem:[%s3645 + $0x100] sm:$0xff]
    %v3679 = vld [vmem:[%s3645 + $0x108] sm:$0xff]
    %v3680 = vld [vmem:[%s3645 + $0x110] sm:$0xff]
    %v3681 = vld [vmem:[%s3645 + $0x118] sm:$0xff]
    %v3682 = vld [vmem:[%s3645 + $0x120] sm:$0xff]
    %v3683 = vld [vmem:[%s3645 + $0x128] sm:$0xff]
    %v3684 = vld [vmem:[%s3645 + $0x130] sm:$0xff]
    %v3685 = vld [vmem:[%s3645 + $0x138] sm:$0xff]
    %v3686 = vld [vmem:[%s3645 + $0x140] sm:$0xff]
    %v3687 = vld [vmem:[%s3645 + $0x148] sm:$0xff]
    %v3688 = vld [vmem:[%s3645 + $0x150] sm:$0xff]
    %v3689 = vld [vmem:[%s3645 + $0x158] sm:$0xff]
    %v3690 = vld [vmem:[%s3645 + $0x160] sm:$0xff]
    %v3691 = vld [vmem:[%s3645 + $0x168] sm:$0xff]
    %v3692 = vld [vmem:[%s3645 + $0x170] sm:$0xff]
    %v3693 = vld [vmem:[%s3645 + $0x178] sm:$0xff]
    %v3694 = vld [vmem:[%s3645 + $0x180] sm:$0xff]
    %v3695 = vld [vmem:[%s3645 + $0x188] sm:$0xff]
    %v3696 = vld [vmem:[%s3645 + $0x190] sm:$0xff]
    %v3697 = vld [vmem:[%s3645 + $0x198] sm:$0xff]
    %v3698 = vld [vmem:[%s3645 + $0x1a0] sm:$0xff]
    %v3699 = vld [vmem:[%s3645 + $0x1a8] sm:$0xff]
    %v3700 = vld [vmem:[%s3645 + $0x1b0] sm:$0xff]
    %v3701 = vld [vmem:[%s3645 + $0x1b8] sm:$0xff]
    %v3702 = vld [vmem:[%s3645 + $0x1c0] sm:$0xff]
    %v3703 = vld [vmem:[%s3645 + $0x1c8] sm:$0xff]
    %v3704 = vld [vmem:[%s3645 + $0x1d0] sm:$0xff]
    %v3705 = vld [vmem:[%s3645 + $0x1d8] sm:$0xff]
    %v3706 = vld [vmem:[%s3645 + $0x1e0] sm:$0xff]
    %v3707 = vld [vmem:[%s3645 + $0x1e8] sm:$0xff]
    %v3708 = vld [vmem:[%s3645 + $0x1f0] sm:$0xff]
    %v3709 = vld [vmem:[%s3645 + $0x1f8] sm:$0xff]
    %s3710 = scalar_lea.vmem %s13, 6
    %v3711 = vld [vmem:[%s3710] sm:$0x3]
    %v3713 = vperm.slane %v3711, 0
    %v3714 = vperm.slane %v3711, 1
    %v3781 = vunpack.c.l.b16 %v3646
    %v3782 = vunpack.c.h.b16 %v3646
    %v3783 = vunpack.c.l.b16 %v3647
    %v3784 = vunpack.c.h.b16 %v3647
    %v3785 = vunpack.c.l.b16 %v3648
    %v3786 = vunpack.c.h.b16 %v3648
    %v3787 = vunpack.c.l.b16 %v3649
    %v3788 = vunpack.c.h.b16 %v3649
    %v3789 = vunpack.c.l.b16 %v3650
    %v3790 = vunpack.c.h.b16 %v3650
    %v3791 = vunpack.c.l.b16 %v3651
    %v3792 = vunpack.c.h.b16 %v3651
    %v3793 = vunpack.c.l.b16 %v3652
    %v3794 = vunpack.c.h.b16 %v3652
    %v3795 = vunpack.c.l.b16 %v3653
    %v3796 = vunpack.c.h.b16 %v3653
    %v3797 = vunpack.c.l.b16 %v3654
    %v3798 = vunpack.c.h.b16 %v3654
    %v3799 = vunpack.c.l.b16 %v3655
    %v3800 = vunpack.c.h.b16 %v3655
    %v3801 = vunpack.c.l.b16 %v3656
    %v3802 = vunpack.c.h.b16 %v3656
    %v3803 = vunpack.c.l.b16 %v3657
    %v3804 = vunpack.c.h.b16 %v3657
    %v3805 = vunpack.c.l.b16 %v3658
    %v3806 = vunpack.c.h.b16 %v3658
    %v3807 = vunpack.c.l.b16 %v3659
    %v3808 = vunpack.c.h.b16 %v3659
    %v3809 = vunpack.c.l.b16 %v3660
    %v3810 = vunpack.c.h.b16 %v3660
    %v3811 = vunpack.c.l.b16 %v3661
    %v3812 = vunpack.c.h.b16 %v3661
    %v3813 = vunpack.c.l.b16 %v3662
    %v3814 = vunpack.c.h.b16 %v3662
    %v3815 = vunpack.c.l.b16 %v3663
    %v3816 = vunpack.c.h.b16 %v3663
    %v3817 = vunpack.c.l.b16 %v3664
    %v3818 = vunpack.c.h.b16 %v3664
    %v3819 = vunpack.c.l.b16 %v3665
    %v3820 = vunpack.c.h.b16 %v3665
    %v3821 = vunpack.c.l.b16 %v3666
    %v3822 = vunpack.c.h.b16 %v3666
    %v3823 = vunpack.c.l.b16 %v3667
    %v3824 = vunpack.c.h.b16 %v3667
    %v3825 = vunpack.c.l.b16 %v3668
    %v3826 = vunpack.c.h.b16 %v3668
    %v3827 = vunpack.c.l.b16 %v3669
    %v3828 = vunpack.c.h.b16 %v3669
    %v3829 = vunpack.c.l.b16 %v3670
    %v3830 = vunpack.c.h.b16 %v3670
    %v3831 = vunpack.c.l.b16 %v3671
    %v3832 = vunpack.c.h.b16 %v3671
    %v3833 = vunpack.c.l.b16 %v3672
    %v3834 = vunpack.c.h.b16 %v3672
    %v3835 = vunpack.c.l.b16 %v3673
    %v3836 = vunpack.c.h.b16 %v3673
    %v3837 = vunpack.c.l.b16 %v3674
    %v3838 = vunpack.c.h.b16 %v3674
    %v3839 = vunpack.c.l.b16 %v3675
    %v3840 = vunpack.c.h.b16 %v3675
    %v3841 = vunpack.c.l.b16 %v3676
    %v3842 = vunpack.c.h.b16 %v3676
    %v3843 = vunpack.c.l.b16 %v3677
    %v3844 = vunpack.c.h.b16 %v3677
    %v3845 = vunpack.c.l.b16 %v3678
    %v3846 = vunpack.c.h.b16 %v3678
    %v3847 = vunpack.c.l.b16 %v3679
    %v3848 = vunpack.c.h.b16 %v3679
    %v3849 = vunpack.c.l.b16 %v3680
    %v3850 = vunpack.c.h.b16 %v3680
    %v3851 = vunpack.c.l.b16 %v3681
    %v3852 = vunpack.c.h.b16 %v3681
    %v3853 = vunpack.c.l.b16 %v3682
    %v3854 = vunpack.c.h.b16 %v3682
    %v3855 = vunpack.c.l.b16 %v3683
    %v3856 = vunpack.c.h.b16 %v3683
    %v3857 = vunpack.c.l.b16 %v3684
    %v3858 = vunpack.c.h.b16 %v3684
    %v3859 = vunpack.c.l.b16 %v3685
    %v3860 = vunpack.c.h.b16 %v3685
    %v3861 = vunpack.c.l.b16 %v3686
    %v3862 = vunpack.c.h.b16 %v3686
    %v3863 = vunpack.c.l.b16 %v3687
    %v3864 = vunpack.c.h.b16 %v3687
    %v3865 = vunpack.c.l.b16 %v3688
    %v3866 = vunpack.c.h.b16 %v3688
    %v3867 = vunpack.c.l.b16 %v3689
    %v3868 = vunpack.c.h.b16 %v3689
    %v3869 = vunpack.c.l.b16 %v3690
    %v3870 = vunpack.c.h.b16 %v3690
    %v3871 = vunpack.c.l.b16 %v3691
    %v3872 = vunpack.c.h.b16 %v3691
    %v3873 = vunpack.c.l.b16 %v3692
    %v3874 = vunpack.c.h.b16 %v3692
    %v3875 = vunpack.c.l.b16 %v3693
    %v3876 = vunpack.c.h.b16 %v3693
    %v3877 = vunpack.c.l.b16 %v3694
    %v3878 = vunpack.c.h.b16 %v3694
    %v3879 = vunpack.c.l.b16 %v3695
    %v3880 = vunpack.c.h.b16 %v3695
    %v3881 = vunpack.c.l.b16 %v3696
    %v3882 = vunpack.c.h.b16 %v3696
    %v3883 = vunpack.c.l.b16 %v3697
    %v3884 = vunpack.c.h.b16 %v3697
    %v3885 = vunpack.c.l.b16 %v3698
    %v3886 = vunpack.c.h.b16 %v3698
    %v3887 = vunpack.c.l.b16 %v3699
    %v3888 = vunpack.c.h.b16 %v3699
    %v3889 = vunpack.c.l.b16 %v3700
    %v3890 = vunpack.c.h.b16 %v3700
    %v3891 = vunpack.c.l.b16 %v3701
    %v3892 = vunpack.c.h.b16 %v3701
    %v3893 = vunpack.c.l.b16 %v3702
    %v3894 = vunpack.c.h.b16 %v3702
    %v3895 = vunpack.c.l.b16 %v3703
    %v3896 = vunpack.c.h.b16 %v3703
    %v3897 = vunpack.c.l.b16 %v3704
    %v3898 = vunpack.c.h.b16 %v3704
    %v3899 = vunpack.c.l.b16 %v3705
    %v3900 = vunpack.c.h.b16 %v3705
    %v3901 = vunpack.c.l.b16 %v3706
    %v3902 = vunpack.c.h.b16 %v3706
    %v3903 = vunpack.c.l.b16 %v3707
    %v3904 = vunpack.c.h.b16 %v3707
    %v3905 = vunpack.c.l.b16 %v3708
    %v3906 = vunpack.c.h.b16 %v3708
    %v3907 = vunpack.c.l.b16 %v3709
    %v3908 = vunpack.c.h.b16 %v3709
    %v3909 = vpack.c.b16 %v3783, %v3781
    %v3910 = vpack.c.b16 %v3784, %v3782
    %v3911 = vpack.c.b16 %v3787, %v3785
    %v3912 = vpack.c.b16 %v3788, %v3786
    %v3913 = vpack.c.b16 %v3791, %v3789
    %v3914 = vpack.c.b16 %v3792, %v3790
    %v3915 = vpack.c.b16 %v3795, %v3793
    %v3916 = vpack.c.b16 %v3796, %v3794
    %v3917 = vpack.c.b16 %v3799, %v3797
    %v3918 = vpack.c.b16 %v3800, %v3798
    %v3919 = vpack.c.b16 %v3803, %v3801
    %v3920 = vpack.c.b16 %v3804, %v3802
    %v3921 = vpack.c.b16 %v3807, %v3805
    %v3922 = vpack.c.b16 %v3808, %v3806
    %v3923 = vpack.c.b16 %v3811, %v3809
    %v3924 = vpack.c.b16 %v3812, %v3810
    %v3925 = vpack.c.b16 %v3815, %v3813
    %v3926 = vpack.c.b16 %v3816, %v3814
    %v3927 = vpack.c.b16 %v3819, %v3817
    %v3928 = vpack.c.b16 %v3820, %v3818
    %v3929 = vpack.c.b16 %v3823, %v3821
    %v3930 = vpack.c.b16 %v3824, %v3822
    %v3931 = vpack.c.b16 %v3827, %v3825
    %v3932 = vpack.c.b16 %v3828, %v3826
    %v3933 = vpack.c.b16 %v3831, %v3829
    %v3934 = vpack.c.b16 %v3832, %v3830
    %v3935 = vpack.c.b16 %v3835, %v3833
    %v3936 = vpack.c.b16 %v3836, %v3834
    %v3937 = vpack.c.b16 %v3839, %v3837
    %v3938 = vpack.c.b16 %v3840, %v3838
    %v3939 = vpack.c.b16 %v3843, %v3841
    %v3940 = vpack.c.b16 %v3844, %v3842
    %v3941 = vpack.c.b16 %v3847, %v3845
    %v3942 = vpack.c.b16 %v3848, %v3846
    %v3943 = vpack.c.b16 %v3851, %v3849
    %v3944 = vpack.c.b16 %v3852, %v3850
    %v3945 = vpack.c.b16 %v3855, %v3853
    %v3946 = vpack.c.b16 %v3856, %v3854
    %v3947 = vpack.c.b16 %v3859, %v3857
    %v3948 = vpack.c.b16 %v3860, %v3858
    %v3949 = vpack.c.b16 %v3863, %v3861
    %v3950 = vpack.c.b16 %v3864, %v3862
    %v3951 = vpack.c.b16 %v3867, %v3865
    %v3952 = vpack.c.b16 %v3868, %v3866
    %v3953 = vpack.c.b16 %v3871, %v3869
    %v3954 = vpack.c.b16 %v3872, %v3870
    %v3955 = vpack.c.b16 %v3875, %v3873
    %v3956 = vpack.c.b16 %v3876, %v3874
    %v3957 = vpack.c.b16 %v3879, %v3877
    %v3958 = vpack.c.b16 %v3880, %v3878
    %v3959 = vpack.c.b16 %v3883, %v3881
    %v3960 = vpack.c.b16 %v3884, %v3882
    %v3961 = vpack.c.b16 %v3887, %v3885
    %v3962 = vpack.c.b16 %v3888, %v3886
    %v3963 = vpack.c.b16 %v3891, %v3889
    %v3964 = vpack.c.b16 %v3892, %v3890
    %v3965 = vpack.c.b16 %v3895, %v3893
    %v3966 = vpack.c.b16 %v3896, %v3894
    %v3967 = vpack.c.b16 %v3899, %v3897
    %v3968 = vpack.c.b16 %v3900, %v3898
    %v3969 = vpack.c.b16 %v3903, %v3901
    %v3970 = vpack.c.b16 %v3904, %v3902
    %v3971 = vpack.c.b16 %v3907, %v3905
    %v3972 = vpack.c.b16 %v3908, %v3906
    %4037 = vmatpush.bf16.msra.mxu0 %v3923
    %4038 = vmatpush.bf16.msra.mxu0 %v3921
    %4039 = vmatpush.bf16.msra.mxu0 %v3919
    %4040 = vmatpush.bf16.msra.mxu0 %v3917
    %4041 = vmatpush.bf16.msra.mxu0 %v3915
    %4042 = vmatpush.bf16.msra.mxu0 %v3913
    %4043 = vmatpush.bf16.msra.mxu0 %v3911
    %4044 = vmatpush.bf16.msra.mxu0 %v3909
    %4045 = vmatmul.bf16.gmra.mxu0 %v1851
    %v4046 = vpop.f32.mrf.mxu0
    %v4047 = vadd.f32 %v3713, %v4046
    %v4048 = vpop.f32.mrf.mxu0
    %4049 = vdwg.mxu0
    %4050 = vmatpush.bf16.msra.mxu0 %v3939
    %4051 = vmatpush.bf16.msra.mxu0 %v3937
    %4052 = vmatpush.bf16.msra.mxu0 %v3935
    %4053 = vmatpush.bf16.msra.mxu0 %v3933
    %4054 = vmatpush.bf16.msra.mxu0 %v3931
    %4055 = vmatpush.bf16.msra.mxu0 %v3929
    %4056 = vmatpush.bf16.msra.mxu0 %v3927
    %4057 = vmatpush.bf16.msra.mxu0 %v3925
    %4058 = vmatmul.bf16.gmra.mxu0 %v1852
    %v4059 = vpop.f32.mrf.mxu0
    %v4060 = vadd.f32 %v4047, %v4059
    %v4061 = vpop.f32.mrf.mxu0
    %4062 = vdwg.mxu0
    %4063 = vmatpush.bf16.msra.mxu0 %v3955
    %4064 = vmatpush.bf16.msra.mxu0 %v3953
    %4065 = vmatpush.bf16.msra.mxu0 %v3951
    %4066 = vmatpush.bf16.msra.mxu0 %v3949
    %4067 = vmatpush.bf16.msra.mxu0 %v3947
    %4068 = vmatpush.bf16.msra.mxu0 %v3945
    %4069 = vmatpush.bf16.msra.mxu0 %v3943
    %4070 = vmatpush.bf16.msra.mxu0 %v3941
    %4071 = vmatmul.bf16.gmra.mxu0 %v1853
    %v4072 = vpop.f32.mrf.mxu0
    %v4073 = vadd.f32 %v4060, %v4072
    %v4074 = vpop.f32.mrf.mxu0
    %4075 = vdwg.mxu0
    %4076 = vmatpush.bf16.msra.mxu0 %v3971
    %4077 = vmatpush.bf16.msra.mxu0 %v3969
    %4078 = vmatpush.bf16.msra.mxu0 %v3967
    %4079 = vmatpush.bf16.msra.mxu0 %v3965
    %4080 = vmatpush.bf16.msra.mxu0 %v3963
    %4081 = vmatpush.bf16.msra.mxu0 %v3961
    %4082 = vmatpush.bf16.msra.mxu0 %v3959
    %4083 = vmatpush.bf16.msra.mxu0 %v3957
    %4084 = vmatmul.bf16.gmra.mxu0 %v1854
    %v4085 = vpop.f32.mrf.mxu0
    %v4086 = vadd.f32 %v4073, %v4085
    %v4087 = vpop.f32.mrf.mxu0
    %4088 = vdwg.mxu0
    %4089 = vmatpush.bf16.msra.mxu0 %v3924
    %4090 = vmatpush.bf16.msra.mxu0 %v3922
    %4091 = vmatpush.bf16.msra.mxu0 %v3920
    %4092 = vmatpush.bf16.msra.mxu0 %v3918
    %4093 = vmatpush.bf16.msra.mxu0 %v3916
    %4094 = vmatpush.bf16.msra.mxu0 %v3914
    %4095 = vmatpush.bf16.msra.mxu0 %v3912
    %4096 = vmatpush.bf16.msra.mxu0 %v3910
    %4097 = vmatmul.bf16.gmra.mxu0 %v1851
    %v4098 = vpop.f32.mrf.mxu0
    %v4099 = vadd.f32 %v3714, %v4098
    %v4100 = vpop.f32.mrf.mxu0
    %4101 = vdwg.mxu0
    %4102 = vmatpush.bf16.msra.mxu0 %v3940
    %4103 = vmatpush.bf16.msra.mxu0 %v3938
    %4104 = vmatpush.bf16.msra.mxu0 %v3936
    %4105 = vmatpush.bf16.msra.mxu0 %v3934
    %4106 = vmatpush.bf16.msra.mxu0 %v3932
    %4107 = vmatpush.bf16.msra.mxu0 %v3930
    %4108 = vmatpush.bf16.msra.mxu0 %v3928
    %4109 = vmatpush.bf16.msra.mxu0 %v3926
    %4110 = vmatmul.bf16.gmra.mxu0 %v1852
    %v4111 = vpop.f32.mrf.mxu0
    %v4112 = vadd.f32 %v4099, %v4111
    %v4113 = vpop.f32.mrf.mxu0
    %4114 = vdwg.mxu0
    %4115 = vmatpush.bf16.msra.mxu0 %v3956
    %4116 = vmatpush.bf16.msra.mxu0 %v3954
    %4117 = vmatpush.bf16.msra.mxu0 %v3952
    %4118 = vmatpush.bf16.msra.mxu0 %v3950
    %4119 = vmatpush.bf16.msra.mxu0 %v3948
    %4120 = vmatpush.bf16.msra.mxu0 %v3946
    %4121 = vmatpush.bf16.msra.mxu0 %v3944
    %4122 = vmatpush.bf16.msra.mxu0 %v3942
    %4123 = vmatmul.bf16.gmra.mxu0 %v1853
    %v4124 = vpop.f32.mrf.mxu0
    %v4125 = vadd.f32 %v4112, %v4124
    %v4126 = vpop.f32.mrf.mxu0
    %4127 = vdwg.mxu0
    %4128 = vmatpush.bf16.msra.mxu0 %v3972
    %4129 = vmatpush.bf16.msra.mxu0 %v3970
    %4130 = vmatpush.bf16.msra.mxu0 %v3968
    %4131 = vmatpush.bf16.msra.mxu0 %v3966
    %4132 = vmatpush.bf16.msra.mxu0 %v3964
    %4133 = vmatpush.bf16.msra.mxu0 %v3962
    %4134 = vmatpush.bf16.msra.mxu0 %v3960
    %4135 = vmatpush.bf16.msra.mxu0 %v3958
    %4136 = vmatmul.bf16.gmra.mxu0 %v1854
    %v4137 = vpop.f32.mrf.mxu0
    %v4138 = vadd.f32 %v4125, %v4137
    %v4139 = vpop.f32.mrf.mxu0
    %4140 = vdwg.mxu0
    %v4141 = vtanh.pop %v4086
    %v4142 = vtanh.pop %v4138
    %v4143 = vmul.f32 %v4141, %v2131
    %v4144 = vmul.f32 %v4142, %v2144
    %v4153 = vrot.slane %v2644, 6
    %v4154 = vrot.slane %v3143, 4
    %v4155 = vrot.slane %v3144, 2
    %v4156 = vrot.slane %v3644, 6
    %v4157 = vrot.slane %v4143, 4
    %v4158 = vrot.slane %v4144, 2
    %vm4159 = vcmask 1041408
    %v4160 = vsel %vm4159, %v2643, %v4153
    %vm4161 = vcmask 1045508
    %v4162 = vsel %vm4161, %v4154, %v4155
    %vm4163 = vcmask 1043456
    %v4164 = vsel %vm4163, %v4160, %v4162
    %v4165 = vsel %vm4159, %v3643, %v4156
    %v4166 = vsel %vm4161, %v4157, %v4158
    %v4167 = vsel %vm4163, %v4165, %v4166
    %4170 = vst [vmem:[%s14] sm:$0xff] %v4164
    %4171 = vst [vmem:[%s14 + $0x8] sm:$0xff] %v4167
    // Predicated region
    $region74: #{segment_generator_forward.3} parent=1 // pred_check
      _
    $region75: #{segment_generator_forward.3} parent=1 // pred_check_branch
      %4173 = sbr.rel (0) target = $region77
    $region76: #{segment_generator_forward.3} parent=1 // pred_region
      _
    $region77: #{segment_generator_forward.3} parent=1 // pred_fallthru
      _
    // Predicated region
    $region78: #{segment_generator_forward.3} parent=1 // pred_check
      _
    $region79: #{segment_generator_forward.3} parent=1 // pred_check_branch
      %4175 = sbr.rel (0) target = $region81
    $region80: #{segment_generator_forward.3} parent=1 // pred_region
      _
    $region81: #{segment_generator_forward.3} parent=1 // pred_fallthru
      _
    %4176 = vsyncpa [#allocation3], 1
    %4177 = vsyncpa [#allocation5], 1
    %4178 = vsyncpa [#allocation8], 1

// kernel: reverse.3
$region0: #{reverse.3}
  %s0 = inlined_call_operand.vmem [shape: f32[2,4,256], index: 0, kind: input, shape index: {}]
  %s1 = inlined_call_operand.vmem [shape: f32[2,4,256], index: 1, kind: output, shape index: {}]
  %v2 = vlaneseq
  %v3 = vsub.s32 127, %v2
  %4 = vset.pattern.permute.xlu0 %v3
  $region1: #{reverse.3} parent=0
    #allocation0 [shape = 'u8[8192]{0}', space=vmem, size = 0x2000, scoped, tag = 'operand span for operand 0']
    #allocation1 [shape = 'u8[8192]{0}', space=vmem, size = 0x2000, scoped, tag = 'packed  for operand 0']
    #allocation2 [shape = 'u8[8192]{0}', space=vmem, size = 0x2000, scoped, tag = 'operand span for operand 1']
    #allocation3 [shape = 'u8[8192]{0}', space=vmem, size = 0x2000, scoped, tag = 'packed  for operand 1']
    loop: start=0, step=1, limit=4
    $region2: #{reverse.3} parent=1 // loop_pre_header
      _
    $region3: #{reverse.3} parent=1 // loop_header
      %s6 = sphi 0, %s10
      %p7 = scmp.ge.s32.totalorder %s6, 4
      %s13 = sphi 0, %s32
      %s14 = sphi 0, %s28
      %s15 = sphi 0, %s24
      %s16 = sphi 0, %s13
      %s17 = sphi 0, %s14
      %s18 = sphi 0, %s15
      %s19 = sphi 0, %s16
      %s20 = sphi 0, %s17
      %s21 = sphi 0, %s18
    $region4: #{reverse.3} parent=1 // loop_header_branch
      %9 = sbr.rel (%p7) target = $region8
    $region5: #{reverse.3} parent=1 // loop_body
      %s11 = ssub.s32 %s6, 1
      %s12 = ssub.s32 %s6, 2
      %s22 = sadd.s32 1, %s15
      %p23 = scmp.ge.s32.totalorder %s22, 2
      %s24 = scalar_select %p23, 0, %s22
      %s25 = sadd.s32 1, %s14
      %s26 = scalar_select %p23, %s25, %s14
      %p27 = scmp.ge.s32.totalorder %s26, 1
      %s28 = scalar_select %p27, 0, %s26
      %s29 = sadd.s32 1, %s13
      %s30 = scalar_select %p27, %s29, %s13
      %p31 = scmp.ge.s32.totalorder %s30, 1
      %s32 = scalar_select %p31, 0, %s30
      %p33 = scmp.le.s32.totalorder 1, %s6
      %p34 = scmp.lt.s32.totalorder %s6, 3
      %p35 = pnand %p33, %p34
      %p36 = pneg %p35
      // Predicated region
      $region9: #{reverse.3} parent=5 // pred_check
        _
      $region10: #{reverse.3} parent=5 // pred_check_branch
        %38 = sbr.rel (%p35) target = $region12
      $region11: #{reverse.3} parent=5 // pred_region
        %s39 = ssub.s32 %s6, 1
      $region12: #{reverse.3} parent=5 // pred_fallthru
        _
      %p40 = scmp.lt.s32.totalorder %s6, 2
      // Predicated region
      $region13: #{reverse.3} parent=5 // pred_check
        %p41 = pneg %p40
      $region14: #{reverse.3} parent=5 // pred_check_branch
        %43 = sbr.rel (%p41) target = $region16
      $region15: #{reverse.3} parent=5 // pred_region
        %s44 = sand.u32 %s6, 1
        %s45 = sand.u32 %s6, 1
        %s46 = smul.addr %s45, 8
        %s47 = scalar_lea.vmem [#allocation1], %s46
        %s48 = ssub.s32 1, %s15
        %s49 = smul.u32 2, %s13
        %s50 = smul.addr %s14, 2
        %s51 = sadd.s32 %s48, %s50
        %s52 = smul.addr %s49, 2
        %s53 = sadd.s32 %s51, %s52
        %s54 = smul.addr %s53, 4
        %s55 = scalar_lea.vmem %s0, %s54
        // Predicated region
        $region17: #{reverse.3} parent=15 // pred_check
          _
        $region18: #{reverse.3} parent=15 // pred_check_branch
          %57 = sbr.rel (0) target = $region20
        $region19: #{reverse.3} parent=15 // pred_region
          // Predicated region
          $region21: #{reverse.3} parent=19 // pred_check
            _
          $region22: #{reverse.3} parent=19 // pred_check_branch
            %59 = sbr.rel target = $region24
          $region23: #{reverse.3} parent=19 // pred_region
            // Predicated region
            $region36: #{reverse.3} parent=23 // pred_check
              _
            $region37: #{reverse.3} parent=23 // pred_check_branch
              %77 = sbr.rel (0) target = $region39
            $region38: #{reverse.3} parent=23 // pred_region
              loop: start=0, step=1, limit=1
              $region40: #{reverse.3} parent=38 // loop_pre_header
                _
              $region41: #{reverse.3} parent=38 // loop_header
                %s79 = sphi 0, %s83
                %p80 = scmp.ge.s32.totalorder %s79, 1
                %s84 = sphi %s55, %s55
                %s85 = sphi %s47, %s47
              $region42: #{reverse.3} parent=38 // loop_header_branch
                %82 = sbr.rel (%p80) target = $region46
              $region43: #{reverse.3} parent=38 // loop_body
                _
              $region44: #{reverse.3} parent=38 // loop_footer
                %s83 = sadd.s32 1, %s79
              $region45: #{reverse.3} parent=38 // loop_footer_branch
                %78 = sbr.rel target = $region41
              $region46: #{reverse.3} parent=38 // loop_exit
                _
              %s87 = ssub.s32 16, 1
              loop: start=0, step=1, limit=1
              $region47: #{reverse.3} parent=38 // loop_pre_header
                _
              $region48: #{reverse.3} parent=38 // loop_header
                %s89 = sphi 0, %s93
                %p90 = scmp.ge.s32.totalorder %s89, 1
                %s94 = sphi %s55, %s55
                %s95 = sphi %s47, %s47
              $region49: #{reverse.3} parent=38 // loop_header_branch
                %92 = sbr.rel (%p90) target = $region53
              $region50: #{reverse.3} parent=38 // loop_body
                %v96 = vld [vmem:[%s94] sm:%s87]
                %97 = vst [vmem:[%s95] sm:%s87] %v96
                %v98 = vld [vmem:[%s94 + $0x8] sm:%s87]
                %99 = vst [vmem:[%s95 + $0x4] sm:%s87] %v98
              $region51: #{reverse.3} parent=38 // loop_footer
                %s93 = sadd.s32 1, %s89
              $region52: #{reverse.3} parent=38 // loop_footer_branch
                %88 = sbr.rel target = $region48
              $region53: #{reverse.3} parent=38 // loop_exit
                _
            $region39: #{reverse.3} parent=23 // pred_fallthru
              _
          $region24: #{reverse.3} parent=19 // pred_fallthru
            _
          // Predicated region
          $region25: #{reverse.3} parent=19 // pred_check
            _
          $region26: #{reverse.3} parent=19 // pred_check_branch
            %61 = sbr.rel (0) target = $region28
          $region27: #{reverse.3} parent=19 // pred_region
            %s63 = ssub.s32 16, 1
            loop: start=0, step=1, limit=1
            $region29: #{reverse.3} parent=27 // loop_pre_header
              _
            $region30: #{reverse.3} parent=27 // loop_header
              %s65 = sphi 0, %s69
              %p66 = scmp.ge.s32.totalorder %s65, 1
              %s70 = sphi %s55, %s55
              %s71 = sphi %s47, %s47
            $region31: #{reverse.3} parent=27 // loop_header_branch
              %68 = sbr.rel (%p66) target = $region35
            $region32: #{reverse.3} parent=27 // loop_body
              %v72 = vld [vmem:[%s70] sm:%s63]
              %73 = vst [vmem:[%s71] sm:%s63] %v72
              %v74 = vld [vmem:[%s70 + $0x8] sm:%s63]
              %75 = vst [vmem:[%s71 + $0x4] sm:%s63] %v74
            $region33: #{reverse.3} parent=27 // loop_footer
              %s69 = sadd.s32 1, %s65
            $region34: #{reverse.3} parent=27 // loop_footer_branch
              %64 = sbr.rel target = $region30
            $region35: #{reverse.3} parent=27 // loop_exit
              _
          $region28: #{reverse.3} parent=19 // pred_fallthru
            _
        $region20: #{reverse.3} parent=15 // pred_fallthru
          _
        %100 = vnop
      $region16: #{reverse.3} parent=5 // pred_fallthru
        _
      %p101 = scmp.le.s32.totalorder 1, %s6
      %p102 = scmp.lt.s32.totalorder %s6, 3
      %p103 = pnand %p101, %p102
      %p104 = pneg %p103
      // Predicated region
      $region54: #{reverse.3} parent=5 // pred_check
        _
      $region55: #{reverse.3} parent=5 // pred_check_branch
        %106 = sbr.rel (%p103) target = $region57
      $region56: #{reverse.3} parent=5 // pred_region
        %s107 = ssub.s32 %s6, 1
        %s108 = sand.u32 %s11, 1
        %s109 = sand.u32 %s11, 1
        %s110 = smul.addr %s109, 8
        %s111 = scalar_lea.vmem [#allocation1], %s110
        %s112 = sand.u32 %s11, 1
        %s113 = sand.u32 %s11, 1
        %s114 = smul.addr %s113, 8
        %s115 = scalar_lea.vmem [#allocation1], %s114
        %s116 = sand.u32 %s11, 1
        %s117 = sand.u32 %s11, 1
        %s118 = smul.addr %s117, 8
        %s119 = scalar_lea.vmem [#allocation3], %s118
        %s121 = ssub.s32 16, 1
        %s122 = scalar_lea.vmem %s115, 4 [#allocation1]
        %v123 = vld [vmem:[%s122] sm:%s121]
        %s124 = scalar_lea.vmem [#allocation0], 8
        %125 = vst [vmem:[%s124] sm:%s121] %v123
        %v126 = vld [vmem:[%s115] sm:%s121]
        %127 = vst [vmem:[#allocation0] sm:%s121] %v126
        %s128 = ssub.s32 1, %s18
        %s129 = smul.u32 2, %s16
        %s130 = smul.u32 2, %s16
        %v131 = vld [vmem:[#allocation0] sm:$0xff]
        %132 = vperm.xlu0 %4, %v131
        %v133 = vpop.permute.xlu0 %132
        %134 = vst [vmem:[#allocation2] sm:$0xff] %v133
        %s135 = scalar_lea.vmem [#allocation2], 8
        %s136 = scalar_lea.vmem [#allocation0], 8
        %v137 = vld [vmem:[%s136] sm:$0xff]
        %138 = vperm.xlu0 %4, %v137
        %v139 = vpop.permute.xlu0 %138
        %140 = vst [vmem:[%s135] sm:$0xff] %v139
        %s142 = ssub.s32 16, 1
        %v143 = vld [vmem:[#allocation2] sm:%s142]
        %s145 = ssub.s32 16, 1
        %146 = vst [vmem:[%s119] sm:%s145] %v143
        %s147 = scalar_lea.vmem [#allocation2], 8
        %v148 = vld [vmem:[%s147] sm:%s142]
        %s150 = ssub.s32 16, 1
        %s151 = scalar_lea.vmem %s119, 4 [#allocation3]
        %152 = vst [vmem:[%s151] sm:%s150] %v148
        %s153 = sand.u32 %s11, 1
        %s154 = sand.u32 %s11, 1
        %s155 = smul.addr %s154, 8
        %s156 = scalar_lea.vmem [#allocation3], %s155
        %s157 = smul.u32 2, %s16
        %s158 = smul.addr %s17, 2
        %s159 = sadd.s32 %s18, %s158
        %s160 = smul.addr %s157, 2
        %s161 = sadd.s32 %s159, %s160
        %s162 = smul.addr %s161, 4
        %s163 = scalar_lea.vmem %s1, %s162
        // Predicated region
        $region58: #{reverse.3} parent=56 // pred_check
          _
        $region59: #{reverse.3} parent=56 // pred_check_branch
          %165 = sbr.rel (0) target = $region61
        $region60: #{reverse.3} parent=56 // pred_region
          // Predicated region
          $region62: #{reverse.3} parent=60 // pred_check
            _
          $region63: #{reverse.3} parent=60 // pred_check_branch
            %167 = sbr.rel target = $region65
          $region64: #{reverse.3} parent=60 // pred_region
            // Predicated region
            $region77: #{reverse.3} parent=64 // pred_check
              _
            $region78: #{reverse.3} parent=64 // pred_check_branch
              %185 = sbr.rel (0) target = $region80
            $region79: #{reverse.3} parent=64 // pred_region
              loop: start=0, step=1, limit=1
              $region81: #{reverse.3} parent=79 // loop_pre_header
                _
              $region82: #{reverse.3} parent=79 // loop_header
                %s187 = sphi 0, %s191
                %p188 = scmp.ge.s32.totalorder %s187, 1
                %s192 = sphi %s156, %s156
                %s193 = sphi %s163, %s163
              $region83: #{reverse.3} parent=79 // loop_header_branch
                %190 = sbr.rel (%p188) target = $region87
              $region84: #{reverse.3} parent=79 // loop_body
                _
              $region85: #{reverse.3} parent=79 // loop_footer
                %s191 = sadd.s32 1, %s187
              $region86: #{reverse.3} parent=79 // loop_footer_branch
                %186 = sbr.rel target = $region82
              $region87: #{reverse.3} parent=79 // loop_exit
                _
              %s195 = ssub.s32 16, 1
              loop: start=0, step=1, limit=1
              $region88: #{reverse.3} parent=79 // loop_pre_header
                _
              $region89: #{reverse.3} parent=79 // loop_header
                %s197 = sphi 0, %s201
                %p198 = scmp.ge.s32.totalorder %s197, 1
                %s202 = sphi %s156, %s156
                %s203 = sphi %s163, %s163
              $region90: #{reverse.3} parent=79 // loop_header_branch
                %200 = sbr.rel (%p198) target = $region94
              $region91: #{reverse.3} parent=79 // loop_body
                %v204 = vld [vmem:[%s202] sm:%s195]
                %205 = vst [vmem:[%s203] sm:%s195] %v204
                %v206 = vld [vmem:[%s202 + $0x4] sm:%s195]
                %207 = vst [vmem:[%s203 + $0x8] sm:%s195] %v206
              $region92: #{reverse.3} parent=79 // loop_footer
                %s201 = sadd.s32 1, %s197
              $region93: #{reverse.3} parent=79 // loop_footer_branch
                %196 = sbr.rel target = $region89
              $region94: #{reverse.3} parent=79 // loop_exit
                _
            $region80: #{reverse.3} parent=64 // pred_fallthru
              _
          $region65: #{reverse.3} parent=60 // pred_fallthru
            _
          // Predicated region
          $region66: #{reverse.3} parent=60 // pred_check
            _
          $region67: #{reverse.3} parent=60 // pred_check_branch
            %169 = sbr.rel (0) target = $region69
          $region68: #{reverse.3} parent=60 // pred_region
            %s171 = ssub.s32 16, 1
            loop: start=0, step=1, limit=1
            $region70: #{reverse.3} parent=68 // loop_pre_header
              _
            $region71: #{reverse.3} parent=68 // loop_header
              %s173 = sphi 0, %s177
              %p174 = scmp.ge.s32.totalorder %s173, 1
              %s178 = sphi %s156, %s156
              %s179 = sphi %s163, %s163
            $region72: #{reverse.3} parent=68 // loop_header_branch
              %176 = sbr.rel (%p174) target = $region76
            $region73: #{reverse.3} parent=68 // loop_body
              %v180 = vld [vmem:[%s178] sm:%s171]
              %181 = vst [vmem:[%s179] sm:%s171] %v180
              %v182 = vld [vmem:[%s178 + $0x4] sm:%s171]
              %183 = vst [vmem:[%s179 + $0x8] sm:%s171] %v182
            $region74: #{reverse.3} parent=68 // loop_footer
              %s177 = sadd.s32 1, %s173
            $region75: #{reverse.3} parent=68 // loop_footer_branch
              %172 = sbr.rel target = $region71
            $region76: #{reverse.3} parent=68 // loop_exit
              _
          $region69: #{reverse.3} parent=60 // pred_fallthru
            _
        $region61: #{reverse.3} parent=56 // pred_fallthru
          _
        %208 = vnop
      $region57: #{reverse.3} parent=5 // pred_fallthru
        _
      %p209 = scmp.le.s32.totalorder 2, %s6
      // Predicated region
      $region95: #{reverse.3} parent=5 // pred_check
        %p210 = pneg %p209
      $region96: #{reverse.3} parent=5 // pred_check_branch
        %212 = sbr.rel (%p210) target = $region98
      $region97: #{reverse.3} parent=5 // pred_region
        %s213 = ssub.s32 %s6, 2
        %s214 = sand.u32 %s12, 1
        %s215 = sand.u32 %s12, 1
        %s216 = smul.addr %s215, 8
        %s217 = scalar_lea.vmem [#allocation3], %s216
      $region98: #{reverse.3} parent=5 // pred_fallthru
        _
    $region6: #{reverse.3} parent=1 // loop_footer
      %s10 = sadd.s32 1, %s6
    $region7: #{reverse.3} parent=1 // loop_footer_branch
      %5 = sbr.rel target = $region3
    $region8: #{reverse.3} parent=1 // loop_exit
      _

// kernel: segment_generator_forward.5
$region0: #{segment_generator_forward.5}
  #allocation0 [shape = 'u32[]', space=smem, size = 0x4, offset = 0x4, fixed_abs, tag = 'smem constant byte address 0x4 - core index']
  #allocation1 [shape = 'u32[72,128]{1,0:T(1,128)}', space=vmem, size = 0x9000, scoped, tag = 'internal scratch']
  %s0 = inlined_call_operand.vmem [shape: f32[2,4,256], index: 0, kind: input, shape index: {}]
  %s1 = inlined_call_operand.hbm [shape: f32[2,1,256], index: 1, kind: output, shape index: {}]
  %s2 = sld [smem:[#allocation0]]
  $region14: #{segment_generator_forward.5} parent=0
    _
  %s4 = ssub.s32 1, %s2
  %s5 = scalar_select 0, %s4, %s2
  $region1: #{segment_generator_forward.5} parent=0
    #allocation2 [shape = 'u8[2048]{0}', space=vmem, size = 0x800, scoped, tag = 'output window, operand 0, single buffered']
    #allocation3 [shape = 's32[1]{0}', space=sflag, size = 0x4, scoped, tag = 'scoped memory for segment_generator_forward.5']
    %6 = vsyncpa [#allocation3], 0
    // Predicated region
    $region2: #{segment_generator_forward.5} parent=1 // pred_check
      _
    $region3: #{segment_generator_forward.5} parent=1 // pred_check_branch
      %8 = sbr.rel (0) target = $region5
    $region4: #{segment_generator_forward.5} parent=1 // pred_region
      _
    $region5: #{segment_generator_forward.5} parent=1 // pred_fallthru
      _
    %v9 = vld [vmem:[%s0] sm:$0xff]
    %v10 = vld [vmem:[%s0 + $0x8] sm:$0xff]
    %13 = vst [vmem:[#allocation1] ss:$2 sm:$0xff] %v9
    %v14 = vld.sshfl [vmem:[#allocation1] sm:$0xff pattern:$0x75316420]
    %v15 = vld.sshfl [vmem:[#allocation1 + $0x8] sm:$0xff pattern:$0x75316420]
    %s16 = scalar_lea.vmem [#allocation1], 16
    %17 = vst [vmem:[%s16] ss:$2 sm:$0xff] %v10
    %v18 = vld.sshfl [vmem:[#allocation1 + $0x10] sm:$0xff pattern:$0x75316420]
    %v19 = vld.sshfl [vmem:[#allocation1 + $0x18] sm:$0xff pattern:$0x75316420]
    %vm24 = vcmask 1043456
    %v25 = vsel %vm24, %v14, 0.0
    %v26 = vrot.slane %v25, 4
    %v27 = vadd.f32 %v25, %v26
    %v28 = vrot.slane %v27, 2
    %v29 = vadd.f32 %v27, %v28
    %v30 = vrot.slane %v29, 1
    %v31 = vadd.f32 %v29, %v30
    %v32 = vsel %vm24, %v15, 0.0
    %v33 = vrot.slane %v32, 4
    %v34 = vadd.f32 %v32, %v33
    %v35 = vrot.slane %v34, 2
    %v36 = vadd.f32 %v34, %v35
    %v37 = vrot.slane %v36, 1
    %v38 = vadd.f32 %v36, %v37
    %v39 = vsel %vm24, %v18, 0.0
    %v40 = vrot.slane %v39, 4
    %v41 = vadd.f32 %v39, %v40
    %v42 = vrot.slane %v41, 2
    %v43 = vadd.f32 %v41, %v42
    %v44 = vrot.slane %v43, 1
    %v45 = vadd.f32 %v43, %v44
    %v46 = vsel %vm24, %v19, 0.0
    %v47 = vrot.slane %v46, 4
    %v48 = vadd.f32 %v46, %v47
    %v49 = vrot.slane %v48, 2
    %v50 = vadd.f32 %v48, %v49
    %v51 = vrot.slane %v50, 1
    %v52 = vadd.f32 %v50, %v51
    %v53 = vrcp.pop 4.0
    %v54 = vmul.f32 4.0, %v53
    %v55 = vsub.f32 1.0, %v54
    %v56 = vmul.f32 %v53, %v55
    %v57 = vadd.f32 %v53, %v56
    %vm58 = vweird.f32 %v53
    %v59 = vsel %vm58, %v53, %v57
    %v60 = vmul.f32 %v31, %v59
    %v61 = vmul.f32 %v38, %v59
    %v62 = vmul.f32 %v45, %v59
    %v63 = vmul.f32 %v52, %v59
    %v68 = vrot.slane %v61, 7
    %v69 = vrot.slane %v63, 7
    %vm70 = vcmask 1040384
    %v71 = vsel %vm70, %v60, %v68
    %v72 = vsel %vm70, %v62, %v69
    %v75 = vlaneseq
    %vm76 = vcmp.ge.s32.totalorder %v75, 0
    %vm77 = vcmp.lt.s32.totalorder %v75, 256
    %vm78 = vmand %vm76, %vm77
    %79 = vst.msk [vmem:[#allocation2] sm:$0x3] %vm78, %v71
    %80 = vst.msk [vmem:[#allocation2 + $0x2] sm:$0x3] %vm78, %v72
    // Predicated region
    $region6: #{segment_generator_forward.5} parent=1 // pred_check
      _
    $region7: #{segment_generator_forward.5} parent=1 // pred_check_branch
      %82 = sbr.rel (0) target = $region9
    $region8: #{segment_generator_forward.5} parent=1 // pred_region
      %84 = vsyncadd [#allocation3], 0
      %s85 = sshll.u32 [#allocation2], 4
      %s86 = int_to_ptr.vmem [resolvable:$true] %s85
      %s87 = sshll.u32 %s1, 4
      %s88 = int_to_ptr.hbm [resolvable:$true] %s87
      %93 = dma.vmem_to_hbm [thread:$0]  %s86, 64, %s88, [#allocation3], 32, 32, 2
    $region9: #{segment_generator_forward.5} parent=1 // pred_fallthru
      _
    // Predicated region
    $region10: #{segment_generator_forward.5} parent=1 // pred_check
      _
    $region11: #{segment_generator_forward.5} parent=1 // pred_check_branch
      %95 = sbr.rel (0) target = $region13
    $region12: #{segment_generator_forward.5} parent=1 // pred_region
      %97 = dma.done [#allocation3], 64
    $region13: #{segment_generator_forward.5} parent=1 // pred_fallthru
      _
    %98 = vsyncpa [#allocation3], 1

</llo_original>
